<compile_context>
chip_gen: v7x
topology: tpu7x:2x2x1
jax: 0.10.0
libtpu: 0.0.40
codegen_flags: <defaults>
</compile_context>

<pallas_src>
import functools

import jax
import jax.numpy as jnp
import numpy as np
from jax.experimental import pallas as pl
from jax.experimental.pallas import tpu as pltpu


def _interp_matrix(in_size: int, out_size: int) -> np.ndarray:
    """Row-interpolation matrix for bilinear upsample with align_corners=True."""
    W = np.zeros((out_size, in_size), dtype=np.float32)
    if out_size == 1 or in_size == 1:
        W[:, 0] = 1.0
        return W
    scale = (in_size - 1) / (out_size - 1)
    for o in range(out_size):
        src = o * scale
        i0 = min(int(np.floor(src)), in_size - 1)
        i1 = min(i0 + 1, in_size - 1)
        frac = src - i0
        W[o, i0] += 1.0 - frac
        W[o, i1] += frac
    return W


def _default_batch_block(n: int) -> int:
    """Largest divisor of n that keeps the unrolled per-image loop <=8 and, when
    possible, gives the grid >=2 steps (so v7x can shard across both TensorCores)."""
    cap = min(8, max(1, n // 2)) if n >= 2 else 1
    for nb in range(cap, 0, -1):
        if n % nb == 0:
            return nb
    return 1


def _deconv_kernel(x_ref, wkron_ref, wk_ref, b_ref, o_ref, patches_ref, *,
                   kernel_size, up_width, c_pad):
    # x_ref      : (1, NB*Cp, H*W)   channel-padded, flattened input images of this block
    # wkron_ref  : (H*W, L)          kron(Wy, Wx)^T -- whole bilinear upsample as one matmul
    # wk_ref     : (F, K*K*Cp)       im2col conv weights, cols ordered (ky, kx, c_pad)
    # b_ref      : (F, 1)            conv bias
    # o_ref      : (1, NB, F, L)     lane-dense conv output over the full upsampled grid,
    #                                L = Ho2*Wo2; invalid columns hold wrap garbage.
    # patches_ref: (K*K*Cp, L)       aligned VMEM scratch, reused across images
    NB, L = o_ref.shape[1], o_ref.shape[3]
    K = kernel_size
    Wo2 = up_width
    Cp = c_pad

    wkron = wkron_ref[...]            # streamed from VMEM by the MXU
    wk = wk_ref[...]                  # (F, K*K*Cp), tiny
    bias = b_ref[...]                 # (F, 1)

    for n in range(NB):               # static unroll, NB <= 8 (larger batches go on the grid)
        # ---- bilinear upsample (align_corners=True) of image n: one MXU matmul ----
        up_n = jnp.dot(x_ref[0, n * Cp:(n + 1) * Cp, :], wkron,
                       preferred_element_type=jnp.float32)          # (Cp, L), aligned slice
        # ---- stream the K*K im2col taps into the aligned patches scratch ----
        # Tap (ky, kx) of the flattened image = lane roll by ky*Wo2 + kx (XLU).  Wrapped
        # elements only land in output columns the wrapper slices away.
        for t in range(K * K):
            ky, kx = t // K, t % K
            off = ky * Wo2 + kx
            tap = up_n if off == 0 else pltpu.roll(up_n, shift=(L - off) % L, axis=1)
            patches_ref[t * Cp:(t + 1) * Cp, :] = tap                # (Cp, L) aligned store
        # ---- K x K valid conv of image n: one MXU matmul + VPU bias broadcast add ----
        o_ref[0, n] = (jnp.dot(wk, patches_ref[...],
                               preferred_element_type=jnp.float32) + bias)


def deconv_forward(x, conv_w, conv_b, *, kernel_size=3, padding=0, batch_block=None):
    """Pallas implementation of deconv.forward (bilinear upsample x2 + Conv2d, padding=0).

    x      : (N, C, H, W) float32
    conv_w : (F, C, K, K) float32
    conv_b : (F,)         float32
    """
    assert padding == 0, "this kernel implements the module's default padding=0"
    N, C, H, W = x.shape
    F_out, C_w, Kh, Kw = conv_w.shape
    K = kernel_size
    assert (C_w, Kh, Kw) == (C, K, K), "conv weight shape does not match kernel_size/channels"

    Ho2, Wo2 = 2 * H, 2 * W                    # upsampled spatial size
    Ho, Wo = Ho2 - K + 1, Wo2 - K + 1          # valid conv output size
    HW = H * W
    L = Ho2 * Wo2                              # lane-dense flattened upsampled grid
    Cp = ((C + 7) // 8) * 8                    # channels padded to the f32 sublane tile
    KKCp = K * K * Cp

    if batch_block is None:
        batch_block = _default_batch_block(N)
    assert 1 <= batch_block <= N and N % batch_block == 0
    NB = batch_block
    G = N // NB

    # Whole separable bilinear upsample as a single matrix: kron(Wy, Wx)^T, built on host.
    # TODO(synk): for larger H,W replace this dense kron (16*(H*W)^2 bytes) with the separable
    # (Wy, Wx) two-matmul form to stay inside v7x's 64 MiB VMEM.
    wy = _interp_matrix(H, Ho2)                                # (Ho2, H)
    wx = _interp_matrix(W, Wo2)                                # (Wo2, W)
    wkron_t = jnp.asarray(np.kron(wy, wx).T)                   # (H*W, L)

    # Conv weights as an im2col matrix, tap-major / channel-minor, channel-padded to Cp with
    # zero columns (must stay consistent with the patches-row layout in the kernel).
    w_t = jnp.transpose(conv_w, (0, 2, 3, 1)).astype(jnp.float32)   # (F, K, K, C)
    if Cp != C:
        w_t = jnp.pad(w_t, ((0, 0), (0, 0), (0, 0), (0, Cp - C)))
    wk_mat = w_t.reshape(F_out, KKCp)                          # (F, K*K*Cp)
    bias_col = conv_b.reshape(F_out, 1).astype(jnp.float32)    # (F, 1)

    # Channel-pad x with zeros and flatten: rows ordered (n, c_pad), cols = flattened (h, w).
    x_p = x.astype(jnp.float32)
    if Cp != C:
        x_p = jnp.pad(x_p, ((0, 0), (0, Cp - C), (0, 0), (0, 0)))
    x_flat = x_p.reshape(G, NB * Cp, HW)

    def _build_call(single_buffer_weights: bool):
        kw = {}
        if single_buffer_weights and hasattr(pl, "Buffered"):
            kw = dict(pipeline_mode=pl.Buffered(1))   # grid-invariant: no 2nd VMEM buffer
        in_specs = [
            pl.BlockSpec((1, NB * Cp, HW), lambda g: (g, 0, 0)),
            pl.BlockSpec((HW, L), lambda g: (0, 0), **kw),
            pl.BlockSpec((F_out, KKCp), lambda g: (0, 0), **kw),
            pl.BlockSpec((F_out, 1), lambda g: (0, 0), **kw),
        ]
        return pl.pallas_call(
            functools.partial(_deconv_kernel, kernel_size=K, up_width=Wo2, c_pad=Cp),
            out_shape=jax.ShapeDtypeStruct((G, NB, F_out, L), jnp.float32),
            grid_spec=pltpu.PrefetchScalarGridSpec(
                num_scalar_prefetch=0,
                grid=(G,),
                in_specs=in_specs,
                out_specs=pl.BlockSpec((1, NB, F_out, L), lambda g: (g, 0, 0, 0)),
                scratch_shapes=[pltpu.VMEM((KKCp, L), jnp.float32)],
            ),
            compiler_params=pltpu.CompilerParams(
                dimension_semantics=("parallel",)),
        )

    try:
        out_flat = _build_call(True)(x_flat, wkron_t, wk_mat, bias_col)
    except Exception:
        # Fallback if single-buffered pipeline_mode is unsupported on this jax version.
        out_flat = _build_call(False)(x_flat, wkron_t, wk_mat, bias_col)

    # Un-flatten and drop the invalid (wrapped) columns; cheap XLA ops on a tiny array.
    # NOTE: this [:Ho, :Wo] slice is coupled to kernel_size via Ho = 2H-K+1, Wo = 2W-K+1.
    out = out_flat.reshape(N, F_out, Ho2, Wo2)[:, :, :Ho, :Wo]
    return out


def _reference(x, conv_w, conv_b):
    """Pure-JAX reference: separable upsample + lax conv (independent formulation)."""
    N, C, H, W = x.shape
    wy = jnp.asarray(_interp_matrix(H, 2 * H))
    wx = jnp.asarray(_interp_matrix(W, 2 * W))
    up = jnp.einsum('oh,nchw->ncow', wy, x)
    up = jnp.einsum('ncow,pw->ncop', up, wx)
    out = jax.lax.conv_general_dilated(
        up, conv_w, window_strides=(1, 1), padding='VALID',
        dimension_numbers=('NCHW', 'OIHW', 'NCHW'))
    return out + conv_b[None, :, None, None]


if __name__ == "__main__":
    key = jax.random.PRNGKey(0)
    k_x, k_w, k_b = jax.random.split(key, 3)

    N, C_in, C_out, H, W, K = 2, 4, 8, 16, 16, 3
    x = jax.random.normal(k_x, (N, C_in, H, W), dtype=jnp.float32)

    # Deterministic PyTorch-like init (uniform in +-1/sqrt(fan_in)).
    fan_in = C_in * K * K
    bound = 1.0 / np.sqrt(fan_in)
    conv_w = jax.random.uniform(k_w, (C_out, C_in, K, K),
                                minval=-bound, maxval=bound, dtype=jnp.float32)
    conv_b = jax.random.uniform(k_b, (C_out,),
                                minval=-bound, maxval=bound, dtype=jnp.float32)

    out = deconv_forward(x, conv_w, conv_b, kernel_size=K, padding=0)
    out = jax.block_until_ready(out)

    ref = jax.block_until_ready(_reference(x, conv_w, conv_b))
    np.testing.assert_allclose(np.asarray(out), np.asarray(ref),
                               rtol=1e-4, atol=1e-4)

    assert out.shape == (N, C_out, 2 * H - K + 1, 2 * W - K + 1)
    print("KERNEL_OK")
</pallas_src>

<mosaic_0001>
module attributes {stable_mosaic.version = 11 : i64} {
  func.func @_deconv_kernel(%arg0: i32, %arg1: memref<1x8x256xf32, #tpu.memory_space<vmem>>, %arg2: memref<256x1024xf32, #tpu.memory_space<vmem>>, %arg3: memref<8x72xf32, #tpu.memory_space<vmem>>, %arg4: memref<8x1xf32, #tpu.memory_space<vmem>>, %arg5: memref<1x1x8x1024xf32, #tpu.memory_space<vmem>>, %arg6: memref<72x1024xf32, #tpu.memory_space<vmem>>) attributes {dimension_semantics = [#tpu.dimension_semantics<parallel>], iteration_bounds = array<i64: 2>, scalar_prefetch = 0 : i64, scratch_operands = 1 : i64, tpu.core_type = #tpu.core_type<tc>, window_params = [{transform_indices = @transform_0, window_bounds = array<i64: 1, 8, 256>}, {pipeline_mode = #tpu.pipeline_mode<synchronous>, transform_indices = @transform_1, window_bounds = array<i64: 256, 1024>}, {pipeline_mode = #tpu.pipeline_mode<synchronous>, transform_indices = @transform_2, window_bounds = array<i64: 8, 72>}, {pipeline_mode = #tpu.pipeline_mode<synchronous>, transform_indices = @transform_3, window_bounds = array<i64: 8, 1>}, {transform_indices = @transform_4, window_bounds = array<i64: 1, 1, 8, 1024>}]} {
    %c0 = arith.constant 0 : index
    %c0_0 = arith.constant 0 : index
    %0 = vector.load %arg2[%c0, %c0_0] : memref<256x1024xf32, #tpu.memory_space<vmem>>, vector<256x1024xf32>
    %c0_1 = arith.constant 0 : index
    %c0_2 = arith.constant 0 : index
    %1 = vector.load %arg3[%c0_1, %c0_2] : memref<8x72xf32, #tpu.memory_space<vmem>>, vector<8x72xf32>
    %c0_3 = arith.constant 0 : index
    %c0_4 = arith.constant 0 : index
    %2 = vector.load %arg4[%c0_3, %c0_4] : memref<8x1xf32, #tpu.memory_space<vmem>>, vector<8x1xf32>
    %c0_5 = arith.constant 0 : index
    %c0_6 = arith.constant 0 : index
    %c0_7 = arith.constant 0 : index
    %3 = vector.load %arg1[%c0_5, %c0_6, %c0_7] : memref<1x8x256xf32, #tpu.memory_space<vmem>>, vector<1x8x256xf32>
    %4 = vector.shape_cast %3 : vector<1x8x256xf32> to vector<8x256xf32>
    %cst = arith.constant dense<0.000000e+00> : vector<8x1024xf32>
    %5 = tpu.matmul %4, %0, %cst {dimension_numbers = #tpu.dot_dimension_numbers<[1], [0], [0], [1], [0, 0, 1, 1], [], []>} : vector<8x256xf32>, vector<256x1024xf32>, vector<8x1024xf32> -> vector<8x1024xf32>
    %c0_8 = arith.constant 0 : index
    %c0_9 = arith.constant 0 : index
    %6 = vector.load %arg6[%c0_8, %c0_9] : memref<72x1024xf32, #tpu.memory_space<vmem>>, vector<8x1024xf32>
    tpu.vector_store %arg6[%c0_8, %c0_9], %5 {strides = array<i32>} : memref<72x1024xf32, #tpu.memory_space<vmem>>, vector<8x1024xf32>,
    %c1023_i32 = arith.constant 1023 : i32
    %7 = tpu.dynamic_rotate %5 by %c1023_i32 dim 1 : vector<8x1024xf32>, i32 -> vector<8x1024xf32>
    %c8 = arith.constant 8 : index
    %c0_10 = arith.constant 0 : index
    %8 = vector.load %arg6[%c8, %c0_10] : memref<72x1024xf32, #tpu.memory_space<vmem>>, vector<8x1024xf32>
    tpu.vector_store %arg6[%c8, %c0_10], %7 {strides = array<i32>} : memref<72x1024xf32, #tpu.memory_space<vmem>>, vector<8x1024xf32>,
    %c1022_i32 = arith.constant 1022 : i32
    %9 = tpu.dynamic_rotate %5 by %c1022_i32 dim 1 : vector<8x1024xf32>, i32 -> vector<8x1024xf32>
    %c16 = arith.constant 16 : index
    %c0_11 = arith.constant 0 : index
    %10 = vector.load %arg6[%c16, %c0_11] : memref<72x1024xf32, #tpu.memory_space<vmem>>, vector<8x1024xf32>
    tpu.vector_store %arg6[%c16, %c0_11], %9 {strides = array<i32>} : memref<72x1024xf32, #tpu.memory_space<vmem>>, vector<8x1024xf32>,
    %c992_i32 = arith.constant 992 : i32
    %11 = tpu.dynamic_rotate %5 by %c992_i32 dim 1 : vector<8x1024xf32>, i32 -> vector<8x1024xf32>
    %c24 = arith.constant 24 : index
    %c0_12 = arith.constant 0 : index
    %12 = vector.load %arg6[%c24, %c0_12] : memref<72x1024xf32, #tpu.memory_space<vmem>>, vector<8x1024xf32>
    tpu.vector_store %arg6[%c24, %c0_12], %11 {strides = array<i32>} : memref<72x1024xf32, #tpu.memory_space<vmem>>, vector<8x1024xf32>,
    %c991_i32 = arith.constant 991 : i32
    %13 = tpu.dynamic_rotate %5 by %c991_i32 dim 1 : vector<8x1024xf32>, i32 -> vector<8x1024xf32>
    %c32 = arith.constant 32 : index
    %c0_13 = arith.constant 0 : index
    %14 = vector.load %arg6[%c32, %c0_13] : memref<72x1024xf32, #tpu.memory_space<vmem>>, vector<8x1024xf32>
    tpu.vector_store %arg6[%c32, %c0_13], %13 {strides = array<i32>} : memref<72x1024xf32, #tpu.memory_space<vmem>>, vector<8x1024xf32>,
    %c990_i32 = arith.constant 990 : i32
    %15 = tpu.dynamic_rotate %5 by %c990_i32 dim 1 : vector<8x1024xf32>, i32 -> vector<8x1024xf32>
    %c40 = arith.constant 40 : index
    %c0_14 = arith.constant 0 : index
    %16 = vector.load %arg6[%c40, %c0_14] : memref<72x1024xf32, #tpu.memory_space<vmem>>, vector<8x1024xf32>
    tpu.vector_store %arg6[%c40, %c0_14], %15 {strides = array<i32>} : memref<72x1024xf32, #tpu.memory_space<vmem>>, vector<8x1024xf32>,
    %c960_i32 = arith.constant 960 : i32
    %17 = tpu.dynamic_rotate %5 by %c960_i32 dim 1 : vector<8x1024xf32>, i32 -> vector<8x1024xf32>
    %c48 = arith.constant 48 : index
    %c0_15 = arith.constant 0 : index
    %18 = vector.load %arg6[%c48, %c0_15] : memref<72x1024xf32, #tpu.memory_space<vmem>>, vector<8x1024xf32>
    tpu.vector_store %arg6[%c48, %c0_15], %17 {strides = array<i32>} : memref<72x1024xf32, #tpu.memory_space<vmem>>, vector<8x1024xf32>,
    %c959_i32 = arith.constant 959 : i32
    %19 = tpu.dynamic_rotate %5 by %c959_i32 dim 1 : vector<8x1024xf32>, i32 -> vector<8x1024xf32>
    %c56 = arith.constant 56 : index
    %c0_16 = arith.constant 0 : index
    %20 = vector.load %arg6[%c56, %c0_16] : memref<72x1024xf32, #tpu.memory_space<vmem>>, vector<8x1024xf32>
    tpu.vector_store %arg6[%c56, %c0_16], %19 {strides = array<i32>} : memref<72x1024xf32, #tpu.memory_space<vmem>>, vector<8x1024xf32>,
    %c958_i32 = arith.constant 958 : i32
    %21 = tpu.dynamic_rotate %5 by %c958_i32 dim 1 : vector<8x1024xf32>, i32 -> vector<8x1024xf32>
    %c64 = arith.constant 64 : index
    %c0_17 = arith.constant 0 : index
    %22 = vector.load %arg6[%c64, %c0_17] : memref<72x1024xf32, #tpu.memory_space<vmem>>, vector<8x1024xf32>
    tpu.vector_store %arg6[%c64, %c0_17], %21 {strides = array<i32>} : memref<72x1024xf32, #tpu.memory_space<vmem>>, vector<8x1024xf32>,
    %c0_18 = arith.constant 0 : index
    %c0_19 = arith.constant 0 : index
    %23 = vector.load %arg6[%c0_18, %c0_19] : memref<72x1024xf32, #tpu.memory_space<vmem>>, vector<72x1024xf32>
    %cst_20 = arith.constant dense<0.000000e+00> : vector<8x1024xf32>
    %24 = tpu.matmul %1, %23, %cst_20 {dimension_numbers = #tpu.dot_dimension_numbers<[1], [0], [0], [1], [0, 0, 1, 1], [], []>} : vector<8x72xf32>, vector<72x1024xf32>, vector<8x1024xf32> -> vector<8x1024xf32>
    %25 = vector.broadcast %2 : vector<8x1xf32> to vector<8x1024xf32>
    %26 = arith.addf %24, %25 : vector<8x1024xf32>
    %c0_21 = arith.constant 0 : index
    %c0_22 = arith.constant 0 : index
    %c0_23 = arith.constant 0 : index
    %c0_24 = arith.constant 0 : index
    %27 = vector.load %arg5[%c0_21, %c0_22, %c0_23, %c0_24] : memref<1x1x8x1024xf32, #tpu.memory_space<vmem>>, vector<1x1x8x1024xf32>
    %28 = vector.shape_cast %27 : vector<1x1x8x1024xf32> to vector<8x1024xf32>
    %29 = vector.shape_cast %26 : vector<8x1024xf32> to vector<1x1x8x1024xf32>
    tpu.vector_store %arg5[%c0_21, %c0_22, %c0_23, %c0_24], %29 {strides = array<i32>} : memref<1x1x8x1024xf32, #tpu.memory_space<vmem>>, vector<1x1x8x1024xf32>,
    return
  }
  func.func @transform_0(%arg0: i32) -> (i32, i32, i32) {
    %c0_i32 = arith.constant 0 : i32
    %c0_i32_0 = arith.constant 0 : i32
    %c0_i32_1 = arith.constant 0 : i32
    return %arg0, %c0_i32, %c0_i32_0 : i32, i32, i32
  }
  func.func @transform_1(%arg0: i32) -> (i32, i32) {
    %c0_i32 = arith.constant 0 : i32
    %c0_i32_0 = arith.constant 0 : i32
    %c0_i32_1 = arith.constant 0 : i32
    return %c0_i32, %c0_i32_0 : i32, i32
  }
  func.func @transform_2(%arg0: i32) -> (i32, i32) {
    %c0_i32 = arith.constant 0 : i32
    %c0_i32_0 = arith.constant 0 : i32
    %c0_i32_1 = arith.constant 0 : i32
    return %c0_i32, %c0_i32_0 : i32, i32
  }
  func.func @transform_3(%arg0: i32) -> (i32, i32) {
    %c0_i32 = arith.constant 0 : i32
    %c0_i32_0 = arith.constant 0 : i32
    %c0_i32_1 = arith.constant 0 : i32
    return %c0_i32, %c0_i32_0 : i32, i32
  }
  func.func @transform_4(%arg0: i32) -> (i32, i32, i32, i32) {
    %c0_i32 = arith.constant 0 : i32
    %c0_i32_0 = arith.constant 0 : i32
    %c0_i32_1 = arith.constant 0 : i32
    %c0_i32_2 = arith.constant 0 : i32
    return %arg0, %c0_i32, %c0_i32_0, %c0_i32_1 : i32, i32, i32, i32
  }
}

module attributes {stable_mosaic.version = 11 : i64} {
  func.func @_deconv_kernel(%arg0: i32, %arg1: memref<1x8x256xf32, #tpu.memory_space<vmem>>, %arg2: memref<256x1024xf32, #tpu.memory_space<vmem>>, %arg3: memref<8x72xf32, #tpu.memory_space<vmem>>, %arg4: memref<8x1xf32, #tpu.memory_space<vmem>>, %arg5: memref<1x1x8x1024xf32, #tpu.memory_space<vmem>>, %arg6: memref<72x1024xf32, #tpu.memory_space<vmem>>) attributes {dimension_semantics = [#tpu.dimension_semantics<parallel>], iteration_bounds = array<i64: 2>, scalar_prefetch = 0 : i64, scratch_operands = 1 : i64, tpu.core_type = #tpu.core_type<tc>, window_params = [{transform_indices = @transform_0, window_bounds = array<i64: 1, 8, 256>}, {pipeline_mode = #tpu.pipeline_mode<synchronous>, transform_indices = @transform_1, window_bounds = array<i64: 256, 1024>}, {pipeline_mode = #tpu.pipeline_mode<synchronous>, transform_indices = @transform_2, window_bounds = array<i64: 8, 72>}, {pipeline_mode = #tpu.pipeline_mode<synchronous>, transform_indices = @transform_3, window_bounds = array<i64: 8, 1>}, {transform_indices = @transform_4, window_bounds = array<i64: 1, 1, 8, 1024>}]} {
    %c0 = arith.constant 0 : index
    %c0_0 = arith.constant 0 : index
    %0 = vector.load %arg2[%c0, %c0_0] : memref<256x1024xf32, #tpu.memory_space<vmem>>, vector<256x1024xf32>
    %c0_1 = arith.constant 0 : index
    %c0_2 = arith.constant 0 : index
    %1 = vector.load %arg3[%c0_1, %c0_2] : memref<8x72xf32, #tpu.memory_space<vmem>>, vector<8x72xf32>
    %c0_3 = arith.constant 0 : index
    %c0_4 = arith.constant 0 : index
    %2 = vector.load %arg4[%c0_3, %c0_4] : memref<8x1xf32, #tpu.memory_space<vmem>>, vector<8x1xf32>
    %c0_5 = arith.constant 0 : index
    %c0_6 = arith.constant 0 : index
    %c0_7 = arith.constant 0 : index
    %3 = vector.load %arg1[%c0_5, %c0_6, %c0_7] : memref<1x8x256xf32, #tpu.memory_space<vmem>>, vector<1x8x256xf32>
    %4 = vector.shape_cast %3 : vector<1x8x256xf32> to vector<8x256xf32>
    %cst = arith.constant dense<0.000000e+00> : vector<8x1024xf32>
    %5 = tpu.matmul %4, %0, %cst {dimension_numbers = #tpu.dot_dimension_numbers<[1], [0], [0], [1], [0, 0, 1, 1], [], []>} : vector<8x256xf32>, vector<256x1024xf32>, vector<8x1024xf32> -> vector<8x1024xf32>
    %c0_8 = arith.constant 0 : index
    %c0_9 = arith.constant 0 : index
    %6 = vector.load %arg6[%c0_8, %c0_9] : memref<72x1024xf32, #tpu.memory_space<vmem>>, vector<8x1024xf32>
    tpu.vector_store %arg6[%c0_8, %c0_9], %5 {strides = array<i32>} : memref<72x1024xf32, #tpu.memory_space<vmem>>, vector<8x1024xf32>,
    %c1023_i32 = arith.constant 1023 : i32
    %7 = tpu.dynamic_rotate %5 by %c1023_i32 dim 1 : vector<8x1024xf32>, i32 -> vector<8x1024xf32>
    %c8 = arith.constant 8 : index
    %c0_10 = arith.constant 0 : index
    %8 = vector.load %arg6[%c8, %c0_10] : memref<72x1024xf32, #tpu.memory_space<vmem>>, vector<8x1024xf32>
    tpu.vector_store %arg6[%c8, %c0_10], %7 {strides = array<i32>} : memref<72x1024xf32, #tpu.memory_space<vmem>>, vector<8x1024xf32>,
    %c1022_i32 = arith.constant 1022 : i32
    %9 = tpu.dynamic_rotate %5 by %c1022_i32 dim 1 : vector<8x1024xf32>, i32 -> vector<8x1024xf32>
    %c16 = arith.constant 16 : index
    %c0_11 = arith.constant 0 : index
    %10 = vector.load %arg6[%c16, %c0_11] : memref<72x1024xf32, #tpu.memory_space<vmem>>, vector<8x1024xf32>
    tpu.vector_store %arg6[%c16, %c0_11], %9 {strides = array<i32>} : memref<72x1024xf32, #tpu.memory_space<vmem>>, vector<8x1024xf32>,
    %c992_i32 = arith.constant 992 : i32
    %11 = tpu.dynamic_rotate %5 by %c992_i32 dim 1 : vector<8x1024xf32>, i32 -> vector<8x1024xf32>
    %c24 = arith.constant 24 : index
    %c0_12 = arith.constant 0 : index
    %12 = vector.load %arg6[%c24, %c0_12] : memref<72x1024xf32, #tpu.memory_space<vmem>>, vector<8x1024xf32>
    tpu.vector_store %arg6[%c24, %c0_12], %11 {strides = array<i32>} : memref<72x1024xf32, #tpu.memory_space<vmem>>, vector<8x1024xf32>,
    %c991_i32 = arith.constant 991 : i32
    %13 = tpu.dynamic_rotate %5 by %c991_i32 dim 1 : vector<8x1024xf32>, i32 -> vector<8x1024xf32>
    %c32 = arith.constant 32 : index
    %c0_13 = arith.constant 0 : index
    %14 = vector.load %arg6[%c32, %c0_13] : memref<72x1024xf32, #tpu.memory_space<vmem>>, vector<8x1024xf32>
    tpu.vector_store %arg6[%c32, %c0_13], %13 {strides = array<i32>} : memref<72x1024xf32, #tpu.memory_space<vmem>>, vector<8x1024xf32>,
    %c990_i32 = arith.constant 990 : i32
    %15 = tpu.dynamic_rotate %5 by %c990_i32 dim 1 : vector<8x1024xf32>, i32 -> vector<8x1024xf32>
    %c40 = arith.constant 40 : index
    %c0_14 = arith.constant 0 : index
    %16 = vector.load %arg6[%c40, %c0_14] : memref<72x1024xf32, #tpu.memory_space<vmem>>, vector<8x1024xf32>
    tpu.vector_store %arg6[%c40, %c0_14], %15 {strides = array<i32>} : memref<72x1024xf32, #tpu.memory_space<vmem>>, vector<8x1024xf32>,
    %c960_i32 = arith.constant 960 : i32
    %17 = tpu.dynamic_rotate %5 by %c960_i32 dim 1 : vector<8x1024xf32>, i32 -> vector<8x1024xf32>
    %c48 = arith.constant 48 : index
    %c0_15 = arith.constant 0 : index
    %18 = vector.load %arg6[%c48, %c0_15] : memref<72x1024xf32, #tpu.memory_space<vmem>>, vector<8x1024xf32>
    tpu.vector_store %arg6[%c48, %c0_15], %17 {strides = array<i32>} : memref<72x1024xf32, #tpu.memory_space<vmem>>, vector<8x1024xf32>,
    %c959_i32 = arith.constant 959 : i32
    %19 = tpu.dynamic_rotate %5 by %c959_i32 dim 1 : vector<8x1024xf32>, i32 -> vector<8x1024xf32>
    %c56 = arith.constant 56 : index
    %c0_16 = arith.constant 0 : index
    %20 = vector.load %arg6[%c56, %c0_16] : memref<72x1024xf32, #tpu.memory_space<vmem>>, vector<8x1024xf32>
    tpu.vector_store %arg6[%c56, %c0_16], %19 {strides = array<i32>} : memref<72x1024xf32, #tpu.memory_space<vmem>>, vector<8x1024xf32>,
    %c958_i32 = arith.constant 958 : i32
    %21 = tpu.dynamic_rotate %5 by %c958_i32 dim 1 : vector<8x1024xf32>, i32 -> vector<8x1024xf32>
    %c64 = arith.constant 64 : index
    %c0_17 = arith.constant 0 : index
    %22 = vector.load %arg6[%c64, %c0_17] : memref<72x1024xf32, #tpu.memory_space<vmem>>, vector<8x1024xf32>
    tpu.vector_store %arg6[%c64, %c0_17], %21 {strides = array<i32>} : memref<72x1024xf32, #tpu.memory_space<vmem>>, vector<8x1024xf32>,
    %c0_18 = arith.constant 0 : index
    %c0_19 = arith.constant 0 : index
    %23 = vector.load %arg6[%c0_18, %c0_19] : memref<72x1024xf32, #tpu.memory_space<vmem>>, vector<72x1024xf32>
    %cst_20 = arith.constant dense<0.000000e+00> : vector<8x1024xf32>
    %24 = tpu.matmul %1, %23, %cst_20 {dimension_numbers = #tpu.dot_dimension_numbers<[1], [0], [0], [1], [0, 0, 1, 1], [], []>} : vector<8x72xf32>, vector<72x1024xf32>, vector<8x1024xf32> -> vector<8x1024xf32>
    %25 = vector.broadcast %2 : vector<8x1xf32> to vector<8x1024xf32>
    %26 = arith.addf %24, %25 : vector<8x1024xf32>
    %c0_21 = arith.constant 0 : index
    %c0_22 = arith.constant 0 : index
    %c0_23 = arith.constant 0 : index
    %c0_24 = arith.constant 0 : index
    %27 = vector.load %arg5[%c0_21, %c0_22, %c0_23, %c0_24] : memref<1x1x8x1024xf32, #tpu.memory_space<vmem>>, vector<1x1x8x1024xf32>
    %28 = vector.shape_cast %27 : vector<1x1x8x1024xf32> to vector<8x1024xf32>
    %29 = vector.shape_cast %26 : vector<8x1024xf32> to vector<1x1x8x1024xf32>
    tpu.vector_store %arg5[%c0_21, %c0_22, %c0_23, %c0_24], %29 {strides = array<i32>} : memref<1x1x8x1024xf32, #tpu.memory_space<vmem>>, vector<1x1x8x1024xf32>,
    return
  }
  func.func @transform_0(%arg0: i32) -> (i32, i32, i32) {
    %c0_i32 = arith.constant 0 : i32
    %c0_i32_0 = arith.constant 0 : i32
    %c0_i32_1 = arith.constant 0 : i32
    return %arg0, %c0_i32, %c0_i32_0 : i32, i32, i32
  }
  func.func @transform_1(%arg0: i32) -> (i32, i32) {
    %c0_i32 = arith.constant 0 : i32
    %c0_i32_0 = arith.constant 0 : i32
    %c0_i32_1 = arith.constant 0 : i32
    return %c0_i32, %c0_i32_0 : i32, i32
  }
  func.func @transform_2(%arg0: i32) -> (i32, i32) {
    %c0_i32 = arith.constant 0 : i32
    %c0_i32_0 = arith.constant 0 : i32
    %c0_i32_1 = arith.constant 0 : i32
    return %c0_i32, %c0_i32_0 : i32, i32
  }
  func.func @transform_3(%arg0: i32) -> (i32, i32) {
    %c0_i32 = arith.constant 0 : i32
    %c0_i32_0 = arith.constant 0 : i32
    %c0_i32_1 = arith.constant 0 : i32
    return %c0_i32, %c0_i32_0 : i32, i32
  }
  func.func @transform_4(%arg0: i32) -> (i32, i32, i32, i32) {
    %c0_i32 = arith.constant 0 : i32
    %c0_i32_0 = arith.constant 0 : i32
    %c0_i32_1 = arith.constant 0 : i32
    %c0_i32_2 = arith.constant 0 : i32
    return %arg0, %c0_i32, %c0_i32_0, %c0_i32_1 : i32, i32, i32, i32
  }
}

</mosaic_0001>

<llo_original>
// kernel: tpu_custom_call.1
$region0: #{tpu_custom_call.1}
  #allocation0 [shape = 'u32[]', space=smem, size = 0x4, offset = 0x4, fixed_abs, tag = 'smem constant byte address 0x4 - core index']
  #allocation1 [shape = 'u32[144,128]{1,0:T(1,128)}', space=vmem, size = 0x12000, scoped, tag = 'internal scratch']
  #allocation2 [shape = 'f32[72,1024]{1,0:T(8,128)}', space=vmem, size = 0x48000, scoped, tag = 'scratch operand']
  %s0 = inlined_call_operand.hbm [shape: f32[2,8,256], index: 0, kind: input, shape index: {}]
  %s1 = inlined_call_operand.hbm [shape: f32[256,1024], index: 1, kind: input, shape index: {}]
  %s2 = inlined_call_operand.vmem [shape: f32[8,72], index: 2, kind: input, shape index: {}]
  %s3 = inlined_call_operand.vmem [shape: f32[8,1], index: 3, kind: input, shape index: {}]
  %s4 = inlined_call_operand.hbm [shape: f32[2,1,8,1024], index: 4, kind: output, shape index: {}]
  %s5 = sld [smem:[#allocation0]]
  $region57: #{tpu_custom_call.1} parent=0
    _
  %s7 = ssub.s32 1, %s5
  %s8 = scalar_select 0, %s7, %s5
  $region1: #{tpu_custom_call.1} parent=0
    #allocation3 [shape = 'u8[16384]{0}', space=vmem, size = 0x4000, scoped, tag = 'input window, operand 0']
    #allocation4 [shape = 's32[2]{0}', space=sflag, size = 0x8, scoped, tag = 'scoped memory for tpu_custom_call.1']
    #allocation5 [shape = 's32[2]{0}', space=sflag, size = 0x8, scoped, tag = 'scoped memory for tpu_custom_call.1']
    #allocation6 [shape = 'u8[1048576]{0}', space=vmem, size = 0x100000, scoped, tag = 'input window, operand 1, single buffered']
    #allocation7 [shape = 's32[1]{0}', space=sflag, size = 0x4, scoped, tag = 'scoped memory for tpu_custom_call.1']
    #allocation8 [shape = 'u8[65536]{0}', space=vmem, size = 0x10000, scoped, tag = 'output window, operand 0']
    %9 = vsyncpa [#allocation4], 0
    %s10 = scalar_lea.sflag [#allocation4], 1
    %11 = vsyncpa %s10, 0
    %12 = vsyncpa [#allocation7], 0
    %13 = vsyncpa [#allocation5], 0
    %s14 = scalar_lea.sflag [#allocation5], 1
    %15 = vsyncpa %s14, 0
    loop: start=0, step=1, limit=4
    $region2: #{tpu_custom_call.1} parent=1 // loop_pre_header
      _
    $region3: #{tpu_custom_call.1} parent=1 // loop_header
      %s17 = sphi 0, %s21
      %p18 = scmp.ge.s32.totalorder %s17, 4
      %s27 = sphi 0, %s29
      %s30 = sphi 0, %s27
      %s31 = sphi 0, %s30
      %s47 = sphi 0, %s31
      %s51 = sphi 0, %s51
      %s53 = sphi 0, %s51
      %s54 = sphi 0, %s53
      %s68 = sphi 0, %s54
      %s72 = sphi 0, %s72
      %s74 = sphi 0, %s72
      %s75 = sphi 0, %s74
      %s89 = sphi 0, %s75
      %s93 = sphi 0, %s93
      %s95 = sphi 0, %s93
      %s96 = sphi 0, %s95
      %s110 = sphi 0, %s96
      %s116 = sphi 0, %s118
      %s119 = sphi 0, %s116
      %s120 = sphi 0, %s119
      %s136 = sphi 0, %s120
    $region4: #{tpu_custom_call.1} parent=1 // loop_header_branch
      %20 = sbr.rel (%p18) target = $region8
    $region5: #{tpu_custom_call.1} parent=1 // loop_body
      %s22 = ssub.s32 %s17, 1
      %s23 = ssub.s32 %s17, 2
      %s24 = sadd.s32 %s17, 1
      %s25 = ssub.s32 %s17, %s24
      %p26 = scmp.eq.s32.totalorder %s25, 0
      %s28 = sadd.s32 %s27, 1
      %s29 = scalar_select %p26, %s27, %s28
      %p32 = pneg %p26
      %p33 = scmp.eq.s32.totalorder %s17, 1
      %p34 = por %p32, %p33
      %p35 = scmp.ne.s32.totalorder %s27, %s30
      %p36 = scmp.eq.s32.totalorder %s17, 0
      %p37 = por %p35, %p36
      %p38 = scmp.ne.s32.totalorder %s27, %s30
      %p39 = scmp.eq.s32.totalorder %s22, 1
      %p40 = por %p38, %p39
      %p41 = scmp.ne.s32.totalorder %s30, %s31
      %p42 = scmp.eq.s32.totalorder %s22, 0
      %p43 = por %p41, %p42
      %p44 = scmp.ne.s32.totalorder %s30, %s31
      %p45 = scmp.eq.s32.totalorder %s23, 1
      %p46 = por %p44, %p45
      %p48 = scmp.ne.s32.totalorder %s31, %s47
      %p49 = scmp.eq.s32.totalorder %s23, 0
      %p50 = por %p48, %p49
      %s52 = sadd.s32 %s51, 1
      %p55 = scmp.eq.s32.totalorder %s17, 1
      %p56 = scmp.ne.s32.totalorder %s51, %s53
      %p57 = scmp.eq.s32.totalorder %s17, 0
      %p58 = por %p56, %p57
      %p59 = scmp.ne.s32.totalorder %s51, %s53
      %p60 = scmp.eq.s32.totalorder %s22, 1
      %p61 = por %p59, %p60
      %p62 = scmp.ne.s32.totalorder %s53, %s54
      %p63 = scmp.eq.s32.totalorder %s22, 0
      %p64 = por %p62, %p63
      %p65 = scmp.ne.s32.totalorder %s53, %s54
      %p66 = scmp.eq.s32.totalorder %s23, 1
      %p67 = por %p65, %p66
      %p69 = scmp.ne.s32.totalorder %s54, %s68
      %p70 = scmp.eq.s32.totalorder %s23, 0
      %p71 = por %p69, %p70
      %s73 = sadd.s32 %s72, 1
      %p76 = scmp.eq.s32.totalorder %s17, 1
      %p77 = scmp.ne.s32.totalorder %s72, %s74
      %p78 = scmp.eq.s32.totalorder %s17, 0
      %p79 = por %p77, %p78
      %p80 = scmp.ne.s32.totalorder %s72, %s74
      %p81 = scmp.eq.s32.totalorder %s22, 1
      %p82 = por %p80, %p81
      %p83 = scmp.ne.s32.totalorder %s74, %s75
      %p84 = scmp.eq.s32.totalorder %s22, 0
      %p85 = por %p83, %p84
      %p86 = scmp.ne.s32.totalorder %s74, %s75
      %p87 = scmp.eq.s32.totalorder %s23, 1
      %p88 = por %p86, %p87
      %p90 = scmp.ne.s32.totalorder %s75, %s89
      %p91 = scmp.eq.s32.totalorder %s23, 0
      %p92 = por %p90, %p91
      %s94 = sadd.s32 %s93, 1
      %p97 = scmp.eq.s32.totalorder %s17, 1
      %p98 = scmp.ne.s32.totalorder %s93, %s95
      %p99 = scmp.eq.s32.totalorder %s17, 0
      %p100 = por %p98, %p99
      %p101 = scmp.ne.s32.totalorder %s93, %s95
      %p102 = scmp.eq.s32.totalorder %s22, 1
      %p103 = por %p101, %p102
      %p104 = scmp.ne.s32.totalorder %s95, %s96
      %p105 = scmp.eq.s32.totalorder %s22, 0
      %p106 = por %p104, %p105
      %p107 = scmp.ne.s32.totalorder %s95, %s96
      %p108 = scmp.eq.s32.totalorder %s23, 1
      %p109 = por %p107, %p108
      %p111 = scmp.ne.s32.totalorder %s96, %s110
      %p112 = scmp.eq.s32.totalorder %s23, 0
      %p113 = por %p111, %p112
      %s114 = ssub.s32 %s17, %s24
      %p115 = scmp.eq.s32.totalorder %s114, 0
      %s117 = sadd.s32 %s116, 1
      %s118 = scalar_select %p115, %s116, %s117
      %p121 = pneg %p115
      %p122 = scmp.eq.s32.totalorder %s17, 1
      %p123 = por %p121, %p122
      %p124 = scmp.ne.s32.totalorder %s116, %s119
      %p125 = scmp.eq.s32.totalorder %s17, 0
      %p126 = por %p124, %p125
      %p127 = scmp.ne.s32.totalorder %s116, %s119
      %p128 = scmp.eq.s32.totalorder %s22, 1
      %p129 = por %p127, %p128
      %p130 = scmp.ne.s32.totalorder %s119, %s120
      %p131 = scmp.eq.s32.totalorder %s22, 0
      %p132 = por %p130, %p131
      %p133 = scmp.ne.s32.totalorder %s119, %s120
      %p134 = scmp.eq.s32.totalorder %s23, 1
      %p135 = por %p133, %p134
      %p137 = scmp.ne.s32.totalorder %s120, %s136
      %p138 = scmp.eq.s32.totalorder %s23, 0
      %p139 = por %p137, %p138
      %p140 = scmp.le.s32.totalorder 1, %s17
      %p141 = scmp.lt.s32.totalorder %s17, 3
      %p142 = pnand %p140, %p141
      %p143 = pneg %p142
      // Predicated region
      $region9: #{tpu_custom_call.1} parent=5 // pred_check
        _
      $region10: #{tpu_custom_call.1} parent=5 // pred_check_branch
        %145 = sbr.rel (%p142) target = $region12
      $region11: #{tpu_custom_call.1} parent=5 // pred_region
        %s146 = ssub.s32 %s17, 1
        // Predicated region
        $region13: #{tpu_custom_call.1} parent=11 // pred_check
          %p147 = pneg %p64
        $region14: #{tpu_custom_call.1} parent=11 // pred_check_branch
          %149 = sbr.rel (%p147) target = $region16
        $region15: #{tpu_custom_call.1} parent=11 // pred_region
          %s151 = ssub.s32 32768, 32768
          %152 = vsyncadd [#allocation7], %s151
          %s153 = sshll.u32 [#allocation6], 4
          %s154 = int_to_ptr.vmem [resolvable:$true] %s153
          %159 = dma.hbm_to_vmem [thread:$0]  %s1, 32768, %s154, [#allocation7], 1024, 1024, 64
        $region16: #{tpu_custom_call.1} parent=11 // pred_fallthru
          _
        // Predicated region
        $region17: #{tpu_custom_call.1} parent=11 // pred_check
          %p160 = pneg %p85
        $region18: #{tpu_custom_call.1} parent=11 // pred_check_branch
          %162 = sbr.rel (%p160) target = $region20
        $region19: #{tpu_custom_call.1} parent=11 // pred_region
          _
        $region20: #{tpu_custom_call.1} parent=11 // pred_fallthru
          _
        // Predicated region
        $region21: #{tpu_custom_call.1} parent=11 // pred_check
          %p163 = pneg %p106
        $region22: #{tpu_custom_call.1} parent=11 // pred_check_branch
          %165 = sbr.rel (%p163) target = $region24
        $region23: #{tpu_custom_call.1} parent=11 // pred_region
          _
        $region24: #{tpu_custom_call.1} parent=11 // pred_fallthru
          _
      $region12: #{tpu_custom_call.1} parent=5 // pred_fallthru
        _
      %p166 = scmp.lt.s32.totalorder %s17, 2
      // Predicated region
      $region25: #{tpu_custom_call.1} parent=5 // pred_check
        %p167 = pneg %p166
      $region26: #{tpu_custom_call.1} parent=5 // pred_check_branch
        %169 = sbr.rel (%p167) target = $region28
      $region27: #{tpu_custom_call.1} parent=5 // pred_region
        // Predicated region
        $region29: #{tpu_custom_call.1} parent=27 // pred_check
          %p170 = pneg %p37
        $region30: #{tpu_custom_call.1} parent=27 // pred_check_branch
          %172 = sbr.rel (%p170) target = $region32
        $region31: #{tpu_custom_call.1} parent=27 // pred_region
          %s173 = sand.u32 %s27, 1
          %s174 = scalar_lea.sflag [#allocation4], %s173
          %s175 = sand.u32 %s27, 1
          %s176 = smul.addr %s175, 16
          %s177 = scalar_lea.vmem [#allocation3], %s176
          %s179 = ssub.s32 256, 256
          %180 = vsyncadd %s174, %s179
          %s181 = smul.addr %s17, 2
          %s182 = smul.addr %s181, 128
          %s183 = scalar_lea.hbm %s0, %s182
          %s185 = sshll.u32 %s177, 4
          %s186 = int_to_ptr.vmem [resolvable:$true] %s185
          %188 = dma.hbm_to_vmem [thread:$0]  %s183, 256, %s186, %s174
        $region32: #{tpu_custom_call.1} parent=27 // pred_fallthru
          _
      $region28: #{tpu_custom_call.1} parent=5 // pred_fallthru
        _
      %p189 = scmp.le.s32.totalorder 1, %s17
      %p190 = scmp.lt.s32.totalorder %s17, 3
      %p191 = pnand %p189, %p190
      %p192 = pneg %p191
      // Predicated region
      $region33: #{tpu_custom_call.1} parent=5 // pred_check
        _
      $region34: #{tpu_custom_call.1} parent=5 // pred_check_branch
        %194 = sbr.rel (%p191) target = $region36
      $region35: #{tpu_custom_call.1} parent=5 // pred_region
        %s195 = ssub.s32 %s17, 1
        %s196 = sand.u32 %s30, 1
        %s197 = scalar_lea.sflag [#allocation4], %s196
        %s198 = sand.u32 %s30, 1
        %s199 = smul.addr %s198, 16
        %s200 = scalar_lea.vmem [#allocation3], %s199
        // Predicated region
        $region37: #{tpu_custom_call.1} parent=35 // pred_check
          %p201 = pneg %p43
        $region38: #{tpu_custom_call.1} parent=35 // pred_check_branch
          %203 = sbr.rel (%p201) target = $region40
        $region39: #{tpu_custom_call.1} parent=35 // pred_region
          %204 = dma.done %s197, 256
        $region40: #{tpu_custom_call.1} parent=35 // pred_fallthru
          _
        // Predicated region
        $region41: #{tpu_custom_call.1} parent=35 // pred_check
          %p205 = pneg %p64
        $region42: #{tpu_custom_call.1} parent=35 // pred_check_branch
          %207 = sbr.rel (%p205) target = $region44
        $region43: #{tpu_custom_call.1} parent=35 // pred_region
          %208 = dma.done [#allocation7], 32768
        $region44: #{tpu_custom_call.1} parent=35 // pred_fallthru
          _
        %s209 = sand.u32 %s30, 1
        %s210 = scalar_lea.sflag [#allocation4], %s209
        %s211 = sand.u32 %s30, 1
        %s212 = smul.addr %s211, 16
        %s213 = scalar_lea.vmem [#allocation3], %s212
        %p214 = pneg %p43
        %p215 = pneg %p40
        %p216 = pneg %p64
        %p217 = pneg %p61
        %p218 = pneg %p85
        %p219 = pneg %p82
        %p220 = pneg %p106
        %p221 = pneg %p103
        %p222 = pneg %p132
        %p223 = pneg %p129
        %s224 = sand.u32 %s119, 1
        %s225 = scalar_lea.sflag [#allocation5], %s224
        %s226 = sand.u32 %s119, 1
        %s227 = smul.addr %s226, 64
        %s228 = scalar_lea.vmem [#allocation8], %s227
        %v229 = vld [vmem:[#allocation6] sm:$0xff]
        %v230 = vld [vmem:[#allocation6 + $0x8] sm:$0xff]
        %v231 = vld [vmem:[#allocation6 + $0x10] sm:$0xff]
        %v232 = vld [vmem:[#allocation6 + $0x18] sm:$0xff]
        %v233 = vld [vmem:[#allocation6 + $0x20] sm:$0xff]
        %v234 = vld [vmem:[#allocation6 + $0x28] sm:$0xff]
        %v235 = vld [vmem:[#allocation6 + $0x30] sm:$0xff]
        %v236 = vld [vmem:[#allocation6 + $0x38] sm:$0xff]
        %v237 = vld [vmem:[#allocation6 + $0x40] sm:$0xff]
        %v238 = vld [vmem:[#allocation6 + $0x48] sm:$0xff]
        %v239 = vld [vmem:[#allocation6 + $0x50] sm:$0xff]
        %v240 = vld [vmem:[#allocation6 + $0x58] sm:$0xff]
        %v241 = vld [vmem:[#allocation6 + $0x60] sm:$0xff]
        %v242 = vld [vmem:[#allocation6 + $0x68] sm:$0xff]
        %v243 = vld [vmem:[#allocation6 + $0x70] sm:$0xff]
        %v244 = vld [vmem:[#allocation6 + $0x78] sm:$0xff]
        %v245 = vld [vmem:[#allocation6 + $0x80] sm:$0xff]
        %v246 = vld [vmem:[#allocation6 + $0x88] sm:$0xff]
        %v247 = vld [vmem:[#allocation6 + $0x90] sm:$0xff]
        %v248 = vld [vmem:[#allocation6 + $0x98] sm:$0xff]
        %v249 = vld [vmem:[#allocation6 + $0xa0] sm:$0xff]
        %v250 = vld [vmem:[#allocation6 + $0xa8] sm:$0xff]
        %v251 = vld [vmem:[#allocation6 + $0xb0] sm:$0xff]
        %v252 = vld [vmem:[#allocation6 + $0xb8] sm:$0xff]
        %v253 = vld [vmem:[#allocation6 + $0xc0] sm:$0xff]
        %v254 = vld [vmem:[#allocation6 + $0xc8] sm:$0xff]
        %v255 = vld [vmem:[#allocation6 + $0xd0] sm:$0xff]
        %v256 = vld [vmem:[#allocation6 + $0xd8] sm:$0xff]
        %v257 = vld [vmem:[#allocation6 + $0xe0] sm:$0xff]
        %v258 = vld [vmem:[#allocation6 + $0xe8] sm:$0xff]
        %v259 = vld [vmem:[#allocation6 + $0xf0] sm:$0xff]
        %v260 = vld [vmem:[#allocation6 + $0xf8] sm:$0xff]
        %v261 = vld [vmem:[#allocation6 + $0x100] sm:$0xff]
        %v262 = vld [vmem:[#allocation6 + $0x108] sm:$0xff]
        %v263 = vld [vmem:[#allocation6 + $0x110] sm:$0xff]
        %v264 = vld [vmem:[#allocation6 + $0x118] sm:$0xff]
        %v265 = vld [vmem:[#allocation6 + $0x120] sm:$0xff]
        %v266 = vld [vmem:[#allocation6 + $0x128] sm:$0xff]
        %v267 = vld [vmem:[#allocation6 + $0x130] sm:$0xff]
        %v268 = vld [vmem:[#allocation6 + $0x138] sm:$0xff]
        %v269 = vld [vmem:[#allocation6 + $0x140] sm:$0xff]
        %v270 = vld [vmem:[#allocation6 + $0x148] sm:$0xff]
        %v271 = vld [vmem:[#allocation6 + $0x150] sm:$0xff]
        %v272 = vld [vmem:[#allocation6 + $0x158] sm:$0xff]
        %v273 = vld [vmem:[#allocation6 + $0x160] sm:$0xff]
        %v274 = vld [vmem:[#allocation6 + $0x168] sm:$0xff]
        %v275 = vld [vmem:[#allocation6 + $0x170] sm:$0xff]
        %v276 = vld [vmem:[#allocation6 + $0x178] sm:$0xff]
        %v277 = vld [vmem:[#allocation6 + $0x180] sm:$0xff]
        %v278 = vld [vmem:[#allocation6 + $0x188] sm:$0xff]
        %v279 = vld [vmem:[#allocation6 + $0x190] sm:$0xff]
        %v280 = vld [vmem:[#allocation6 + $0x198] sm:$0xff]
        %v281 = vld [vmem:[#allocation6 + $0x1a0] sm:$0xff]
        %v282 = vld [vmem:[#allocation6 + $0x1a8] sm:$0xff]
        %v283 = vld [vmem:[#allocation6 + $0x1b0] sm:$0xff]
        %v284 = vld [vmem:[#allocation6 + $0x1b8] sm:$0xff]
        %v285 = vld [vmem:[#allocation6 + $0x1c0] sm:$0xff]
        %v286 = vld [vmem:[#allocation6 + $0x1c8] sm:$0xff]
        %v287 = vld [vmem:[#allocation6 + $0x1d0] sm:$0xff]
        %v288 = vld [vmem:[#allocation6 + $0x1d8] sm:$0xff]
        %v289 = vld [vmem:[#allocation6 + $0x1e0] sm:$0xff]
        %v290 = vld [vmem:[#allocation6 + $0x1e8] sm:$0xff]
        %v291 = vld [vmem:[#allocation6 + $0x1f0] sm:$0xff]
        %v292 = vld [vmem:[#allocation6 + $0x1f8] sm:$0xff]
        %v293 = vld [vmem:[#allocation6 + $0x200] sm:$0xff]
        %v294 = vld [vmem:[#allocation6 + $0x208] sm:$0xff]
        %v295 = vld [vmem:[#allocation6 + $0x210] sm:$0xff]
        %v296 = vld [vmem:[#allocation6 + $0x218] sm:$0xff]
        %v297 = vld [vmem:[#allocation6 + $0x220] sm:$0xff]
        %v298 = vld [vmem:[#allocation6 + $0x228] sm:$0xff]
        %v299 = vld [vmem:[#allocation6 + $0x230] sm:$0xff]
        %v300 = vld [vmem:[#allocation6 + $0x238] sm:$0xff]
        %v301 = vld [vmem:[#allocation6 + $0x240] sm:$0xff]
        %v302 = vld [vmem:[#allocation6 + $0x248] sm:$0xff]
        %v303 = vld [vmem:[#allocation6 + $0x250] sm:$0xff]
        %v304 = vld [vmem:[#allocation6 + $0x258] sm:$0xff]
        %v305 = vld [vmem:[#allocation6 + $0x260] sm:$0xff]
        %v306 = vld [vmem:[#allocation6 + $0x268] sm:$0xff]
        %v307 = vld [vmem:[#allocation6 + $0x270] sm:$0xff]
        %v308 = vld [vmem:[#allocation6 + $0x278] sm:$0xff]
        %v309 = vld [vmem:[#allocation6 + $0x280] sm:$0xff]
        %v310 = vld [vmem:[#allocation6 + $0x288] sm:$0xff]
        %v311 = vld [vmem:[#allocation6 + $0x290] sm:$0xff]
        %v312 = vld [vmem:[#allocation6 + $0x298] sm:$0xff]
        %v313 = vld [vmem:[#allocation6 + $0x2a0] sm:$0xff]
        %v314 = vld [vmem:[#allocation6 + $0x2a8] sm:$0xff]
        %v315 = vld [vmem:[#allocation6 + $0x2b0] sm:$0xff]
        %v316 = vld [vmem:[#allocation6 + $0x2b8] sm:$0xff]
        %v317 = vld [vmem:[#allocation6 + $0x2c0] sm:$0xff]
        %v318 = vld [vmem:[#allocation6 + $0x2c8] sm:$0xff]
        %v319 = vld [vmem:[#allocation6 + $0x2d0] sm:$0xff]
        %v320 = vld [vmem:[#allocation6 + $0x2d8] sm:$0xff]
        %v321 = vld [vmem:[#allocation6 + $0x2e0] sm:$0xff]
        %v322 = vld [vmem:[#allocation6 + $0x2e8] sm:$0xff]
        %v323 = vld [vmem:[#allocation6 + $0x2f0] sm:$0xff]
        %v324 = vld [vmem:[#allocation6 + $0x2f8] sm:$0xff]
        %v325 = vld [vmem:[#allocation6 + $0x300] sm:$0xff]
        %v326 = vld [vmem:[#allocation6 + $0x308] sm:$0xff]
        %v327 = vld [vmem:[#allocation6 + $0x310] sm:$0xff]
        %v328 = vld [vmem:[#allocation6 + $0x318] sm:$0xff]
        %v329 = vld [vmem:[#allocation6 + $0x320] sm:$0xff]
        %v330 = vld [vmem:[#allocation6 + $0x328] sm:$0xff]
        %v331 = vld [vmem:[#allocation6 + $0x330] sm:$0xff]
        %v332 = vld [vmem:[#allocation6 + $0x338] sm:$0xff]
        %v333 = vld [vmem:[#allocation6 + $0x340] sm:$0xff]
        %v334 = vld [vmem:[#allocation6 + $0x348] sm:$0xff]
        %v335 = vld [vmem:[#allocation6 + $0x350] sm:$0xff]
        %v336 = vld [vmem:[#allocation6 + $0x358] sm:$0xff]
        %v337 = vld [vmem:[#allocation6 + $0x360] sm:$0xff]
        %v338 = vld [vmem:[#allocation6 + $0x368] sm:$0xff]
        %v339 = vld [vmem:[#allocation6 + $0x370] sm:$0xff]
        %v340 = vld [vmem:[#allocation6 + $0x378] sm:$0xff]
        %v341 = vld [vmem:[#allocation6 + $0x380] sm:$0xff]
        %v342 = vld [vmem:[#allocation6 + $0x388] sm:$0xff]
        %v343 = vld [vmem:[#allocation6 + $0x390] sm:$0xff]
        %v344 = vld [vmem:[#allocation6 + $0x398] sm:$0xff]
        %v345 = vld [vmem:[#allocation6 + $0x3a0] sm:$0xff]
        %v346 = vld [vmem:[#allocation6 + $0x3a8] sm:$0xff]
        %v347 = vld [vmem:[#allocation6 + $0x3b0] sm:$0xff]
        %v348 = vld [vmem:[#allocation6 + $0x3b8] sm:$0xff]
        %v349 = vld [vmem:[#allocation6 + $0x3c0] sm:$0xff]
        %v350 = vld [vmem:[#allocation6 + $0x3c8] sm:$0xff]
        %v351 = vld [vmem:[#allocation6 + $0x3d0] sm:$0xff]
        %v352 = vld [vmem:[#allocation6 + $0x3d8] sm:$0xff]
        %v353 = vld [vmem:[#allocation6 + $0x3e0] sm:$0xff]
        %v354 = vld [vmem:[#allocation6 + $0x3e8] sm:$0xff]
        %v355 = vld [vmem:[#allocation6 + $0x3f0] sm:$0xff]
        %v356 = vld [vmem:[#allocation6 + $0x3f8] sm:$0xff]
        %v357 = vld [vmem:[#allocation6 + $0x400] sm:$0xff]
        %v358 = vld [vmem:[#allocation6 + $0x408] sm:$0xff]
        %v359 = vld [vmem:[#allocation6 + $0x410] sm:$0xff]
        %v360 = vld [vmem:[#allocation6 + $0x418] sm:$0xff]
        %v361 = vld [vmem:[#allocation6 + $0x420] sm:$0xff]
        %v362 = vld [vmem:[#allocation6 + $0x428] sm:$0xff]
        %v363 = vld [vmem:[#allocation6 + $0x430] sm:$0xff]
        %v364 = vld [vmem:[#allocation6 + $0x438] sm:$0xff]
        %v365 = vld [vmem:[#allocation6 + $0x440] sm:$0xff]
        %v366 = vld [vmem:[#allocation6 + $0x448] sm:$0xff]
        %v367 = vld [vmem:[#allocation6 + $0x450] sm:$0xff]
        %v368 = vld [vmem:[#allocation6 + $0x458] sm:$0xff]
        %v369 = vld [vmem:[#allocation6 + $0x460] sm:$0xff]
        %v370 = vld [vmem:[#allocation6 + $0x468] sm:$0xff]
        %v371 = vld [vmem:[#allocation6 + $0x470] sm:$0xff]
        %v372 = vld [vmem:[#allocation6 + $0x478] sm:$0xff]
        %v373 = vld [vmem:[#allocation6 + $0x480] sm:$0xff]
        %v374 = vld [vmem:[#allocation6 + $0x488] sm:$0xff]
        %v375 = vld [vmem:[#allocation6 + $0x490] sm:$0xff]
        %v376 = vld [vmem:[#allocation6 + $0x498] sm:$0xff]
        %v377 = vld [vmem:[#allocation6 + $0x4a0] sm:$0xff]
        %v378 = vld [vmem:[#allocation6 + $0x4a8] sm:$0xff]
        %v379 = vld [vmem:[#allocation6 + $0x4b0] sm:$0xff]
        %v380 = vld [vmem:[#allocation6 + $0x4b8] sm:$0xff]
        %v381 = vld [vmem:[#allocation6 + $0x4c0] sm:$0xff]
        %v382 = vld [vmem:[#allocation6 + $0x4c8] sm:$0xff]
        %v383 = vld [vmem:[#allocation6 + $0x4d0] sm:$0xff]
        %v384 = vld [vmem:[#allocation6 + $0x4d8] sm:$0xff]
        %v385 = vld [vmem:[#allocation6 + $0x4e0] sm:$0xff]
        %v386 = vld [vmem:[#allocation6 + $0x4e8] sm:$0xff]
        %v387 = vld [vmem:[#allocation6 + $0x4f0] sm:$0xff]
        %v388 = vld [vmem:[#allocation6 + $0x4f8] sm:$0xff]
        %v389 = vld [vmem:[#allocation6 + $0x500] sm:$0xff]
        %v390 = vld [vmem:[#allocation6 + $0x508] sm:$0xff]
        %v391 = vld [vmem:[#allocation6 + $0x510] sm:$0xff]
        %v392 = vld [vmem:[#allocation6 + $0x518] sm:$0xff]
        %v393 = vld [vmem:[#allocation6 + $0x520] sm:$0xff]
        %v394 = vld [vmem:[#allocation6 + $0x528] sm:$0xff]
        %v395 = vld [vmem:[#allocation6 + $0x530] sm:$0xff]
        %v396 = vld [vmem:[#allocation6 + $0x538] sm:$0xff]
        %v397 = vld [vmem:[#allocation6 + $0x540] sm:$0xff]
        %v398 = vld [vmem:[#allocation6 + $0x548] sm:$0xff]
        %v399 = vld [vmem:[#allocation6 + $0x550] sm:$0xff]
        %v400 = vld [vmem:[#allocation6 + $0x558] sm:$0xff]
        %v401 = vld [vmem:[#allocation6 + $0x560] sm:$0xff]
        %v402 = vld [vmem:[#allocation6 + $0x568] sm:$0xff]
        %v403 = vld [vmem:[#allocation6 + $0x570] sm:$0xff]
        %v404 = vld [vmem:[#allocation6 + $0x578] sm:$0xff]
        %v405 = vld [vmem:[#allocation6 + $0x580] sm:$0xff]
        %v406 = vld [vmem:[#allocation6 + $0x588] sm:$0xff]
        %v407 = vld [vmem:[#allocation6 + $0x590] sm:$0xff]
        %v408 = vld [vmem:[#allocation6 + $0x598] sm:$0xff]
        %v409 = vld [vmem:[#allocation6 + $0x5a0] sm:$0xff]
        %v410 = vld [vmem:[#allocation6 + $0x5a8] sm:$0xff]
        %v411 = vld [vmem:[#allocation6 + $0x5b0] sm:$0xff]
        %v412 = vld [vmem:[#allocation6 + $0x5b8] sm:$0xff]
        %v413 = vld [vmem:[#allocation6 + $0x5c0] sm:$0xff]
        %v414 = vld [vmem:[#allocation6 + $0x5c8] sm:$0xff]
        %v415 = vld [vmem:[#allocation6 + $0x5d0] sm:$0xff]
        %v416 = vld [vmem:[#allocation6 + $0x5d8] sm:$0xff]
        %v417 = vld [vmem:[#allocation6 + $0x5e0] sm:$0xff]
        %v418 = vld [vmem:[#allocation6 + $0x5e8] sm:$0xff]
        %v419 = vld [vmem:[#allocation6 + $0x5f0] sm:$0xff]
        %v420 = vld [vmem:[#allocation6 + $0x5f8] sm:$0xff]
        %v421 = vld [vmem:[#allocation6 + $0x600] sm:$0xff]
        %v422 = vld [vmem:[#allocation6 + $0x608] sm:$0xff]
        %v423 = vld [vmem:[#allocation6 + $0x610] sm:$0xff]
        %v424 = vld [vmem:[#allocation6 + $0x618] sm:$0xff]
        %v425 = vld [vmem:[#allocation6 + $0x620] sm:$0xff]
        %v426 = vld [vmem:[#allocation6 + $0x628] sm:$0xff]
        %v427 = vld [vmem:[#allocation6 + $0x630] sm:$0xff]
        %v428 = vld [vmem:[#allocation6 + $0x638] sm:$0xff]
        %v429 = vld [vmem:[#allocation6 + $0x640] sm:$0xff]
        %v430 = vld [vmem:[#allocation6 + $0x648] sm:$0xff]
        %v431 = vld [vmem:[#allocation6 + $0x650] sm:$0xff]
        %v432 = vld [vmem:[#allocation6 + $0x658] sm:$0xff]
        %v433 = vld [vmem:[#allocation6 + $0x660] sm:$0xff]
        %v434 = vld [vmem:[#allocation6 + $0x668] sm:$0xff]
        %v435 = vld [vmem:[#allocation6 + $0x670] sm:$0xff]
        %v436 = vld [vmem:[#allocation6 + $0x678] sm:$0xff]
        %v437 = vld [vmem:[#allocation6 + $0x680] sm:$0xff]
        %v438 = vld [vmem:[#allocation6 + $0x688] sm:$0xff]
        %v439 = vld [vmem:[#allocation6 + $0x690] sm:$0xff]
        %v440 = vld [vmem:[#allocation6 + $0x698] sm:$0xff]
        %v441 = vld [vmem:[#allocation6 + $0x6a0] sm:$0xff]
        %v442 = vld [vmem:[#allocation6 + $0x6a8] sm:$0xff]
        %v443 = vld [vmem:[#allocation6 + $0x6b0] sm:$0xff]
        %v444 = vld [vmem:[#allocation6 + $0x6b8] sm:$0xff]
        %v445 = vld [vmem:[#allocation6 + $0x6c0] sm:$0xff]
        %v446 = vld [vmem:[#allocation6 + $0x6c8] sm:$0xff]
        %v447 = vld [vmem:[#allocation6 + $0x6d0] sm:$0xff]
        %v448 = vld [vmem:[#allocation6 + $0x6d8] sm:$0xff]
        %v449 = vld [vmem:[#allocation6 + $0x6e0] sm:$0xff]
        %v450 = vld [vmem:[#allocation6 + $0x6e8] sm:$0xff]
        %v451 = vld [vmem:[#allocation6 + $0x6f0] sm:$0xff]
        %v452 = vld [vmem:[#allocation6 + $0x6f8] sm:$0xff]
        %v453 = vld [vmem:[#allocation6 + $0x700] sm:$0xff]
        %v454 = vld [vmem:[#allocation6 + $0x708] sm:$0xff]
        %v455 = vld [vmem:[#allocation6 + $0x710] sm:$0xff]
        %v456 = vld [vmem:[#allocation6 + $0x718] sm:$0xff]
        %v457 = vld [vmem:[#allocation6 + $0x720] sm:$0xff]
        %v458 = vld [vmem:[#allocation6 + $0x728] sm:$0xff]
        %v459 = vld [vmem:[#allocation6 + $0x730] sm:$0xff]
        %v460 = vld [vmem:[#allocation6 + $0x738] sm:$0xff]
        %v461 = vld [vmem:[#allocation6 + $0x740] sm:$0xff]
        %v462 = vld [vmem:[#allocation6 + $0x748] sm:$0xff]
        %v463 = vld [vmem:[#allocation6 + $0x750] sm:$0xff]
        %v464 = vld [vmem:[#allocation6 + $0x758] sm:$0xff]
        %v465 = vld [vmem:[#allocation6 + $0x760] sm:$0xff]
        %v466 = vld [vmem:[#allocation6 + $0x768] sm:$0xff]
        %v467 = vld [vmem:[#allocation6 + $0x770] sm:$0xff]
        %v468 = vld [vmem:[#allocation6 + $0x778] sm:$0xff]
        %v469 = vld [vmem:[#allocation6 + $0x780] sm:$0xff]
        %v470 = vld [vmem:[#allocation6 + $0x788] sm:$0xff]
        %v471 = vld [vmem:[#allocation6 + $0x790] sm:$0xff]
        %v472 = vld [vmem:[#allocation6 + $0x798] sm:$0xff]
        %v473 = vld [vmem:[#allocation6 + $0x7a0] sm:$0xff]
        %v474 = vld [vmem:[#allocation6 + $0x7a8] sm:$0xff]
        %v475 = vld [vmem:[#allocation6 + $0x7b0] sm:$0xff]
        %v476 = vld [vmem:[#allocation6 + $0x7b8] sm:$0xff]
        %v477 = vld [vmem:[#allocation6 + $0x7c0] sm:$0xff]
        %v478 = vld [vmem:[#allocation6 + $0x7c8] sm:$0xff]
        %v479 = vld [vmem:[#allocation6 + $0x7d0] sm:$0xff]
        %v480 = vld [vmem:[#allocation6 + $0x7d8] sm:$0xff]
        %v481 = vld [vmem:[#allocation6 + $0x7e0] sm:$0xff]
        %v482 = vld [vmem:[#allocation6 + $0x7e8] sm:$0xff]
        %v483 = vld [vmem:[#allocation6 + $0x7f0] sm:$0xff]
        %v484 = vld [vmem:[#allocation6 + $0x7f8] sm:$0xff]
        %v485 = vld [vmem:[%s2] sm:$0xff]
        %v486 = vld [vmem:[%s3] sm:$0xff]
        %v487 = vld [vmem:[%s200] sm:$0xff]
        %v488 = vld [vmem:[%s200 + $0x8] sm:$0xff]
        %489 = vmatprep.subr.mxu0 %v230
        %490 = vmatpush1.msra.mxu0 %v229
        %491 = vmatprep.subr.mxu0 %v238
        %492 = vmatpush1.msra.mxu0 %v237
        %493 = vmatprep.subr.mxu0 %v246
        %494 = vmatpush1.msra.mxu0 %v245
        %495 = vmatprep.subr.mxu0 %v254
        %496 = vmatpush1.msra.mxu0 %v253
        %497 = vmatprep.subr.mxu0 %v262
        %498 = vmatpush1.msra.mxu0 %v261
        %499 = vmatprep.subr.mxu0 %v270
        %500 = vmatpush1.msra.mxu0 %v269
        %501 = vmatprep.subr.mxu0 %v278
        %502 = vmatpush1.msra.mxu0 %v277
        %503 = vmatprep.subr.mxu0 %v286
        %504 = vmatpush1.msra.mxu0 %v285
        %505 = vmatprep.subr.mxu0 %v294
        %506 = vmatpush1.msra.mxu0 %v293
        %507 = vmatprep.subr.mxu0 %v302
        %508 = vmatpush1.msra.mxu0 %v301
        %509 = vmatprep.subr.mxu0 %v310
        %510 = vmatpush1.msra.mxu0 %v309
        %511 = vmatprep.subr.mxu0 %v318
        %512 = vmatpush1.msra.mxu0 %v317
        %513 = vmatprep.subr.mxu0 %v326
        %514 = vmatpush1.msra.mxu0 %v325
        %515 = vmatprep.subr.mxu0 %v334
        %516 = vmatpush1.msra.mxu0 %v333
        %517 = vmatprep.subr.mxu0 %v342
        %518 = vmatpush1.msra.mxu0 %v341
        %519 = vmatprep.subr.mxu0 %v350
        %520 = vmatpush1.msra.mxu0 %v349
        %521 = vmatprep.subr.mxu0 %v358
        %522 = vmatpush1.msra.mxu0 %v357
        %523 = vmatprep.subr.mxu0 %v366
        %524 = vmatpush1.msra.mxu0 %v365
        %525 = vmatprep.subr.mxu0 %v374
        %526 = vmatpush1.msra.mxu0 %v373
        %527 = vmatprep.subr.mxu0 %v382
        %528 = vmatpush1.msra.mxu0 %v381
        %529 = vmatprep.subr.mxu0 %v390
        %530 = vmatpush1.msra.mxu0 %v389
        %531 = vmatprep.subr.mxu0 %v398
        %532 = vmatpush1.msra.mxu0 %v397
        %533 = vmatprep.subr.mxu0 %v406
        %534 = vmatpush1.msra.mxu0 %v405
        %535 = vmatprep.subr.mxu0 %v414
        %536 = vmatpush1.msra.mxu0 %v413
        %537 = vmatprep.subr.mxu0 %v422
        %538 = vmatpush1.msra.mxu0 %v421
        %539 = vmatprep.subr.mxu0 %v430
        %540 = vmatpush1.msra.mxu0 %v429
        %541 = vmatprep.subr.mxu0 %v438
        %542 = vmatpush1.msra.mxu0 %v437
        %543 = vmatprep.subr.mxu0 %v446
        %544 = vmatpush1.msra.mxu0 %v445
        %545 = vmatprep.subr.mxu0 %v454
        %546 = vmatpush1.msra.mxu0 %v453
        %547 = vmatprep.subr.mxu0 %v462
        %548 = vmatpush1.msra.mxu0 %v461
        %549 = vmatprep.subr.mxu0 %v470
        %550 = vmatpush1.msra.mxu0 %v469
        %551 = vmatprep.subr.mxu0 %v478
        %552 = vmatpush1.msra.mxu0 %v477
        %553 = vmatprep.mubr.f32.mxu0 %v488
        %554 = vmatmul.mubr.f32.gmra.mrb[0].mxu0 %v487
        %v555 = vpop.f32.mrb[0].mxu0
        %v556 = vadd.f32 0.0, %v555
        %v557 = vpop.f32.mrb[0].mxu0
        %v558 = vadd.f32 0.0, %v557
        %559 = vdwg.mxu0
        %560 = vmatprep.subr.mxu0 %v232
        %561 = vmatpush1.msra.mxu0 %v231
        %562 = vmatprep.subr.mxu0 %v240
        %563 = vmatpush1.msra.mxu0 %v239
        %564 = vmatprep.subr.mxu0 %v248
        %565 = vmatpush1.msra.mxu0 %v247
        %566 = vmatprep.subr.mxu0 %v256
        %567 = vmatpush1.msra.mxu0 %v255
        %568 = vmatprep.subr.mxu0 %v264
        %569 = vmatpush1.msra.mxu0 %v263
        %570 = vmatprep.subr.mxu0 %v272
        %571 = vmatpush1.msra.mxu0 %v271
        %572 = vmatprep.subr.mxu0 %v280
        %573 = vmatpush1.msra.mxu0 %v279
        %574 = vmatprep.subr.mxu0 %v288
        %575 = vmatpush1.msra.mxu0 %v287
        %576 = vmatprep.subr.mxu0 %v296
        %577 = vmatpush1.msra.mxu0 %v295
        %578 = vmatprep.subr.mxu0 %v304
        %579 = vmatpush1.msra.mxu0 %v303
        %580 = vmatprep.subr.mxu0 %v312
        %581 = vmatpush1.msra.mxu0 %v311
        %582 = vmatprep.subr.mxu0 %v320
        %583 = vmatpush1.msra.mxu0 %v319
        %584 = vmatprep.subr.mxu0 %v328
        %585 = vmatpush1.msra.mxu0 %v327
        %586 = vmatprep.subr.mxu0 %v336
        %587 = vmatpush1.msra.mxu0 %v335
        %588 = vmatprep.subr.mxu0 %v344
        %589 = vmatpush1.msra.mxu0 %v343
        %590 = vmatprep.subr.mxu0 %v352
        %591 = vmatpush1.msra.mxu0 %v351
        %592 = vmatprep.subr.mxu0 %v360
        %593 = vmatpush1.msra.mxu0 %v359
        %594 = vmatprep.subr.mxu0 %v368
        %595 = vmatpush1.msra.mxu0 %v367
        %596 = vmatprep.subr.mxu0 %v376
        %597 = vmatpush1.msra.mxu0 %v375
        %598 = vmatprep.subr.mxu0 %v384
        %599 = vmatpush1.msra.mxu0 %v383
        %600 = vmatprep.subr.mxu0 %v392
        %601 = vmatpush1.msra.mxu0 %v391
        %602 = vmatprep.subr.mxu0 %v400
        %603 = vmatpush1.msra.mxu0 %v399
        %604 = vmatprep.subr.mxu0 %v408
        %605 = vmatpush1.msra.mxu0 %v407
        %606 = vmatprep.subr.mxu0 %v416
        %607 = vmatpush1.msra.mxu0 %v415
        %608 = vmatprep.subr.mxu0 %v424
        %609 = vmatpush1.msra.mxu0 %v423
        %610 = vmatprep.subr.mxu0 %v432
        %611 = vmatpush1.msra.mxu0 %v431
        %612 = vmatprep.subr.mxu0 %v440
        %613 = vmatpush1.msra.mxu0 %v439
        %614 = vmatprep.subr.mxu0 %v448
        %615 = vmatpush1.msra.mxu0 %v447
        %616 = vmatprep.subr.mxu0 %v456
        %617 = vmatpush1.msra.mxu0 %v455
        %618 = vmatprep.subr.mxu0 %v464
        %619 = vmatpush1.msra.mxu0 %v463
        %620 = vmatprep.subr.mxu0 %v472
        %621 = vmatpush1.msra.mxu0 %v471
        %622 = vmatprep.subr.mxu0 %v480
        %623 = vmatpush1.msra.mxu0 %v479
        %624 = vmatprep.mubr.f32.mxu0 %v488
        %625 = vmatmul.mubr.f32.gmra.mrb[0].mxu0 %v487
        %v626 = vpop.f32.mrb[0].mxu0
        %v627 = vadd.f32 0.0, %v626
        %v628 = vpop.f32.mrb[0].mxu0
        %v629 = vadd.f32 0.0, %v628
        %630 = vdwg.mxu0
        %631 = vmatprep.subr.mxu0 %v234
        %632 = vmatpush1.msra.mxu0 %v233
        %633 = vmatprep.subr.mxu0 %v242
        %634 = vmatpush1.msra.mxu0 %v241
        %635 = vmatprep.subr.mxu0 %v250
        %636 = vmatpush1.msra.mxu0 %v249
        %637 = vmatprep.subr.mxu0 %v258
        %638 = vmatpush1.msra.mxu0 %v257
        %639 = vmatprep.subr.mxu0 %v266
        %640 = vmatpush1.msra.mxu0 %v265
        %641 = vmatprep.subr.mxu0 %v274
        %642 = vmatpush1.msra.mxu0 %v273
        %643 = vmatprep.subr.mxu0 %v282
        %644 = vmatpush1.msra.mxu0 %v281
        %645 = vmatprep.subr.mxu0 %v290
        %646 = vmatpush1.msra.mxu0 %v289
        %647 = vmatprep.subr.mxu0 %v298
        %648 = vmatpush1.msra.mxu0 %v297
        %649 = vmatprep.subr.mxu0 %v306
        %650 = vmatpush1.msra.mxu0 %v305
        %651 = vmatprep.subr.mxu0 %v314
        %652 = vmatpush1.msra.mxu0 %v313
        %653 = vmatprep.subr.mxu0 %v322
        %654 = vmatpush1.msra.mxu0 %v321
        %655 = vmatprep.subr.mxu0 %v330
        %656 = vmatpush1.msra.mxu0 %v329
        %657 = vmatprep.subr.mxu0 %v338
        %658 = vmatpush1.msra.mxu0 %v337
        %659 = vmatprep.subr.mxu0 %v346
        %660 = vmatpush1.msra.mxu0 %v345
        %661 = vmatprep.subr.mxu0 %v354
        %662 = vmatpush1.msra.mxu0 %v353
        %663 = vmatprep.subr.mxu0 %v362
        %664 = vmatpush1.msra.mxu0 %v361
        %665 = vmatprep.subr.mxu0 %v370
        %666 = vmatpush1.msra.mxu0 %v369
        %667 = vmatprep.subr.mxu0 %v378
        %668 = vmatpush1.msra.mxu0 %v377
        %669 = vmatprep.subr.mxu0 %v386
        %670 = vmatpush1.msra.mxu0 %v385
        %671 = vmatprep.subr.mxu0 %v394
        %672 = vmatpush1.msra.mxu0 %v393
        %673 = vmatprep.subr.mxu0 %v402
        %674 = vmatpush1.msra.mxu0 %v401
        %675 = vmatprep.subr.mxu0 %v410
        %676 = vmatpush1.msra.mxu0 %v409
        %677 = vmatprep.subr.mxu0 %v418
        %678 = vmatpush1.msra.mxu0 %v417
        %679 = vmatprep.subr.mxu0 %v426
        %680 = vmatpush1.msra.mxu0 %v425
        %681 = vmatprep.subr.mxu0 %v434
        %682 = vmatpush1.msra.mxu0 %v433
        %683 = vmatprep.subr.mxu0 %v442
        %684 = vmatpush1.msra.mxu0 %v441
        %685 = vmatprep.subr.mxu0 %v450
        %686 = vmatpush1.msra.mxu0 %v449
        %687 = vmatprep.subr.mxu0 %v458
        %688 = vmatpush1.msra.mxu0 %v457
        %689 = vmatprep.subr.mxu0 %v466
        %690 = vmatpush1.msra.mxu0 %v465
        %691 = vmatprep.subr.mxu0 %v474
        %692 = vmatpush1.msra.mxu0 %v473
        %693 = vmatprep.subr.mxu0 %v482
        %694 = vmatpush1.msra.mxu0 %v481
        %695 = vmatprep.mubr.f32.mxu0 %v488
        %696 = vmatmul.mubr.f32.gmra.mrb[0].mxu0 %v487
        %v697 = vpop.f32.mrb[0].mxu0
        %v698 = vadd.f32 0.0, %v697
        %v699 = vpop.f32.mrb[0].mxu0
        %v700 = vadd.f32 0.0, %v699
        %701 = vdwg.mxu0
        %702 = vmatprep.subr.mxu0 %v236
        %703 = vmatpush1.msra.mxu0 %v235
        %704 = vmatprep.subr.mxu0 %v244
        %705 = vmatpush1.msra.mxu0 %v243
        %706 = vmatprep.subr.mxu0 %v252
        %707 = vmatpush1.msra.mxu0 %v251
        %708 = vmatprep.subr.mxu0 %v260
        %709 = vmatpush1.msra.mxu0 %v259
        %710 = vmatprep.subr.mxu0 %v268
        %711 = vmatpush1.msra.mxu0 %v267
        %712 = vmatprep.subr.mxu0 %v276
        %713 = vmatpush1.msra.mxu0 %v275
        %714 = vmatprep.subr.mxu0 %v284
        %715 = vmatpush1.msra.mxu0 %v283
        %716 = vmatprep.subr.mxu0 %v292
        %717 = vmatpush1.msra.mxu0 %v291
        %718 = vmatprep.subr.mxu0 %v300
        %719 = vmatpush1.msra.mxu0 %v299
        %720 = vmatprep.subr.mxu0 %v308
        %721 = vmatpush1.msra.mxu0 %v307
        %722 = vmatprep.subr.mxu0 %v316
        %723 = vmatpush1.msra.mxu0 %v315
        %724 = vmatprep.subr.mxu0 %v324
        %725 = vmatpush1.msra.mxu0 %v323
        %726 = vmatprep.subr.mxu0 %v332
        %727 = vmatpush1.msra.mxu0 %v331
        %728 = vmatprep.subr.mxu0 %v340
        %729 = vmatpush1.msra.mxu0 %v339
        %730 = vmatprep.subr.mxu0 %v348
        %731 = vmatpush1.msra.mxu0 %v347
        %732 = vmatprep.subr.mxu0 %v356
        %733 = vmatpush1.msra.mxu0 %v355
        %734 = vmatprep.subr.mxu0 %v364
        %735 = vmatpush1.msra.mxu0 %v363
        %736 = vmatprep.subr.mxu0 %v372
        %737 = vmatpush1.msra.mxu0 %v371
        %738 = vmatprep.subr.mxu0 %v380
        %739 = vmatpush1.msra.mxu0 %v379
        %740 = vmatprep.subr.mxu0 %v388
        %741 = vmatpush1.msra.mxu0 %v387
        %742 = vmatprep.subr.mxu0 %v396
        %743 = vmatpush1.msra.mxu0 %v395
        %744 = vmatprep.subr.mxu0 %v404
        %745 = vmatpush1.msra.mxu0 %v403
        %746 = vmatprep.subr.mxu0 %v412
        %747 = vmatpush1.msra.mxu0 %v411
        %748 = vmatprep.subr.mxu0 %v420
        %749 = vmatpush1.msra.mxu0 %v419
        %750 = vmatprep.subr.mxu0 %v428
        %751 = vmatpush1.msra.mxu0 %v427
        %752 = vmatprep.subr.mxu0 %v436
        %753 = vmatpush1.msra.mxu0 %v435
        %754 = vmatprep.subr.mxu0 %v444
        %755 = vmatpush1.msra.mxu0 %v443
        %756 = vmatprep.subr.mxu0 %v452
        %757 = vmatpush1.msra.mxu0 %v451
        %758 = vmatprep.subr.mxu0 %v460
        %759 = vmatpush1.msra.mxu0 %v459
        %760 = vmatprep.subr.mxu0 %v468
        %761 = vmatpush1.msra.mxu0 %v467
        %762 = vmatprep.subr.mxu0 %v476
        %763 = vmatpush1.msra.mxu0 %v475
        %764 = vmatprep.subr.mxu0 %v484
        %765 = vmatpush1.msra.mxu0 %v483
        %766 = vmatprep.mubr.f32.mxu0 %v488
        %767 = vmatmul.mubr.f32.gmra.mrb[0].mxu0 %v487
        %v768 = vpop.f32.mrb[0].mxu0
        %v769 = vadd.f32 0.0, %v768
        %v770 = vpop.f32.mrb[0].mxu0
        %v771 = vadd.f32 0.0, %v770
        %772 = vdwg.mxu0
        %773 = vst [vmem:[#allocation2] sm:$0xff] %v556
        %774 = vst [vmem:[#allocation2 + $0x8] sm:$0xff] %v558
        %775 = vst [vmem:[#allocation2 + $0x10] sm:$0xff] %v627
        %776 = vst [vmem:[#allocation2 + $0x18] sm:$0xff] %v629
        %777 = vst [vmem:[#allocation2 + $0x20] sm:$0xff] %v698
        %778 = vst [vmem:[#allocation2 + $0x28] sm:$0xff] %v700
        %779 = vst [vmem:[#allocation2 + $0x30] sm:$0xff] %v769
        %780 = vst [vmem:[#allocation2 + $0x38] sm:$0xff] %v771
        %781 = vrot.lane.b32.xlu0 %v556, 127
        %v782 = vpop.permute.xlu0 %781
        %783 = vrot.lane.b32.xlu0 %v558, 127
        %v784 = vpop.permute.xlu0 %783
        %785 = vrot.lane.b32.xlu0 %v627, 127
        %v786 = vpop.permute.xlu0 %785
        %787 = vrot.lane.b32.xlu0 %v629, 127
        %v788 = vpop.permute.xlu0 %787
        %789 = vrot.lane.b32.xlu0 %v698, 127
        %v790 = vpop.permute.xlu0 %789
        %791 = vrot.lane.b32.xlu0 %v700, 127
        %v792 = vpop.permute.xlu0 %791
        %793 = vrot.lane.b32.xlu0 %v769, 127
        %v794 = vpop.permute.xlu0 %793
        %795 = vrot.lane.b32.xlu0 %v771, 127
        %v796 = vpop.permute.xlu0 %795
        %v797 = vlaneseq
        %v798 = vand.u32 %v797, 127
        %vm799 = vcmp.lt.s32.totalorder %v798, 127
        %v800 = vsel %vm799, %v794, %v796
        %v801 = vsel %vm799, %v792, %v794
        %v802 = vsel %vm799, %v790, %v792
        %v803 = vsel %vm799, %v788, %v790
        %v804 = vsel %vm799, %v786, %v788
        %v805 = vsel %vm799, %v784, %v786
        %v806 = vsel %vm799, %v782, %v784
        %v807 = vsel %vm799, %v796, %v782
        %808 = vst [vmem:[#allocation2 + $0x40] sm:$0xff] %v806
        %809 = vst [vmem:[#allocation2 + $0x48] sm:$0xff] %v805
        %810 = vst [vmem:[#allocation2 + $0x50] sm:$0xff] %v804
        %811 = vst [vmem:[#allocation2 + $0x58] sm:$0xff] %v803
        %812 = vst [vmem:[#allocation2 + $0x60] sm:$0xff] %v802
        %813 = vst [vmem:[#allocation2 + $0x68] sm:$0xff] %v801
        %814 = vst [vmem:[#allocation2 + $0x70] sm:$0xff] %v800
        %815 = vst [vmem:[#allocation2 + $0x78] sm:$0xff] %v807
        %816 = vrot.lane.b32.xlu0 %v556, 126
        %v817 = vpop.permute.xlu0 %816
        %818 = vrot.lane.b32.xlu0 %v558, 126
        %v819 = vpop.permute.xlu0 %818
        %820 = vrot.lane.b32.xlu0 %v627, 126
        %v821 = vpop.permute.xlu0 %820
        %822 = vrot.lane.b32.xlu0 %v629, 126
        %v823 = vpop.permute.xlu0 %822
        %824 = vrot.lane.b32.xlu0 %v698, 126
        %v825 = vpop.permute.xlu0 %824
        %826 = vrot.lane.b32.xlu0 %v700, 126
        %v827 = vpop.permute.xlu0 %826
        %828 = vrot.lane.b32.xlu0 %v769, 126
        %v829 = vpop.permute.xlu0 %828
        %830 = vrot.lane.b32.xlu0 %v771, 126
        %v831 = vpop.permute.xlu0 %830
        %vm832 = vcmp.lt.s32.totalorder %v798, 126
        %v833 = vsel %vm832, %v829, %v831
        %v834 = vsel %vm832, %v827, %v829
        %v835 = vsel %vm832, %v825, %v827
        %v836 = vsel %vm832, %v823, %v825
        %v837 = vsel %vm832, %v821, %v823
        %v838 = vsel %vm832, %v819, %v821
        %v839 = vsel %vm832, %v817, %v819
        %v840 = vsel %vm832, %v831, %v817
        %841 = vst [vmem:[#allocation2 + $0x80] sm:$0xff] %v839
        %842 = vst [vmem:[#allocation2 + $0x88] sm:$0xff] %v838
        %843 = vst [vmem:[#allocation2 + $0x90] sm:$0xff] %v837
        %844 = vst [vmem:[#allocation2 + $0x98] sm:$0xff] %v836
        %845 = vst [vmem:[#allocation2 + $0xa0] sm:$0xff] %v835
        %846 = vst [vmem:[#allocation2 + $0xa8] sm:$0xff] %v834
        %847 = vst [vmem:[#allocation2 + $0xb0] sm:$0xff] %v833
        %848 = vst [vmem:[#allocation2 + $0xb8] sm:$0xff] %v840
        %849 = vrot.lane.b32.xlu0 %v556, 96
        %v850 = vpop.permute.xlu0 %849
        %851 = vrot.lane.b32.xlu0 %v558, 96
        %v852 = vpop.permute.xlu0 %851
        %853 = vrot.lane.b32.xlu0 %v627, 96
        %v854 = vpop.permute.xlu0 %853
        %855 = vrot.lane.b32.xlu0 %v629, 96
        %v856 = vpop.permute.xlu0 %855
        %857 = vrot.lane.b32.xlu0 %v698, 96
        %v858 = vpop.permute.xlu0 %857
        %859 = vrot.lane.b32.xlu0 %v700, 96
        %v860 = vpop.permute.xlu0 %859
        %861 = vrot.lane.b32.xlu0 %v769, 96
        %v862 = vpop.permute.xlu0 %861
        %863 = vrot.lane.b32.xlu0 %v771, 96
        %v864 = vpop.permute.xlu0 %863
        %vm865 = vcmp.lt.s32.totalorder %v798, 96
        %v866 = vsel %vm865, %v862, %v864
        %v867 = vsel %vm865, %v860, %v862
        %v868 = vsel %vm865, %v858, %v860
        %v869 = vsel %vm865, %v856, %v858
        %v870 = vsel %vm865, %v854, %v856
        %v871 = vsel %vm865, %v852, %v854
        %v872 = vsel %vm865, %v850, %v852
        %v873 = vsel %vm865, %v864, %v850
        %874 = vst [vmem:[#allocation2 + $0xc0] sm:$0xff] %v872
        %875 = vst [vmem:[#allocation2 + $0xc8] sm:$0xff] %v871
        %876 = vst [vmem:[#allocation2 + $0xd0] sm:$0xff] %v870
        %877 = vst [vmem:[#allocation2 + $0xd8] sm:$0xff] %v869
        %878 = vst [vmem:[#allocation2 + $0xe0] sm:$0xff] %v868
        %879 = vst [vmem:[#allocation2 + $0xe8] sm:$0xff] %v867
        %880 = vst [vmem:[#allocation2 + $0xf0] sm:$0xff] %v866
        %881 = vst [vmem:[#allocation2 + $0xf8] sm:$0xff] %v873
        %882 = vrot.lane.b32.xlu0 %v556, 95
        %v883 = vpop.permute.xlu0 %882
        %884 = vrot.lane.b32.xlu0 %v558, 95
        %v885 = vpop.permute.xlu0 %884
        %886 = vrot.lane.b32.xlu0 %v627, 95
        %v887 = vpop.permute.xlu0 %886
        %888 = vrot.lane.b32.xlu0 %v629, 95
        %v889 = vpop.permute.xlu0 %888
        %890 = vrot.lane.b32.xlu0 %v698, 95
        %v891 = vpop.permute.xlu0 %890
        %892 = vrot.lane.b32.xlu0 %v700, 95
        %v893 = vpop.permute.xlu0 %892
        %894 = vrot.lane.b32.xlu0 %v769, 95
        %v895 = vpop.permute.xlu0 %894
        %896 = vrot.lane.b32.xlu0 %v771, 95
        %v897 = vpop.permute.xlu0 %896
        %vm898 = vcmp.lt.s32.totalorder %v798, 95
        %v899 = vsel %vm898, %v895, %v897
        %v900 = vsel %vm898, %v893, %v895
        %v901 = vsel %vm898, %v891, %v893
        %v902 = vsel %vm898, %v889, %v891
        %v903 = vsel %vm898, %v887, %v889
        %v904 = vsel %vm898, %v885, %v887
        %v905 = vsel %vm898, %v883, %v885
        %v906 = vsel %vm898, %v897, %v883
        %907 = vst [vmem:[#allocation2 + $0x100] sm:$0xff] %v905
        %908 = vst [vmem:[#allocation2 + $0x108] sm:$0xff] %v904
        %909 = vst [vmem:[#allocation2 + $0x110] sm:$0xff] %v903
        %910 = vst [vmem:[#allocation2 + $0x118] sm:$0xff] %v902
        %911 = vst [vmem:[#allocation2 + $0x120] sm:$0xff] %v901
        %912 = vst [vmem:[#allocation2 + $0x128] sm:$0xff] %v900
        %913 = vst [vmem:[#allocation2 + $0x130] sm:$0xff] %v899
        %914 = vst [vmem:[#allocation2 + $0x138] sm:$0xff] %v906
        %915 = vrot.lane.b32.xlu0 %v556, 94
        %v916 = vpop.permute.xlu0 %915
        %917 = vrot.lane.b32.xlu0 %v558, 94
        %v918 = vpop.permute.xlu0 %917
        %919 = vrot.lane.b32.xlu0 %v627, 94
        %v920 = vpop.permute.xlu0 %919
        %921 = vrot.lane.b32.xlu0 %v629, 94
        %v922 = vpop.permute.xlu0 %921
        %923 = vrot.lane.b32.xlu0 %v698, 94
        %v924 = vpop.permute.xlu0 %923
        %925 = vrot.lane.b32.xlu0 %v700, 94
        %v926 = vpop.permute.xlu0 %925
        %927 = vrot.lane.b32.xlu0 %v769, 94
        %v928 = vpop.permute.xlu0 %927
        %929 = vrot.lane.b32.xlu0 %v771, 94
        %v930 = vpop.permute.xlu0 %929
        %vm931 = vcmp.lt.s32.totalorder %v798, 94
        %v932 = vsel %vm931, %v928, %v930
        %v933 = vsel %vm931, %v926, %v928
        %v934 = vsel %vm931, %v924, %v926
        %v935 = vsel %vm931, %v922, %v924
        %v936 = vsel %vm931, %v920, %v922
        %v937 = vsel %vm931, %v918, %v920
        %v938 = vsel %vm931, %v916, %v918
        %v939 = vsel %vm931, %v930, %v916
        %940 = vst [vmem:[#allocation2 + $0x140] sm:$0xff] %v938
        %941 = vst [vmem:[#allocation2 + $0x148] sm:$0xff] %v937
        %942 = vst [vmem:[#allocation2 + $0x150] sm:$0xff] %v936
        %943 = vst [vmem:[#allocation2 + $0x158] sm:$0xff] %v935
        %944 = vst [vmem:[#allocation2 + $0x160] sm:$0xff] %v934
        %945 = vst [vmem:[#allocation2 + $0x168] sm:$0xff] %v933
        %946 = vst [vmem:[#allocation2 + $0x170] sm:$0xff] %v932
        %947 = vst [vmem:[#allocation2 + $0x178] sm:$0xff] %v939
        %948 = vrot.lane.b32.xlu0 %v556, 64
        %v949 = vpop.permute.xlu0 %948
        %950 = vrot.lane.b32.xlu0 %v558, 64
        %v951 = vpop.permute.xlu0 %950
        %952 = vrot.lane.b32.xlu0 %v627, 64
        %v953 = vpop.permute.xlu0 %952
        %954 = vrot.lane.b32.xlu0 %v629, 64
        %v955 = vpop.permute.xlu0 %954
        %956 = vrot.lane.b32.xlu0 %v698, 64
        %v957 = vpop.permute.xlu0 %956
        %958 = vrot.lane.b32.xlu0 %v700, 64
        %v959 = vpop.permute.xlu0 %958
        %960 = vrot.lane.b32.xlu0 %v769, 64
        %v961 = vpop.permute.xlu0 %960
        %962 = vrot.lane.b32.xlu0 %v771, 64
        %v963 = vpop.permute.xlu0 %962
        %vm964 = vcmp.lt.s32.totalorder %v798, 64
        %v965 = vsel %vm964, %v961, %v963
        %v966 = vsel %vm964, %v959, %v961
        %v967 = vsel %vm964, %v957, %v959
        %v968 = vsel %vm964, %v955, %v957
        %v969 = vsel %vm964, %v953, %v955
        %v970 = vsel %vm964, %v951, %v953
        %v971 = vsel %vm964, %v949, %v951
        %v972 = vsel %vm964, %v963, %v949
        %973 = vst [vmem:[#allocation2 + $0x180] sm:$0xff] %v971
        %974 = vst [vmem:[#allocation2 + $0x188] sm:$0xff] %v970
        %975 = vst [vmem:[#allocation2 + $0x190] sm:$0xff] %v969
        %976 = vst [vmem:[#allocation2 + $0x198] sm:$0xff] %v968
        %977 = vst [vmem:[#allocation2 + $0x1a0] sm:$0xff] %v967
        %978 = vst [vmem:[#allocation2 + $0x1a8] sm:$0xff] %v966
        %979 = vst [vmem:[#allocation2 + $0x1b0] sm:$0xff] %v965
        %980 = vst [vmem:[#allocation2 + $0x1b8] sm:$0xff] %v972
        %981 = vrot.lane.b32.xlu0 %v556, 63
        %v982 = vpop.permute.xlu0 %981
        %983 = vrot.lane.b32.xlu0 %v558, 63
        %v984 = vpop.permute.xlu0 %983
        %985 = vrot.lane.b32.xlu0 %v627, 63
        %v986 = vpop.permute.xlu0 %985
        %987 = vrot.lane.b32.xlu0 %v629, 63
        %v988 = vpop.permute.xlu0 %987
        %989 = vrot.lane.b32.xlu0 %v698, 63
        %v990 = vpop.permute.xlu0 %989
        %991 = vrot.lane.b32.xlu0 %v700, 63
        %v992 = vpop.permute.xlu0 %991
        %993 = vrot.lane.b32.xlu0 %v769, 63
        %v994 = vpop.permute.xlu0 %993
        %995 = vrot.lane.b32.xlu0 %v771, 63
        %v996 = vpop.permute.xlu0 %995
        %vm997 = vcmp.lt.s32.totalorder %v798, 63
        %v998 = vsel %vm997, %v994, %v996
        %v999 = vsel %vm997, %v992, %v994
        %v1000 = vsel %vm997, %v990, %v992
        %v1001 = vsel %vm997, %v988, %v990
        %v1002 = vsel %vm997, %v986, %v988
        %v1003 = vsel %vm997, %v984, %v986
        %v1004 = vsel %vm997, %v982, %v984
        %v1005 = vsel %vm997, %v996, %v982
        %1006 = vst [vmem:[#allocation2 + $0x1c0] sm:$0xff] %v1004
        %1007 = vst [vmem:[#allocation2 + $0x1c8] sm:$0xff] %v1003
        %1008 = vst [vmem:[#allocation2 + $0x1d0] sm:$0xff] %v1002
        %1009 = vst [vmem:[#allocation2 + $0x1d8] sm:$0xff] %v1001
        %1010 = vst [vmem:[#allocation2 + $0x1e0] sm:$0xff] %v1000
        %1011 = vst [vmem:[#allocation2 + $0x1e8] sm:$0xff] %v999
        %1012 = vst [vmem:[#allocation2 + $0x1f0] sm:$0xff] %v998
        %1013 = vst [vmem:[#allocation2 + $0x1f8] sm:$0xff] %v1005
        %1014 = vrot.lane.b32.xlu0 %v556, 62
        %v1015 = vpop.permute.xlu0 %1014
        %1016 = vrot.lane.b32.xlu0 %v558, 62
        %v1017 = vpop.permute.xlu0 %1016
        %1018 = vrot.lane.b32.xlu0 %v627, 62
        %v1019 = vpop.permute.xlu0 %1018
        %1020 = vrot.lane.b32.xlu0 %v629, 62
        %v1021 = vpop.permute.xlu0 %1020
        %1022 = vrot.lane.b32.xlu0 %v698, 62
        %v1023 = vpop.permute.xlu0 %1022
        %1024 = vrot.lane.b32.xlu0 %v700, 62
        %v1025 = vpop.permute.xlu0 %1024
        %1026 = vrot.lane.b32.xlu0 %v769, 62
        %v1027 = vpop.permute.xlu0 %1026
        %1028 = vrot.lane.b32.xlu0 %v771, 62
        %v1029 = vpop.permute.xlu0 %1028
        %vm1030 = vcmp.lt.s32.totalorder %v798, 62
        %v1031 = vsel %vm1030, %v1027, %v1029
        %v1032 = vsel %vm1030, %v1025, %v1027
        %v1033 = vsel %vm1030, %v1023, %v1025
        %v1034 = vsel %vm1030, %v1021, %v1023
        %v1035 = vsel %vm1030, %v1019, %v1021
        %v1036 = vsel %vm1030, %v1017, %v1019
        %v1037 = vsel %vm1030, %v1015, %v1017
        %v1038 = vsel %vm1030, %v1029, %v1015
        %1039 = vst [vmem:[#allocation2 + $0x200] sm:$0xff] %v1037
        %1040 = vst [vmem:[#allocation2 + $0x208] sm:$0xff] %v1036
        %1041 = vst [vmem:[#allocation2 + $0x210] sm:$0xff] %v1035
        %1042 = vst [vmem:[#allocation2 + $0x218] sm:$0xff] %v1034
        %1043 = vst [vmem:[#allocation2 + $0x220] sm:$0xff] %v1033
        %1044 = vst [vmem:[#allocation2 + $0x228] sm:$0xff] %v1032
        %1045 = vst [vmem:[#allocation2 + $0x230] sm:$0xff] %v1031
        %1046 = vst [vmem:[#allocation2 + $0x238] sm:$0xff] %v1038
        %v1047 = vld [vmem:[#allocation2] sm:$0xff]
        %v1048 = vld [vmem:[#allocation2 + $0x8] sm:$0xff]
        %v1049 = vld [vmem:[#allocation2 + $0x10] sm:$0xff]
        %v1050 = vld [vmem:[#allocation2 + $0x18] sm:$0xff]
        %v1051 = vld [vmem:[#allocation2 + $0x20] sm:$0xff]
        %v1052 = vld [vmem:[#allocation2 + $0x28] sm:$0xff]
        %v1053 = vld [vmem:[#allocation2 + $0x30] sm:$0xff]
        %v1054 = vld [vmem:[#allocation2 + $0x38] sm:$0xff]
        %v1055 = vld [vmem:[#allocation2 + $0x40] sm:$0xff]
        %v1056 = vld [vmem:[#allocation2 + $0x48] sm:$0xff]
        %v1057 = vld [vmem:[#allocation2 + $0x50] sm:$0xff]
        %v1058 = vld [vmem:[#allocation2 + $0x58] sm:$0xff]
        %v1059 = vld [vmem:[#allocation2 + $0x60] sm:$0xff]
        %v1060 = vld [vmem:[#allocation2 + $0x68] sm:$0xff]
        %v1061 = vld [vmem:[#allocation2 + $0x70] sm:$0xff]
        %v1062 = vld [vmem:[#allocation2 + $0x78] sm:$0xff]
        %v1063 = vld [vmem:[#allocation2 + $0x80] sm:$0xff]
        %v1064 = vld [vmem:[#allocation2 + $0x88] sm:$0xff]
        %v1065 = vld [vmem:[#allocation2 + $0x90] sm:$0xff]
        %v1066 = vld [vmem:[#allocation2 + $0x98] sm:$0xff]
        %v1067 = vld [vmem:[#allocation2 + $0xa0] sm:$0xff]
        %v1068 = vld [vmem:[#allocation2 + $0xa8] sm:$0xff]
        %v1069 = vld [vmem:[#allocation2 + $0xb0] sm:$0xff]
        %v1070 = vld [vmem:[#allocation2 + $0xb8] sm:$0xff]
        %v1071 = vld [vmem:[#allocation2 + $0xc0] sm:$0xff]
        %v1072 = vld [vmem:[#allocation2 + $0xc8] sm:$0xff]
        %v1073 = vld [vmem:[#allocation2 + $0xd0] sm:$0xff]
        %v1074 = vld [vmem:[#allocation2 + $0xd8] sm:$0xff]
        %v1075 = vld [vmem:[#allocation2 + $0xe0] sm:$0xff]
        %v1076 = vld [vmem:[#allocation2 + $0xe8] sm:$0xff]
        %v1077 = vld [vmem:[#allocation2 + $0xf0] sm:$0xff]
        %v1078 = vld [vmem:[#allocation2 + $0xf8] sm:$0xff]
        %v1079 = vld [vmem:[#allocation2 + $0x100] sm:$0xff]
        %v1080 = vld [vmem:[#allocation2 + $0x108] sm:$0xff]
        %v1081 = vld [vmem:[#allocation2 + $0x110] sm:$0xff]
        %v1082 = vld [vmem:[#allocation2 + $0x118] sm:$0xff]
        %v1083 = vld [vmem:[#allocation2 + $0x120] sm:$0xff]
        %v1084 = vld [vmem:[#allocation2 + $0x128] sm:$0xff]
        %v1085 = vld [vmem:[#allocation2 + $0x130] sm:$0xff]
        %v1086 = vld [vmem:[#allocation2 + $0x138] sm:$0xff]
        %v1087 = vld [vmem:[#allocation2 + $0x140] sm:$0xff]
        %v1088 = vld [vmem:[#allocation2 + $0x148] sm:$0xff]
        %v1089 = vld [vmem:[#allocation2 + $0x150] sm:$0xff]
        %v1090 = vld [vmem:[#allocation2 + $0x158] sm:$0xff]
        %v1091 = vld [vmem:[#allocation2 + $0x160] sm:$0xff]
        %v1092 = vld [vmem:[#allocation2 + $0x168] sm:$0xff]
        %v1093 = vld [vmem:[#allocation2 + $0x170] sm:$0xff]
        %v1094 = vld [vmem:[#allocation2 + $0x178] sm:$0xff]
        %v1095 = vld [vmem:[#allocation2 + $0x180] sm:$0xff]
        %v1096 = vld [vmem:[#allocation2 + $0x188] sm:$0xff]
        %v1097 = vld [vmem:[#allocation2 + $0x190] sm:$0xff]
        %v1098 = vld [vmem:[#allocation2 + $0x198] sm:$0xff]
        %v1099 = vld [vmem:[#allocation2 + $0x1a0] sm:$0xff]
        %v1100 = vld [vmem:[#allocation2 + $0x1a8] sm:$0xff]
        %v1101 = vld [vmem:[#allocation2 + $0x1b0] sm:$0xff]
        %v1102 = vld [vmem:[#allocation2 + $0x1b8] sm:$0xff]
        %v1103 = vld [vmem:[#allocation2 + $0x1c0] sm:$0xff]
        %v1104 = vld [vmem:[#allocation2 + $0x1c8] sm:$0xff]
        %v1105 = vld [vmem:[#allocation2 + $0x1d0] sm:$0xff]
        %v1106 = vld [vmem:[#allocation2 + $0x1d8] sm:$0xff]
        %v1107 = vld [vmem:[#allocation2 + $0x1e0] sm:$0xff]
        %v1108 = vld [vmem:[#allocation2 + $0x1e8] sm:$0xff]
        %v1109 = vld [vmem:[#allocation2 + $0x1f0] sm:$0xff]
        %v1110 = vld [vmem:[#allocation2 + $0x1f8] sm:$0xff]
        %v1111 = vld [vmem:[#allocation2 + $0x200] sm:$0xff]
        %v1112 = vld [vmem:[#allocation2 + $0x208] sm:$0xff]
        %v1113 = vld [vmem:[#allocation2 + $0x210] sm:$0xff]
        %v1114 = vld [vmem:[#allocation2 + $0x218] sm:$0xff]
        %v1115 = vld [vmem:[#allocation2 + $0x220] sm:$0xff]
        %v1116 = vld [vmem:[#allocation2 + $0x228] sm:$0xff]
        %v1117 = vld [vmem:[#allocation2 + $0x230] sm:$0xff]
        %v1118 = vld [vmem:[#allocation2 + $0x238] sm:$0xff]
        %1120 = vset.pattern.permute.xlu0 0
        %1121 = vperm.xlu0 %1120, %v486
        %v1122 = vpop.permute.xlu0 %1121
        %vm1124 = vcmask 588800
        %v1126 = vsel %vm1124, %v485, 0
        %1128 = vmatprep.subr.mxu0 %v1048
        %1129 = vmatpush1.msra.mxu0 %v1047
        %1130 = vmatprep.subr.mxu0 %v1056
        %1131 = vmatpush1.msra.mxu0 %v1055
        %1132 = vmatprep.subr.mxu0 %v1064
        %1133 = vmatpush1.msra.mxu0 %v1063
        %1134 = vmatprep.subr.mxu0 %v1072
        %1135 = vmatpush1.msra.mxu0 %v1071
        %1136 = vmatprep.subr.mxu0 %v1080
        %1137 = vmatpush1.msra.mxu0 %v1079
        %1138 = vmatprep.subr.mxu0 %v1088
        %1139 = vmatpush1.msra.mxu0 %v1087
        %1140 = vmatprep.subr.mxu0 %v1096
        %1141 = vmatpush1.msra.mxu0 %v1095
        %1142 = vmatprep.subr.mxu0 %v1104
        %1143 = vmatpush1.msra.mxu0 %v1103
        %1144 = vmatprep.subr.mxu0 %v1112
        %1145 = vmatpush1.msra.mxu0 %v1111
        %1146 = vmatprep.subr.mxu0 0.0
        %1147 = vmatpush1.msra.mxu0 0.0
        %1148 = vmatprep.subr.mxu0 0.0
        %1149 = vmatpush1.msra.mxu0 0.0
        %1150 = vmatprep.subr.mxu0 0.0
        %1151 = vmatpush1.msra.mxu0 0.0
        %1152 = vmatprep.subr.mxu0 0.0
        %1153 = vmatpush1.msra.mxu0 0.0
        %1154 = vmatprep.subr.mxu0 0.0
        %1155 = vmatpush1.msra.mxu0 0.0
        %1156 = vmatprep.subr.mxu0 0.0
        %1157 = vmatpush1.msra.mxu0 0.0
        %1158 = vmatprep.subr.mxu0 0.0
        %1159 = vmatpush1.msra.mxu0 0.0
        %1160 = vmatprep.subr.mxu0 0.0
        %1161 = vmatpush1.msra.mxu0 0.0
        %1162 = vmatprep.subr.mxu0 0.0
        %1163 = vmatpush1.msra.mxu0 0.0
        %1164 = vmatprep.subr.mxu0 0.0
        %1165 = vmatpush1.msra.mxu0 0.0
        %1166 = vmatprep.subr.mxu0 0.0
        %1167 = vmatpush1.msra.mxu0 0.0
        %1168 = vmatprep.subr.mxu0 0.0
        %1169 = vmatpush1.msra.mxu0 0.0
        %1170 = vmatprep.subr.mxu0 0.0
        %1171 = vmatpush1.msra.mxu0 0.0
        %1172 = vmatprep.subr.mxu0 0.0
        %1173 = vmatpush1.msra.mxu0 0.0
        %1174 = vmatprep.subr.mxu0 0.0
        %1175 = vmatpush1.msra.mxu0 0.0
        %1176 = vmatprep.subr.mxu0 0.0
        %1177 = vmatpush1.msra.mxu0 0.0
        %1178 = vmatprep.subr.mxu0 0.0
        %1179 = vmatpush1.msra.mxu0 0.0
        %1180 = vmatprep.subr.mxu0 0.0
        %1181 = vmatpush1.msra.mxu0 0.0
        %1182 = vmatprep.subr.mxu0 0.0
        %1183 = vmatpush1.msra.mxu0 0.0
        %1184 = vmatprep.subr.mxu0 0.0
        %1185 = vmatpush1.msra.mxu0 0.0
        %1186 = vmatprep.subr.mxu0 0.0
        %1187 = vmatpush1.msra.mxu0 0.0
        %1188 = vmatprep.subr.mxu0 0.0
        %1189 = vmatpush1.msra.mxu0 0.0
        %1190 = vmatprep.subr.mxu0 0.0
        %1191 = vmatpush1.msra.mxu0 0.0
        %1192 = vmatprep.mubr.f32.mxu0 0.0
        %1193 = vmatmul.mubr.f32.gmra.mrb[0].mxu0 %v1126
        %v1194 = vpop.f32.mrb[0].mxu0
        %v1195 = vadd.f32 %v1122, %v1194
        %v1196 = vpop.f32.mrb[0].mxu0
        %v1197 = vadd.f32 %v1122, %v1196
        %1198 = vdwg.mxu0
        %1199 = vmatprep.subr.mxu0 %v1050
        %1200 = vmatpush1.msra.mxu0 %v1049
        %1201 = vmatprep.subr.mxu0 %v1058
        %1202 = vmatpush1.msra.mxu0 %v1057
        %1203 = vmatprep.subr.mxu0 %v1066
        %1204 = vmatpush1.msra.mxu0 %v1065
        %1205 = vmatprep.subr.mxu0 %v1074
        %1206 = vmatpush1.msra.mxu0 %v1073
        %1207 = vmatprep.subr.mxu0 %v1082
        %1208 = vmatpush1.msra.mxu0 %v1081
        %1209 = vmatprep.subr.mxu0 %v1090
        %1210 = vmatpush1.msra.mxu0 %v1089
        %1211 = vmatprep.subr.mxu0 %v1098
        %1212 = vmatpush1.msra.mxu0 %v1097
        %1213 = vmatprep.subr.mxu0 %v1106
        %1214 = vmatpush1.msra.mxu0 %v1105
        %1215 = vmatprep.subr.mxu0 %v1114
        %1216 = vmatpush1.msra.mxu0 %v1113
        %1217 = vmatprep.subr.mxu0 0.0
        %1218 = vmatpush1.msra.mxu0 0.0
        %1219 = vmatprep.subr.mxu0 0.0
        %1220 = vmatpush1.msra.mxu0 0.0
        %1221 = vmatprep.subr.mxu0 0.0
        %1222 = vmatpush1.msra.mxu0 0.0
        %1223 = vmatprep.subr.mxu0 0.0
        %1224 = vmatpush1.msra.mxu0 0.0
        %1225 = vmatprep.subr.mxu0 0.0
        %1226 = vmatpush1.msra.mxu0 0.0
        %1227 = vmatprep.subr.mxu0 0.0
        %1228 = vmatpush1.msra.mxu0 0.0
        %1229 = vmatprep.subr.mxu0 0.0
        %1230 = vmatpush1.msra.mxu0 0.0
        %1231 = vmatprep.subr.mxu0 0.0
        %1232 = vmatpush1.msra.mxu0 0.0
        %1233 = vmatprep.subr.mxu0 0.0
        %1234 = vmatpush1.msra.mxu0 0.0
        %1235 = vmatprep.subr.mxu0 0.0
        %1236 = vmatpush1.msra.mxu0 0.0
        %1237 = vmatprep.subr.mxu0 0.0
        %1238 = vmatpush1.msra.mxu0 0.0
        %1239 = vmatprep.subr.mxu0 0.0
        %1240 = vmatpush1.msra.mxu0 0.0
        %1241 = vmatprep.subr.mxu0 0.0
        %1242 = vmatpush1.msra.mxu0 0.0
        %1243 = vmatprep.subr.mxu0 0.0
        %1244 = vmatpush1.msra.mxu0 0.0
        %1245 = vmatprep.subr.mxu0 0.0
        %1246 = vmatpush1.msra.mxu0 0.0
        %1247 = vmatprep.subr.mxu0 0.0
        %1248 = vmatpush1.msra.mxu0 0.0
        %1249 = vmatprep.subr.mxu0 0.0
        %1250 = vmatpush1.msra.mxu0 0.0
        %1251 = vmatprep.subr.mxu0 0.0
        %1252 = vmatpush1.msra.mxu0 0.0
        %1253 = vmatprep.subr.mxu0 0.0
        %1254 = vmatpush1.msra.mxu0 0.0
        %1255 = vmatprep.subr.mxu0 0.0
        %1256 = vmatpush1.msra.mxu0 0.0
        %1257 = vmatprep.subr.mxu0 0.0
        %1258 = vmatpush1.msra.mxu0 0.0
        %1259 = vmatprep.subr.mxu0 0.0
        %1260 = vmatpush1.msra.mxu0 0.0
        %1261 = vmatprep.subr.mxu0 0.0
        %1262 = vmatpush1.msra.mxu0 0.0
        %1263 = vmatprep.mubr.f32.mxu0 0.0
        %1264 = vmatmul.mubr.f32.gmra.mrb[0].mxu0 %v1126
        %v1265 = vpop.f32.mrb[0].mxu0
        %v1266 = vadd.f32 %v1122, %v1265
        %v1267 = vpop.f32.mrb[0].mxu0
        %v1268 = vadd.f32 %v1122, %v1267
        %1269 = vdwg.mxu0
        %1270 = vmatprep.subr.mxu0 %v1052
        %1271 = vmatpush1.msra.mxu0 %v1051
        %1272 = vmatprep.subr.mxu0 %v1060
        %1273 = vmatpush1.msra.mxu0 %v1059
        %1274 = vmatprep.subr.mxu0 %v1068
        %1275 = vmatpush1.msra.mxu0 %v1067
        %1276 = vmatprep.subr.mxu0 %v1076
        %1277 = vmatpush1.msra.mxu0 %v1075
        %1278 = vmatprep.subr.mxu0 %v1084
        %1279 = vmatpush1.msra.mxu0 %v1083
        %1280 = vmatprep.subr.mxu0 %v1092
        %1281 = vmatpush1.msra.mxu0 %v1091
        %1282 = vmatprep.subr.mxu0 %v1100
        %1283 = vmatpush1.msra.mxu0 %v1099
        %1284 = vmatprep.subr.mxu0 %v1108
        %1285 = vmatpush1.msra.mxu0 %v1107
        %1286 = vmatprep.subr.mxu0 %v1116
        %1287 = vmatpush1.msra.mxu0 %v1115
        %1288 = vmatprep.subr.mxu0 0.0
        %1289 = vmatpush1.msra.mxu0 0.0
        %1290 = vmatprep.subr.mxu0 0.0
        %1291 = vmatpush1.msra.mxu0 0.0
        %1292 = vmatprep.subr.mxu0 0.0
        %1293 = vmatpush1.msra.mxu0 0.0
        %1294 = vmatprep.subr.mxu0 0.0
        %1295 = vmatpush1.msra.mxu0 0.0
        %1296 = vmatprep.subr.mxu0 0.0
        %1297 = vmatpush1.msra.mxu0 0.0
        %1298 = vmatprep.subr.mxu0 0.0
        %1299 = vmatpush1.msra.mxu0 0.0
        %1300 = vmatprep.subr.mxu0 0.0
        %1301 = vmatpush1.msra.mxu0 0.0
        %1302 = vmatprep.subr.mxu0 0.0
        %1303 = vmatpush1.msra.mxu0 0.0
        %1304 = vmatprep.subr.mxu0 0.0
        %1305 = vmatpush1.msra.mxu0 0.0
        %1306 = vmatprep.subr.mxu0 0.0
        %1307 = vmatpush1.msra.mxu0 0.0
        %1308 = vmatprep.subr.mxu0 0.0
        %1309 = vmatpush1.msra.mxu0 0.0
        %1310 = vmatprep.subr.mxu0 0.0
        %1311 = vmatpush1.msra.mxu0 0.0
        %1312 = vmatprep.subr.mxu0 0.0
        %1313 = vmatpush1.msra.mxu0 0.0
        %1314 = vmatprep.subr.mxu0 0.0
        %1315 = vmatpush1.msra.mxu0 0.0
        %1316 = vmatprep.subr.mxu0 0.0
        %1317 = vmatpush1.msra.mxu0 0.0
        %1318 = vmatprep.subr.mxu0 0.0
        %1319 = vmatpush1.msra.mxu0 0.0
        %1320 = vmatprep.subr.mxu0 0.0
        %1321 = vmatpush1.msra.mxu0 0.0
        %1322 = vmatprep.subr.mxu0 0.0
        %1323 = vmatpush1.msra.mxu0 0.0
        %1324 = vmatprep.subr.mxu0 0.0
        %1325 = vmatpush1.msra.mxu0 0.0
        %1326 = vmatprep.subr.mxu0 0.0
        %1327 = vmatpush1.msra.mxu0 0.0
        %1328 = vmatprep.subr.mxu0 0.0
        %1329 = vmatpush1.msra.mxu0 0.0
        %1330 = vmatprep.subr.mxu0 0.0
        %1331 = vmatpush1.msra.mxu0 0.0
        %1332 = vmatprep.subr.mxu0 0.0
        %1333 = vmatpush1.msra.mxu0 0.0
        %1334 = vmatprep.mubr.f32.mxu0 0.0
        %1335 = vmatmul.mubr.f32.gmra.mrb[0].mxu0 %v1126
        %v1336 = vpop.f32.mrb[0].mxu0
        %v1337 = vadd.f32 %v1122, %v1336
        %v1338 = vpop.f32.mrb[0].mxu0
        %v1339 = vadd.f32 %v1122, %v1338
        %1340 = vdwg.mxu0
        %1341 = vmatprep.subr.mxu0 %v1054
        %1342 = vmatpush1.msra.mxu0 %v1053
        %1343 = vmatprep.subr.mxu0 %v1062
        %1344 = vmatpush1.msra.mxu0 %v1061
        %1345 = vmatprep.subr.mxu0 %v1070
        %1346 = vmatpush1.msra.mxu0 %v1069
        %1347 = vmatprep.subr.mxu0 %v1078
        %1348 = vmatpush1.msra.mxu0 %v1077
        %1349 = vmatprep.subr.mxu0 %v1086
        %1350 = vmatpush1.msra.mxu0 %v1085
        %1351 = vmatprep.subr.mxu0 %v1094
        %1352 = vmatpush1.msra.mxu0 %v1093
        %1353 = vmatprep.subr.mxu0 %v1102
        %1354 = vmatpush1.msra.mxu0 %v1101
        %1355 = vmatprep.subr.mxu0 %v1110
        %1356 = vmatpush1.msra.mxu0 %v1109
        %1357 = vmatprep.subr.mxu0 %v1118
        %1358 = vmatpush1.msra.mxu0 %v1117
        %1359 = vmatprep.subr.mxu0 0.0
        %1360 = vmatpush1.msra.mxu0 0.0
        %1361 = vmatprep.subr.mxu0 0.0
        %1362 = vmatpush1.msra.mxu0 0.0
        %1363 = vmatprep.subr.mxu0 0.0
        %1364 = vmatpush1.msra.mxu0 0.0
        %1365 = vmatprep.subr.mxu0 0.0
        %1366 = vmatpush1.msra.mxu0 0.0
        %1367 = vmatprep.subr.mxu0 0.0
        %1368 = vmatpush1.msra.mxu0 0.0
        %1369 = vmatprep.subr.mxu0 0.0
        %1370 = vmatpush1.msra.mxu0 0.0
        %1371 = vmatprep.subr.mxu0 0.0
        %1372 = vmatpush1.msra.mxu0 0.0
        %1373 = vmatprep.subr.mxu0 0.0
        %1374 = vmatpush1.msra.mxu0 0.0
        %1375 = vmatprep.subr.mxu0 0.0
        %1376 = vmatpush1.msra.mxu0 0.0
        %1377 = vmatprep.subr.mxu0 0.0
        %1378 = vmatpush1.msra.mxu0 0.0
        %1379 = vmatprep.subr.mxu0 0.0
        %1380 = vmatpush1.msra.mxu0 0.0
        %1381 = vmatprep.subr.mxu0 0.0
        %1382 = vmatpush1.msra.mxu0 0.0
        %1383 = vmatprep.subr.mxu0 0.0
        %1384 = vmatpush1.msra.mxu0 0.0
        %1385 = vmatprep.subr.mxu0 0.0
        %1386 = vmatpush1.msra.mxu0 0.0
        %1387 = vmatprep.subr.mxu0 0.0
        %1388 = vmatpush1.msra.mxu0 0.0
        %1389 = vmatprep.subr.mxu0 0.0
        %1390 = vmatpush1.msra.mxu0 0.0
        %1391 = vmatprep.subr.mxu0 0.0
        %1392 = vmatpush1.msra.mxu0 0.0
        %1393 = vmatprep.subr.mxu0 0.0
        %1394 = vmatpush1.msra.mxu0 0.0
        %1395 = vmatprep.subr.mxu0 0.0
        %1396 = vmatpush1.msra.mxu0 0.0
        %1397 = vmatprep.subr.mxu0 0.0
        %1398 = vmatpush1.msra.mxu0 0.0
        %1399 = vmatprep.subr.mxu0 0.0
        %1400 = vmatpush1.msra.mxu0 0.0
        %1401 = vmatprep.subr.mxu0 0.0
        %1402 = vmatpush1.msra.mxu0 0.0
        %1403 = vmatprep.subr.mxu0 0.0
        %1404 = vmatpush1.msra.mxu0 0.0
        %1405 = vmatprep.mubr.f32.mxu0 0.0
        %1406 = vmatmul.mubr.f32.gmra.mrb[0].mxu0 %v1126
        %v1407 = vpop.f32.mrb[0].mxu0
        %v1408 = vadd.f32 %v1122, %v1407
        %v1409 = vpop.f32.mrb[0].mxu0
        %v1410 = vadd.f32 %v1122, %v1409
        %1411 = vdwg.mxu0
        %1412 = vst [vmem:[%s228] sm:$0xff] %v1195
        %1413 = vst [vmem:[%s228 + $0x8] sm:$0xff] %v1197
        %1414 = vst [vmem:[%s228 + $0x10] sm:$0xff] %v1266
        %1415 = vst [vmem:[%s228 + $0x18] sm:$0xff] %v1268
        %1416 = vst [vmem:[%s228 + $0x20] sm:$0xff] %v1337
        %1417 = vst [vmem:[%s228 + $0x28] sm:$0xff] %v1339
        %1418 = vst [vmem:[%s228 + $0x30] sm:$0xff] %v1408
        %1419 = vst [vmem:[%s228 + $0x38] sm:$0xff] %v1410
        %s1420 = sand.u32 %s119, 1
        %s1421 = scalar_lea.sflag [#allocation5], %s1420
        %s1422 = sand.u32 %s119, 1
        %s1423 = smul.addr %s1422, 64
        %s1424 = scalar_lea.vmem [#allocation8], %s1423
        // Predicated region
        $region45: #{tpu_custom_call.1} parent=35 // pred_check
          %p1425 = pneg %p129
        $region46: #{tpu_custom_call.1} parent=35 // pred_check_branch
          %1427 = sbr.rel (%p1425) target = $region48
        $region47: #{tpu_custom_call.1} parent=35 // pred_region
          %s1429 = ssub.s32 1024, 1024
          %1430 = vsyncadd %s1421, %s1429
          %s1431 = smul.addr %s22, 8
          %s1432 = smul.addr %s1431, 128
          %s1433 = scalar_lea.hbm %s4, %s1432
          %s1435 = sshll.u32 %s1424, 4
          %s1436 = int_to_ptr.vmem [resolvable:$true] %s1435
          %1438 = dma.vmem_to_hbm [thread:$0]  %s1436, 1024, %s1433, %s1421
        $region48: #{tpu_custom_call.1} parent=35 // pred_fallthru
          _
      $region36: #{tpu_custom_call.1} parent=5 // pred_fallthru
        _
      %p1439 = scmp.le.s32.totalorder 2, %s17
      // Predicated region
      $region49: #{tpu_custom_call.1} parent=5 // pred_check
        %p1440 = pneg %p1439
      $region50: #{tpu_custom_call.1} parent=5 // pred_check_branch
        %1442 = sbr.rel (%p1440) target = $region52
      $region51: #{tpu_custom_call.1} parent=5 // pred_region
        %s1443 = ssub.s32 %s17, 2
        // Predicated region
        $region53: #{tpu_custom_call.1} parent=51 // pred_check
          %p1444 = pneg %p135
        $region54: #{tpu_custom_call.1} parent=51 // pred_check_branch
          %1446 = sbr.rel (%p1444) target = $region56
        $region55: #{tpu_custom_call.1} parent=51 // pred_region
          %s1447 = sand.u32 %s120, 1
          %s1448 = scalar_lea.sflag [#allocation5], %s1447
          %s1449 = sand.u32 %s120, 1
          %s1450 = smul.addr %s1449, 64
          %s1451 = scalar_lea.vmem [#allocation8], %s1450
          %1452 = dma.done %s1448, 1024
        $region56: #{tpu_custom_call.1} parent=51 // pred_fallthru
          _
      $region52: #{tpu_custom_call.1} parent=5 // pred_fallthru
        _
    $region6: #{tpu_custom_call.1} parent=1 // loop_footer
      %s21 = sadd.s32 1, %s17
    $region7: #{tpu_custom_call.1} parent=1 // loop_footer_branch
      %16 = sbr.rel target = $region3
    $region8: #{tpu_custom_call.1} parent=1 // loop_exit
      _
    %1453 = vsyncpa [#allocation4], 1
    %s1454 = scalar_lea.sflag [#allocation4], 1
    %1455 = vsyncpa %s1454, 1
    %1456 = vsyncpa [#allocation7], 1
    %1457 = vsyncpa [#allocation5], 1
    %s1458 = scalar_lea.sflag [#allocation5], 1
    %1459 = vsyncpa %s1458, 1

// kernel: tpu_custom_call.1
$region0: #{tpu_custom_call.1}
  #allocation0 [shape = 'u32[]', space=smem, size = 0x4, offset = 0x4, fixed_abs, tag = 'smem constant byte address 0x4 - core index']
  #allocation1 [shape = 'u32[144,128]{1,0:T(1,128)}', space=vmem, size = 0x12000, scoped, tag = 'internal scratch']
  #allocation2 [shape = 'f32[72,1024]{1,0:T(8,128)}', space=vmem, size = 0x48000, scoped, tag = 'scratch operand']
  %s0 = inlined_call_operand.hbm [shape: f32[2,8,256], index: 0, kind: input, shape index: {}]
  %s1 = inlined_call_operand.hbm [shape: f32[256,1024], index: 1, kind: input, shape index: {}]
  %s2 = inlined_call_operand.vmem [shape: f32[8,72], index: 2, kind: input, shape index: {}]
  %s3 = inlined_call_operand.vmem [shape: f32[8,1], index: 3, kind: input, shape index: {}]
  %s4 = inlined_call_operand.hbm [shape: f32[2,1,8,1024], index: 4, kind: output, shape index: {}]
  %s5 = sld [smem:[#allocation0]]
  $region57: #{tpu_custom_call.1} parent=0
    _
  %s7 = ssub.s32 1, %s5
  %s8 = scalar_select 0, %s7, %s5
  $region1: #{tpu_custom_call.1} parent=0
    #allocation3 [shape = 'u8[16384]{0}', space=vmem, size = 0x4000, scoped, tag = 'input window, operand 0']
    #allocation4 [shape = 's32[2]{0}', space=sflag, size = 0x8, scoped, tag = 'scoped memory for tpu_custom_call.1']
    #allocation5 [shape = 's32[2]{0}', space=sflag, size = 0x8, scoped, tag = 'scoped memory for tpu_custom_call.1']
    #allocation6 [shape = 'u8[1048576]{0}', space=vmem, size = 0x100000, scoped, tag = 'input window, operand 1, single buffered']
    #allocation7 [shape = 's32[1]{0}', space=sflag, size = 0x4, scoped, tag = 'scoped memory for tpu_custom_call.1']
    #allocation8 [shape = 'u8[65536]{0}', space=vmem, size = 0x10000, scoped, tag = 'output window, operand 0']
    %9 = vsyncpa [#allocation4], 0
    %s10 = scalar_lea.sflag [#allocation4], 1
    %11 = vsyncpa %s10, 0
    %12 = vsyncpa [#allocation7], 0
    %13 = vsyncpa [#allocation5], 0
    %s14 = scalar_lea.sflag [#allocation5], 1
    %15 = vsyncpa %s14, 0
    loop: start=0, step=1, limit=4
    $region2: #{tpu_custom_call.1} parent=1 // loop_pre_header
      _
    $region3: #{tpu_custom_call.1} parent=1 // loop_header
      %s17 = sphi 0, %s21
      %p18 = scmp.ge.s32.totalorder %s17, 4
      %s27 = sphi 0, %s29
      %s30 = sphi 0, %s27
      %s31 = sphi 0, %s30
      %s47 = sphi 0, %s31
      %s51 = sphi 0, %s51
      %s53 = sphi 0, %s51
      %s54 = sphi 0, %s53
      %s68 = sphi 0, %s54
      %s72 = sphi 0, %s72
      %s74 = sphi 0, %s72
      %s75 = sphi 0, %s74
      %s89 = sphi 0, %s75
      %s93 = sphi 0, %s93
      %s95 = sphi 0, %s93
      %s96 = sphi 0, %s95
      %s110 = sphi 0, %s96
      %s116 = sphi 0, %s118
      %s119 = sphi 0, %s116
      %s120 = sphi 0, %s119
      %s136 = sphi 0, %s120
    $region4: #{tpu_custom_call.1} parent=1 // loop_header_branch
      %20 = sbr.rel (%p18) target = $region8
    $region5: #{tpu_custom_call.1} parent=1 // loop_body
      %s22 = ssub.s32 %s17, 1
      %s23 = ssub.s32 %s17, 2
      %s24 = sadd.s32 %s17, 1
      %s25 = ssub.s32 %s17, %s24
      %p26 = scmp.eq.s32.totalorder %s25, 0
      %s28 = sadd.s32 %s27, 1
      %s29 = scalar_select %p26, %s27, %s28
      %p32 = pneg %p26
      %p33 = scmp.eq.s32.totalorder %s17, 1
      %p34 = por %p32, %p33
      %p35 = scmp.ne.s32.totalorder %s27, %s30
      %p36 = scmp.eq.s32.totalorder %s17, 0
      %p37 = por %p35, %p36
      %p38 = scmp.ne.s32.totalorder %s27, %s30
      %p39 = scmp.eq.s32.totalorder %s22, 1
      %p40 = por %p38, %p39
      %p41 = scmp.ne.s32.totalorder %s30, %s31
      %p42 = scmp.eq.s32.totalorder %s22, 0
      %p43 = por %p41, %p42
      %p44 = scmp.ne.s32.totalorder %s30, %s31
      %p45 = scmp.eq.s32.totalorder %s23, 1
      %p46 = por %p44, %p45
      %p48 = scmp.ne.s32.totalorder %s31, %s47
      %p49 = scmp.eq.s32.totalorder %s23, 0
      %p50 = por %p48, %p49
      %s52 = sadd.s32 %s51, 1
      %p55 = scmp.eq.s32.totalorder %s17, 1
      %p56 = scmp.ne.s32.totalorder %s51, %s53
      %p57 = scmp.eq.s32.totalorder %s17, 0
      %p58 = por %p56, %p57
      %p59 = scmp.ne.s32.totalorder %s51, %s53
      %p60 = scmp.eq.s32.totalorder %s22, 1
      %p61 = por %p59, %p60
      %p62 = scmp.ne.s32.totalorder %s53, %s54
      %p63 = scmp.eq.s32.totalorder %s22, 0
      %p64 = por %p62, %p63
      %p65 = scmp.ne.s32.totalorder %s53, %s54
      %p66 = scmp.eq.s32.totalorder %s23, 1
      %p67 = por %p65, %p66
      %p69 = scmp.ne.s32.totalorder %s54, %s68
      %p70 = scmp.eq.s32.totalorder %s23, 0
      %p71 = por %p69, %p70
      %s73 = sadd.s32 %s72, 1
      %p76 = scmp.eq.s32.totalorder %s17, 1
      %p77 = scmp.ne.s32.totalorder %s72, %s74
      %p78 = scmp.eq.s32.totalorder %s17, 0
      %p79 = por %p77, %p78
      %p80 = scmp.ne.s32.totalorder %s72, %s74
      %p81 = scmp.eq.s32.totalorder %s22, 1
      %p82 = por %p80, %p81
      %p83 = scmp.ne.s32.totalorder %s74, %s75
      %p84 = scmp.eq.s32.totalorder %s22, 0
      %p85 = por %p83, %p84
      %p86 = scmp.ne.s32.totalorder %s74, %s75
      %p87 = scmp.eq.s32.totalorder %s23, 1
      %p88 = por %p86, %p87
      %p90 = scmp.ne.s32.totalorder %s75, %s89
      %p91 = scmp.eq.s32.totalorder %s23, 0
      %p92 = por %p90, %p91
      %s94 = sadd.s32 %s93, 1
      %p97 = scmp.eq.s32.totalorder %s17, 1
      %p98 = scmp.ne.s32.totalorder %s93, %s95
      %p99 = scmp.eq.s32.totalorder %s17, 0
      %p100 = por %p98, %p99
      %p101 = scmp.ne.s32.totalorder %s93, %s95
      %p102 = scmp.eq.s32.totalorder %s22, 1
      %p103 = por %p101, %p102
      %p104 = scmp.ne.s32.totalorder %s95, %s96
      %p105 = scmp.eq.s32.totalorder %s22, 0
      %p106 = por %p104, %p105
      %p107 = scmp.ne.s32.totalorder %s95, %s96
      %p108 = scmp.eq.s32.totalorder %s23, 1
      %p109 = por %p107, %p108
      %p111 = scmp.ne.s32.totalorder %s96, %s110
      %p112 = scmp.eq.s32.totalorder %s23, 0
      %p113 = por %p111, %p112
      %s114 = ssub.s32 %s17, %s24
      %p115 = scmp.eq.s32.totalorder %s114, 0
      %s117 = sadd.s32 %s116, 1
      %s118 = scalar_select %p115, %s116, %s117
      %p121 = pneg %p115
      %p122 = scmp.eq.s32.totalorder %s17, 1
      %p123 = por %p121, %p122
      %p124 = scmp.ne.s32.totalorder %s116, %s119
      %p125 = scmp.eq.s32.totalorder %s17, 0
      %p126 = por %p124, %p125
      %p127 = scmp.ne.s32.totalorder %s116, %s119
      %p128 = scmp.eq.s32.totalorder %s22, 1
      %p129 = por %p127, %p128
      %p130 = scmp.ne.s32.totalorder %s119, %s120
      %p131 = scmp.eq.s32.totalorder %s22, 0
      %p132 = por %p130, %p131
      %p133 = scmp.ne.s32.totalorder %s119, %s120
      %p134 = scmp.eq.s32.totalorder %s23, 1
      %p135 = por %p133, %p134
      %p137 = scmp.ne.s32.totalorder %s120, %s136
      %p138 = scmp.eq.s32.totalorder %s23, 0
      %p139 = por %p137, %p138
      %p140 = scmp.le.s32.totalorder 1, %s17
      %p141 = scmp.lt.s32.totalorder %s17, 3
      %p142 = pnand %p140, %p141
      %p143 = pneg %p142
      // Predicated region
      $region9: #{tpu_custom_call.1} parent=5 // pred_check
        _
      $region10: #{tpu_custom_call.1} parent=5 // pred_check_branch
        %145 = sbr.rel (%p142) target = $region12
      $region11: #{tpu_custom_call.1} parent=5 // pred_region
        %s146 = ssub.s32 %s17, 1
        // Predicated region
        $region13: #{tpu_custom_call.1} parent=11 // pred_check
          %p147 = pneg %p64
        $region14: #{tpu_custom_call.1} parent=11 // pred_check_branch
          %149 = sbr.rel (%p147) target = $region16
        $region15: #{tpu_custom_call.1} parent=11 // pred_region
          %s151 = ssub.s32 32768, 32768
          %152 = vsyncadd [#allocation7], %s151
          %s153 = sshll.u32 [#allocation6], 4
          %s154 = int_to_ptr.vmem [resolvable:$true] %s153
          %159 = dma.hbm_to_vmem [thread:$0]  %s1, 32768, %s154, [#allocation7], 1024, 1024, 64
        $region16: #{tpu_custom_call.1} parent=11 // pred_fallthru
          _
        // Predicated region
        $region17: #{tpu_custom_call.1} parent=11 // pred_check
          %p160 = pneg %p85
        $region18: #{tpu_custom_call.1} parent=11 // pred_check_branch
          %162 = sbr.rel (%p160) target = $region20
        $region19: #{tpu_custom_call.1} parent=11 // pred_region
          _
        $region20: #{tpu_custom_call.1} parent=11 // pred_fallthru
          _
        // Predicated region
        $region21: #{tpu_custom_call.1} parent=11 // pred_check
          %p163 = pneg %p106
        $region22: #{tpu_custom_call.1} parent=11 // pred_check_branch
          %165 = sbr.rel (%p163) target = $region24
        $region23: #{tpu_custom_call.1} parent=11 // pred_region
          _
        $region24: #{tpu_custom_call.1} parent=11 // pred_fallthru
          _
      $region12: #{tpu_custom_call.1} parent=5 // pred_fallthru
        _
      %p166 = scmp.lt.s32.totalorder %s17, 2
      // Predicated region
      $region25: #{tpu_custom_call.1} parent=5 // pred_check
        %p167 = pneg %p166
      $region26: #{tpu_custom_call.1} parent=5 // pred_check_branch
        %169 = sbr.rel (%p167) target = $region28
      $region27: #{tpu_custom_call.1} parent=5 // pred_region
        // Predicated region
        $region29: #{tpu_custom_call.1} parent=27 // pred_check
          %p170 = pneg %p37
        $region30: #{tpu_custom_call.1} parent=27 // pred_check_branch
          %172 = sbr.rel (%p170) target = $region32
        $region31: #{tpu_custom_call.1} parent=27 // pred_region
          %s173 = sand.u32 %s27, 1
          %s174 = scalar_lea.sflag [#allocation4], %s173
          %s175 = sand.u32 %s27, 1
          %s176 = smul.addr %s175, 16
          %s177 = scalar_lea.vmem [#allocation3], %s176
          %s179 = ssub.s32 256, 256
          %180 = vsyncadd %s174, %s179
          %s181 = smul.addr %s17, 2
          %s182 = smul.addr %s181, 128
          %s183 = scalar_lea.hbm %s0, %s182
          %s185 = sshll.u32 %s177, 4
          %s186 = int_to_ptr.vmem [resolvable:$true] %s185
          %188 = dma.hbm_to_vmem [thread:$0]  %s183, 256, %s186, %s174
        $region32: #{tpu_custom_call.1} parent=27 // pred_fallthru
          _
      $region28: #{tpu_custom_call.1} parent=5 // pred_fallthru
        _
      %p189 = scmp.le.s32.totalorder 1, %s17
      %p190 = scmp.lt.s32.totalorder %s17, 3
      %p191 = pnand %p189, %p190
      %p192 = pneg %p191
      // Predicated region
      $region33: #{tpu_custom_call.1} parent=5 // pred_check
        _
      $region34: #{tpu_custom_call.1} parent=5 // pred_check_branch
        %194 = sbr.rel (%p191) target = $region36
      $region35: #{tpu_custom_call.1} parent=5 // pred_region
        %s195 = ssub.s32 %s17, 1
        %s196 = sand.u32 %s30, 1
        %s197 = scalar_lea.sflag [#allocation4], %s196
        %s198 = sand.u32 %s30, 1
        %s199 = smul.addr %s198, 16
        %s200 = scalar_lea.vmem [#allocation3], %s199
        // Predicated region
        $region37: #{tpu_custom_call.1} parent=35 // pred_check
          %p201 = pneg %p43
        $region38: #{tpu_custom_call.1} parent=35 // pred_check_branch
          %203 = sbr.rel (%p201) target = $region40
        $region39: #{tpu_custom_call.1} parent=35 // pred_region
          %204 = dma.done %s197, 256
        $region40: #{tpu_custom_call.1} parent=35 // pred_fallthru
          _
        // Predicated region
        $region41: #{tpu_custom_call.1} parent=35 // pred_check
          %p205 = pneg %p64
        $region42: #{tpu_custom_call.1} parent=35 // pred_check_branch
          %207 = sbr.rel (%p205) target = $region44
        $region43: #{tpu_custom_call.1} parent=35 // pred_region
          %208 = dma.done [#allocation7], 32768
        $region44: #{tpu_custom_call.1} parent=35 // pred_fallthru
          _
        %s209 = sand.u32 %s30, 1
        %s210 = scalar_lea.sflag [#allocation4], %s209
        %s211 = sand.u32 %s30, 1
        %s212 = smul.addr %s211, 16
        %s213 = scalar_lea.vmem [#allocation3], %s212
        %p214 = pneg %p43
        %p215 = pneg %p40
        %p216 = pneg %p64
        %p217 = pneg %p61
        %p218 = pneg %p85
        %p219 = pneg %p82
        %p220 = pneg %p106
        %p221 = pneg %p103
        %p222 = pneg %p132
        %p223 = pneg %p129
        %s224 = sand.u32 %s119, 1
        %s225 = scalar_lea.sflag [#allocation5], %s224
        %s226 = sand.u32 %s119, 1
        %s227 = smul.addr %s226, 64
        %s228 = scalar_lea.vmem [#allocation8], %s227
        %v229 = vld [vmem:[#allocation6] sm:$0xff]
        %v230 = vld [vmem:[#allocation6 + $0x8] sm:$0xff]
        %v231 = vld [vmem:[#allocation6 + $0x10] sm:$0xff]
        %v232 = vld [vmem:[#allocation6 + $0x18] sm:$0xff]
        %v233 = vld [vmem:[#allocation6 + $0x20] sm:$0xff]
        %v234 = vld [vmem:[#allocation6 + $0x28] sm:$0xff]
        %v235 = vld [vmem:[#allocation6 + $0x30] sm:$0xff]
        %v236 = vld [vmem:[#allocation6 + $0x38] sm:$0xff]
        %v237 = vld [vmem:[#allocation6 + $0x40] sm:$0xff]
        %v238 = vld [vmem:[#allocation6 + $0x48] sm:$0xff]
        %v239 = vld [vmem:[#allocation6 + $0x50] sm:$0xff]
        %v240 = vld [vmem:[#allocation6 + $0x58] sm:$0xff]
        %v241 = vld [vmem:[#allocation6 + $0x60] sm:$0xff]
        %v242 = vld [vmem:[#allocation6 + $0x68] sm:$0xff]
        %v243 = vld [vmem:[#allocation6 + $0x70] sm:$0xff]
        %v244 = vld [vmem:[#allocation6 + $0x78] sm:$0xff]
        %v245 = vld [vmem:[#allocation6 + $0x80] sm:$0xff]
        %v246 = vld [vmem:[#allocation6 + $0x88] sm:$0xff]
        %v247 = vld [vmem:[#allocation6 + $0x90] sm:$0xff]
        %v248 = vld [vmem:[#allocation6 + $0x98] sm:$0xff]
        %v249 = vld [vmem:[#allocation6 + $0xa0] sm:$0xff]
        %v250 = vld [vmem:[#allocation6 + $0xa8] sm:$0xff]
        %v251 = vld [vmem:[#allocation6 + $0xb0] sm:$0xff]
        %v252 = vld [vmem:[#allocation6 + $0xb8] sm:$0xff]
        %v253 = vld [vmem:[#allocation6 + $0xc0] sm:$0xff]
        %v254 = vld [vmem:[#allocation6 + $0xc8] sm:$0xff]
        %v255 = vld [vmem:[#allocation6 + $0xd0] sm:$0xff]
        %v256 = vld [vmem:[#allocation6 + $0xd8] sm:$0xff]
        %v257 = vld [vmem:[#allocation6 + $0xe0] sm:$0xff]
        %v258 = vld [vmem:[#allocation6 + $0xe8] sm:$0xff]
        %v259 = vld [vmem:[#allocation6 + $0xf0] sm:$0xff]
        %v260 = vld [vmem:[#allocation6 + $0xf8] sm:$0xff]
        %v261 = vld [vmem:[#allocation6 + $0x100] sm:$0xff]
        %v262 = vld [vmem:[#allocation6 + $0x108] sm:$0xff]
        %v263 = vld [vmem:[#allocation6 + $0x110] sm:$0xff]
        %v264 = vld [vmem:[#allocation6 + $0x118] sm:$0xff]
        %v265 = vld [vmem:[#allocation6 + $0x120] sm:$0xff]
        %v266 = vld [vmem:[#allocation6 + $0x128] sm:$0xff]
        %v267 = vld [vmem:[#allocation6 + $0x130] sm:$0xff]
        %v268 = vld [vmem:[#allocation6 + $0x138] sm:$0xff]
        %v269 = vld [vmem:[#allocation6 + $0x140] sm:$0xff]
        %v270 = vld [vmem:[#allocation6 + $0x148] sm:$0xff]
        %v271 = vld [vmem:[#allocation6 + $0x150] sm:$0xff]
        %v272 = vld [vmem:[#allocation6 + $0x158] sm:$0xff]
        %v273 = vld [vmem:[#allocation6 + $0x160] sm:$0xff]
        %v274 = vld [vmem:[#allocation6 + $0x168] sm:$0xff]
        %v275 = vld [vmem:[#allocation6 + $0x170] sm:$0xff]
        %v276 = vld [vmem:[#allocation6 + $0x178] sm:$0xff]
        %v277 = vld [vmem:[#allocation6 + $0x180] sm:$0xff]
        %v278 = vld [vmem:[#allocation6 + $0x188] sm:$0xff]
        %v279 = vld [vmem:[#allocation6 + $0x190] sm:$0xff]
        %v280 = vld [vmem:[#allocation6 + $0x198] sm:$0xff]
        %v281 = vld [vmem:[#allocation6 + $0x1a0] sm:$0xff]
        %v282 = vld [vmem:[#allocation6 + $0x1a8] sm:$0xff]
        %v283 = vld [vmem:[#allocation6 + $0x1b0] sm:$0xff]
        %v284 = vld [vmem:[#allocation6 + $0x1b8] sm:$0xff]
        %v285 = vld [vmem:[#allocation6 + $0x1c0] sm:$0xff]
        %v286 = vld [vmem:[#allocation6 + $0x1c8] sm:$0xff]
        %v287 = vld [vmem:[#allocation6 + $0x1d0] sm:$0xff]
        %v288 = vld [vmem:[#allocation6 + $0x1d8] sm:$0xff]
        %v289 = vld [vmem:[#allocation6 + $0x1e0] sm:$0xff]
        %v290 = vld [vmem:[#allocation6 + $0x1e8] sm:$0xff]
        %v291 = vld [vmem:[#allocation6 + $0x1f0] sm:$0xff]
        %v292 = vld [vmem:[#allocation6 + $0x1f8] sm:$0xff]
        %v293 = vld [vmem:[#allocation6 + $0x200] sm:$0xff]
        %v294 = vld [vmem:[#allocation6 + $0x208] sm:$0xff]
        %v295 = vld [vmem:[#allocation6 + $0x210] sm:$0xff]
        %v296 = vld [vmem:[#allocation6 + $0x218] sm:$0xff]
        %v297 = vld [vmem:[#allocation6 + $0x220] sm:$0xff]
        %v298 = vld [vmem:[#allocation6 + $0x228] sm:$0xff]
        %v299 = vld [vmem:[#allocation6 + $0x230] sm:$0xff]
        %v300 = vld [vmem:[#allocation6 + $0x238] sm:$0xff]
        %v301 = vld [vmem:[#allocation6 + $0x240] sm:$0xff]
        %v302 = vld [vmem:[#allocation6 + $0x248] sm:$0xff]
        %v303 = vld [vmem:[#allocation6 + $0x250] sm:$0xff]
        %v304 = vld [vmem:[#allocation6 + $0x258] sm:$0xff]
        %v305 = vld [vmem:[#allocation6 + $0x260] sm:$0xff]
        %v306 = vld [vmem:[#allocation6 + $0x268] sm:$0xff]
        %v307 = vld [vmem:[#allocation6 + $0x270] sm:$0xff]
        %v308 = vld [vmem:[#allocation6 + $0x278] sm:$0xff]
        %v309 = vld [vmem:[#allocation6 + $0x280] sm:$0xff]
        %v310 = vld [vmem:[#allocation6 + $0x288] sm:$0xff]
        %v311 = vld [vmem:[#allocation6 + $0x290] sm:$0xff]
        %v312 = vld [vmem:[#allocation6 + $0x298] sm:$0xff]
        %v313 = vld [vmem:[#allocation6 + $0x2a0] sm:$0xff]
        %v314 = vld [vmem:[#allocation6 + $0x2a8] sm:$0xff]
        %v315 = vld [vmem:[#allocation6 + $0x2b0] sm:$0xff]
        %v316 = vld [vmem:[#allocation6 + $0x2b8] sm:$0xff]
        %v317 = vld [vmem:[#allocation6 + $0x2c0] sm:$0xff]
        %v318 = vld [vmem:[#allocation6 + $0x2c8] sm:$0xff]
        %v319 = vld [vmem:[#allocation6 + $0x2d0] sm:$0xff]
        %v320 = vld [vmem:[#allocation6 + $0x2d8] sm:$0xff]
        %v321 = vld [vmem:[#allocation6 + $0x2e0] sm:$0xff]
        %v322 = vld [vmem:[#allocation6 + $0x2e8] sm:$0xff]
        %v323 = vld [vmem:[#allocation6 + $0x2f0] sm:$0xff]
        %v324 = vld [vmem:[#allocation6 + $0x2f8] sm:$0xff]
        %v325 = vld [vmem:[#allocation6 + $0x300] sm:$0xff]
        %v326 = vld [vmem:[#allocation6 + $0x308] sm:$0xff]
        %v327 = vld [vmem:[#allocation6 + $0x310] sm:$0xff]
        %v328 = vld [vmem:[#allocation6 + $0x318] sm:$0xff]
        %v329 = vld [vmem:[#allocation6 + $0x320] sm:$0xff]
        %v330 = vld [vmem:[#allocation6 + $0x328] sm:$0xff]
        %v331 = vld [vmem:[#allocation6 + $0x330] sm:$0xff]
        %v332 = vld [vmem:[#allocation6 + $0x338] sm:$0xff]
        %v333 = vld [vmem:[#allocation6 + $0x340] sm:$0xff]
        %v334 = vld [vmem:[#allocation6 + $0x348] sm:$0xff]
        %v335 = vld [vmem:[#allocation6 + $0x350] sm:$0xff]
        %v336 = vld [vmem:[#allocation6 + $0x358] sm:$0xff]
        %v337 = vld [vmem:[#allocation6 + $0x360] sm:$0xff]
        %v338 = vld [vmem:[#allocation6 + $0x368] sm:$0xff]
        %v339 = vld [vmem:[#allocation6 + $0x370] sm:$0xff]
        %v340 = vld [vmem:[#allocation6 + $0x378] sm:$0xff]
        %v341 = vld [vmem:[#allocation6 + $0x380] sm:$0xff]
        %v342 = vld [vmem:[#allocation6 + $0x388] sm:$0xff]
        %v343 = vld [vmem:[#allocation6 + $0x390] sm:$0xff]
        %v344 = vld [vmem:[#allocation6 + $0x398] sm:$0xff]
        %v345 = vld [vmem:[#allocation6 + $0x3a0] sm:$0xff]
        %v346 = vld [vmem:[#allocation6 + $0x3a8] sm:$0xff]
        %v347 = vld [vmem:[#allocation6 + $0x3b0] sm:$0xff]
        %v348 = vld [vmem:[#allocation6 + $0x3b8] sm:$0xff]
        %v349 = vld [vmem:[#allocation6 + $0x3c0] sm:$0xff]
        %v350 = vld [vmem:[#allocation6 + $0x3c8] sm:$0xff]
        %v351 = vld [vmem:[#allocation6 + $0x3d0] sm:$0xff]
        %v352 = vld [vmem:[#allocation6 + $0x3d8] sm:$0xff]
        %v353 = vld [vmem:[#allocation6 + $0x3e0] sm:$0xff]
        %v354 = vld [vmem:[#allocation6 + $0x3e8] sm:$0xff]
        %v355 = vld [vmem:[#allocation6 + $0x3f0] sm:$0xff]
        %v356 = vld [vmem:[#allocation6 + $0x3f8] sm:$0xff]
        %v357 = vld [vmem:[#allocation6 + $0x400] sm:$0xff]
        %v358 = vld [vmem:[#allocation6 + $0x408] sm:$0xff]
        %v359 = vld [vmem:[#allocation6 + $0x410] sm:$0xff]
        %v360 = vld [vmem:[#allocation6 + $0x418] sm:$0xff]
        %v361 = vld [vmem:[#allocation6 + $0x420] sm:$0xff]
        %v362 = vld [vmem:[#allocation6 + $0x428] sm:$0xff]
        %v363 = vld [vmem:[#allocation6 + $0x430] sm:$0xff]
        %v364 = vld [vmem:[#allocation6 + $0x438] sm:$0xff]
        %v365 = vld [vmem:[#allocation6 + $0x440] sm:$0xff]
        %v366 = vld [vmem:[#allocation6 + $0x448] sm:$0xff]
        %v367 = vld [vmem:[#allocation6 + $0x450] sm:$0xff]
        %v368 = vld [vmem:[#allocation6 + $0x458] sm:$0xff]
        %v369 = vld [vmem:[#allocation6 + $0x460] sm:$0xff]
        %v370 = vld [vmem:[#allocation6 + $0x468] sm:$0xff]
        %v371 = vld [vmem:[#allocation6 + $0x470] sm:$0xff]
        %v372 = vld [vmem:[#allocation6 + $0x478] sm:$0xff]
        %v373 = vld [vmem:[#allocation6 + $0x480] sm:$0xff]
        %v374 = vld [vmem:[#allocation6 + $0x488] sm:$0xff]
        %v375 = vld [vmem:[#allocation6 + $0x490] sm:$0xff]
        %v376 = vld [vmem:[#allocation6 + $0x498] sm:$0xff]
        %v377 = vld [vmem:[#allocation6 + $0x4a0] sm:$0xff]
        %v378 = vld [vmem:[#allocation6 + $0x4a8] sm:$0xff]
        %v379 = vld [vmem:[#allocation6 + $0x4b0] sm:$0xff]
        %v380 = vld [vmem:[#allocation6 + $0x4b8] sm:$0xff]
        %v381 = vld [vmem:[#allocation6 + $0x4c0] sm:$0xff]
        %v382 = vld [vmem:[#allocation6 + $0x4c8] sm:$0xff]
        %v383 = vld [vmem:[#allocation6 + $0x4d0] sm:$0xff]
        %v384 = vld [vmem:[#allocation6 + $0x4d8] sm:$0xff]
        %v385 = vld [vmem:[#allocation6 + $0x4e0] sm:$0xff]
        %v386 = vld [vmem:[#allocation6 + $0x4e8] sm:$0xff]
        %v387 = vld [vmem:[#allocation6 + $0x4f0] sm:$0xff]
        %v388 = vld [vmem:[#allocation6 + $0x4f8] sm:$0xff]
        %v389 = vld [vmem:[#allocation6 + $0x500] sm:$0xff]
        %v390 = vld [vmem:[#allocation6 + $0x508] sm:$0xff]
        %v391 = vld [vmem:[#allocation6 + $0x510] sm:$0xff]
        %v392 = vld [vmem:[#allocation6 + $0x518] sm:$0xff]
        %v393 = vld [vmem:[#allocation6 + $0x520] sm:$0xff]
        %v394 = vld [vmem:[#allocation6 + $0x528] sm:$0xff]
        %v395 = vld [vmem:[#allocation6 + $0x530] sm:$0xff]
        %v396 = vld [vmem:[#allocation6 + $0x538] sm:$0xff]
        %v397 = vld [vmem:[#allocation6 + $0x540] sm:$0xff]
        %v398 = vld [vmem:[#allocation6 + $0x548] sm:$0xff]
        %v399 = vld [vmem:[#allocation6 + $0x550] sm:$0xff]
        %v400 = vld [vmem:[#allocation6 + $0x558] sm:$0xff]
        %v401 = vld [vmem:[#allocation6 + $0x560] sm:$0xff]
        %v402 = vld [vmem:[#allocation6 + $0x568] sm:$0xff]
        %v403 = vld [vmem:[#allocation6 + $0x570] sm:$0xff]
        %v404 = vld [vmem:[#allocation6 + $0x578] sm:$0xff]
        %v405 = vld [vmem:[#allocation6 + $0x580] sm:$0xff]
        %v406 = vld [vmem:[#allocation6 + $0x588] sm:$0xff]
        %v407 = vld [vmem:[#allocation6 + $0x590] sm:$0xff]
        %v408 = vld [vmem:[#allocation6 + $0x598] sm:$0xff]
        %v409 = vld [vmem:[#allocation6 + $0x5a0] sm:$0xff]
        %v410 = vld [vmem:[#allocation6 + $0x5a8] sm:$0xff]
        %v411 = vld [vmem:[#allocation6 + $0x5b0] sm:$0xff]
        %v412 = vld [vmem:[#allocation6 + $0x5b8] sm:$0xff]
        %v413 = vld [vmem:[#allocation6 + $0x5c0] sm:$0xff]
        %v414 = vld [vmem:[#allocation6 + $0x5c8] sm:$0xff]
        %v415 = vld [vmem:[#allocation6 + $0x5d0] sm:$0xff]
        %v416 = vld [vmem:[#allocation6 + $0x5d8] sm:$0xff]
        %v417 = vld [vmem:[#allocation6 + $0x5e0] sm:$0xff]
        %v418 = vld [vmem:[#allocation6 + $0x5e8] sm:$0xff]
        %v419 = vld [vmem:[#allocation6 + $0x5f0] sm:$0xff]
        %v420 = vld [vmem:[#allocation6 + $0x5f8] sm:$0xff]
        %v421 = vld [vmem:[#allocation6 + $0x600] sm:$0xff]
        %v422 = vld [vmem:[#allocation6 + $0x608] sm:$0xff]
        %v423 = vld [vmem:[#allocation6 + $0x610] sm:$0xff]
        %v424 = vld [vmem:[#allocation6 + $0x618] sm:$0xff]
        %v425 = vld [vmem:[#allocation6 + $0x620] sm:$0xff]
        %v426 = vld [vmem:[#allocation6 + $0x628] sm:$0xff]
        %v427 = vld [vmem:[#allocation6 + $0x630] sm:$0xff]
        %v428 = vld [vmem:[#allocation6 + $0x638] sm:$0xff]
        %v429 = vld [vmem:[#allocation6 + $0x640] sm:$0xff]
        %v430 = vld [vmem:[#allocation6 + $0x648] sm:$0xff]
        %v431 = vld [vmem:[#allocation6 + $0x650] sm:$0xff]
        %v432 = vld [vmem:[#allocation6 + $0x658] sm:$0xff]
        %v433 = vld [vmem:[#allocation6 + $0x660] sm:$0xff]
        %v434 = vld [vmem:[#allocation6 + $0x668] sm:$0xff]
        %v435 = vld [vmem:[#allocation6 + $0x670] sm:$0xff]
        %v436 = vld [vmem:[#allocation6 + $0x678] sm:$0xff]
        %v437 = vld [vmem:[#allocation6 + $0x680] sm:$0xff]
        %v438 = vld [vmem:[#allocation6 + $0x688] sm:$0xff]
        %v439 = vld [vmem:[#allocation6 + $0x690] sm:$0xff]
        %v440 = vld [vmem:[#allocation6 + $0x698] sm:$0xff]
        %v441 = vld [vmem:[#allocation6 + $0x6a0] sm:$0xff]
        %v442 = vld [vmem:[#allocation6 + $0x6a8] sm:$0xff]
        %v443 = vld [vmem:[#allocation6 + $0x6b0] sm:$0xff]
        %v444 = vld [vmem:[#allocation6 + $0x6b8] sm:$0xff]
        %v445 = vld [vmem:[#allocation6 + $0x6c0] sm:$0xff]
        %v446 = vld [vmem:[#allocation6 + $0x6c8] sm:$0xff]
        %v447 = vld [vmem:[#allocation6 + $0x6d0] sm:$0xff]
        %v448 = vld [vmem:[#allocation6 + $0x6d8] sm:$0xff]
        %v449 = vld [vmem:[#allocation6 + $0x6e0] sm:$0xff]
        %v450 = vld [vmem:[#allocation6 + $0x6e8] sm:$0xff]
        %v451 = vld [vmem:[#allocation6 + $0x6f0] sm:$0xff]
        %v452 = vld [vmem:[#allocation6 + $0x6f8] sm:$0xff]
        %v453 = vld [vmem:[#allocation6 + $0x700] sm:$0xff]
        %v454 = vld [vmem:[#allocation6 + $0x708] sm:$0xff]
        %v455 = vld [vmem:[#allocation6 + $0x710] sm:$0xff]
        %v456 = vld [vmem:[#allocation6 + $0x718] sm:$0xff]
        %v457 = vld [vmem:[#allocation6 + $0x720] sm:$0xff]
        %v458 = vld [vmem:[#allocation6 + $0x728] sm:$0xff]
        %v459 = vld [vmem:[#allocation6 + $0x730] sm:$0xff]
        %v460 = vld [vmem:[#allocation6 + $0x738] sm:$0xff]
        %v461 = vld [vmem:[#allocation6 + $0x740] sm:$0xff]
        %v462 = vld [vmem:[#allocation6 + $0x748] sm:$0xff]
        %v463 = vld [vmem:[#allocation6 + $0x750] sm:$0xff]
        %v464 = vld [vmem:[#allocation6 + $0x758] sm:$0xff]
        %v465 = vld [vmem:[#allocation6 + $0x760] sm:$0xff]
        %v466 = vld [vmem:[#allocation6 + $0x768] sm:$0xff]
        %v467 = vld [vmem:[#allocation6 + $0x770] sm:$0xff]
        %v468 = vld [vmem:[#allocation6 + $0x778] sm:$0xff]
        %v469 = vld [vmem:[#allocation6 + $0x780] sm:$0xff]
        %v470 = vld [vmem:[#allocation6 + $0x788] sm:$0xff]
        %v471 = vld [vmem:[#allocation6 + $0x790] sm:$0xff]
        %v472 = vld [vmem:[#allocation6 + $0x798] sm:$0xff]
        %v473 = vld [vmem:[#allocation6 + $0x7a0] sm:$0xff]
        %v474 = vld [vmem:[#allocation6 + $0x7a8] sm:$0xff]
        %v475 = vld [vmem:[#allocation6 + $0x7b0] sm:$0xff]
        %v476 = vld [vmem:[#allocation6 + $0x7b8] sm:$0xff]
        %v477 = vld [vmem:[#allocation6 + $0x7c0] sm:$0xff]
        %v478 = vld [vmem:[#allocation6 + $0x7c8] sm:$0xff]
        %v479 = vld [vmem:[#allocation6 + $0x7d0] sm:$0xff]
        %v480 = vld [vmem:[#allocation6 + $0x7d8] sm:$0xff]
        %v481 = vld [vmem:[#allocation6 + $0x7e0] sm:$0xff]
        %v482 = vld [vmem:[#allocation6 + $0x7e8] sm:$0xff]
        %v483 = vld [vmem:[#allocation6 + $0x7f0] sm:$0xff]
        %v484 = vld [vmem:[#allocation6 + $0x7f8] sm:$0xff]
        %v485 = vld [vmem:[%s2] sm:$0xff]
        %v486 = vld [vmem:[%s3] sm:$0xff]
        %v487 = vld [vmem:[%s200] sm:$0xff]
        %v488 = vld [vmem:[%s200 + $0x8] sm:$0xff]
        %489 = vmatprep.subr.mxu0 %v230
        %490 = vmatpush1.msra.mxu0 %v229
        %491 = vmatprep.subr.mxu0 %v238
        %492 = vmatpush1.msra.mxu0 %v237
        %493 = vmatprep.subr.mxu0 %v246
        %494 = vmatpush1.msra.mxu0 %v245
        %495 = vmatprep.subr.mxu0 %v254
        %496 = vmatpush1.msra.mxu0 %v253
        %497 = vmatprep.subr.mxu0 %v262
        %498 = vmatpush1.msra.mxu0 %v261
        %499 = vmatprep.subr.mxu0 %v270
        %500 = vmatpush1.msra.mxu0 %v269
        %501 = vmatprep.subr.mxu0 %v278
        %502 = vmatpush1.msra.mxu0 %v277
        %503 = vmatprep.subr.mxu0 %v286
        %504 = vmatpush1.msra.mxu0 %v285
        %505 = vmatprep.subr.mxu0 %v294
        %506 = vmatpush1.msra.mxu0 %v293
        %507 = vmatprep.subr.mxu0 %v302
        %508 = vmatpush1.msra.mxu0 %v301
        %509 = vmatprep.subr.mxu0 %v310
        %510 = vmatpush1.msra.mxu0 %v309
        %511 = vmatprep.subr.mxu0 %v318
        %512 = vmatpush1.msra.mxu0 %v317
        %513 = vmatprep.subr.mxu0 %v326
        %514 = vmatpush1.msra.mxu0 %v325
        %515 = vmatprep.subr.mxu0 %v334
        %516 = vmatpush1.msra.mxu0 %v333
        %517 = vmatprep.subr.mxu0 %v342
        %518 = vmatpush1.msra.mxu0 %v341
        %519 = vmatprep.subr.mxu0 %v350
        %520 = vmatpush1.msra.mxu0 %v349
        %521 = vmatprep.subr.mxu0 %v358
        %522 = vmatpush1.msra.mxu0 %v357
        %523 = vmatprep.subr.mxu0 %v366
        %524 = vmatpush1.msra.mxu0 %v365
        %525 = vmatprep.subr.mxu0 %v374
        %526 = vmatpush1.msra.mxu0 %v373
        %527 = vmatprep.subr.mxu0 %v382
        %528 = vmatpush1.msra.mxu0 %v381
        %529 = vmatprep.subr.mxu0 %v390
        %530 = vmatpush1.msra.mxu0 %v389
        %531 = vmatprep.subr.mxu0 %v398
        %532 = vmatpush1.msra.mxu0 %v397
        %533 = vmatprep.subr.mxu0 %v406
        %534 = vmatpush1.msra.mxu0 %v405
        %535 = vmatprep.subr.mxu0 %v414
        %536 = vmatpush1.msra.mxu0 %v413
        %537 = vmatprep.subr.mxu0 %v422
        %538 = vmatpush1.msra.mxu0 %v421
        %539 = vmatprep.subr.mxu0 %v430
        %540 = vmatpush1.msra.mxu0 %v429
        %541 = vmatprep.subr.mxu0 %v438
        %542 = vmatpush1.msra.mxu0 %v437
        %543 = vmatprep.subr.mxu0 %v446
        %544 = vmatpush1.msra.mxu0 %v445
        %545 = vmatprep.subr.mxu0 %v454
        %546 = vmatpush1.msra.mxu0 %v453
        %547 = vmatprep.subr.mxu0 %v462
        %548 = vmatpush1.msra.mxu0 %v461
        %549 = vmatprep.subr.mxu0 %v470
        %550 = vmatpush1.msra.mxu0 %v469
        %551 = vmatprep.subr.mxu0 %v478
        %552 = vmatpush1.msra.mxu0 %v477
        %553 = vmatprep.mubr.f32.mxu0 %v488
        %554 = vmatmul.mubr.f32.gmra.mrb[0].mxu0 %v487
        %v555 = vpop.f32.mrb[0].mxu0
        %v556 = vadd.f32 0.0, %v555
        %v557 = vpop.f32.mrb[0].mxu0
        %v558 = vadd.f32 0.0, %v557
        %559 = vdwg.mxu0
        %560 = vmatprep.subr.mxu0 %v232
        %561 = vmatpush1.msra.mxu0 %v231
        %562 = vmatprep.subr.mxu0 %v240
        %563 = vmatpush1.msra.mxu0 %v239
        %564 = vmatprep.subr.mxu0 %v248
        %565 = vmatpush1.msra.mxu0 %v247
        %566 = vmatprep.subr.mxu0 %v256
        %567 = vmatpush1.msra.mxu0 %v255
        %568 = vmatprep.subr.mxu0 %v264
        %569 = vmatpush1.msra.mxu0 %v263
        %570 = vmatprep.subr.mxu0 %v272
        %571 = vmatpush1.msra.mxu0 %v271
        %572 = vmatprep.subr.mxu0 %v280
        %573 = vmatpush1.msra.mxu0 %v279
        %574 = vmatprep.subr.mxu0 %v288
        %575 = vmatpush1.msra.mxu0 %v287
        %576 = vmatprep.subr.mxu0 %v296
        %577 = vmatpush1.msra.mxu0 %v295
        %578 = vmatprep.subr.mxu0 %v304
        %579 = vmatpush1.msra.mxu0 %v303
        %580 = vmatprep.subr.mxu0 %v312
        %581 = vmatpush1.msra.mxu0 %v311
        %582 = vmatprep.subr.mxu0 %v320
        %583 = vmatpush1.msra.mxu0 %v319
        %584 = vmatprep.subr.mxu0 %v328
        %585 = vmatpush1.msra.mxu0 %v327
        %586 = vmatprep.subr.mxu0 %v336
        %587 = vmatpush1.msra.mxu0 %v335
        %588 = vmatprep.subr.mxu0 %v344
        %589 = vmatpush1.msra.mxu0 %v343
        %590 = vmatprep.subr.mxu0 %v352
        %591 = vmatpush1.msra.mxu0 %v351
        %592 = vmatprep.subr.mxu0 %v360
        %593 = vmatpush1.msra.mxu0 %v359
        %594 = vmatprep.subr.mxu0 %v368
        %595 = vmatpush1.msra.mxu0 %v367
        %596 = vmatprep.subr.mxu0 %v376
        %597 = vmatpush1.msra.mxu0 %v375
        %598 = vmatprep.subr.mxu0 %v384
        %599 = vmatpush1.msra.mxu0 %v383
        %600 = vmatprep.subr.mxu0 %v392
        %601 = vmatpush1.msra.mxu0 %v391
        %602 = vmatprep.subr.mxu0 %v400
        %603 = vmatpush1.msra.mxu0 %v399
        %604 = vmatprep.subr.mxu0 %v408
        %605 = vmatpush1.msra.mxu0 %v407
        %606 = vmatprep.subr.mxu0 %v416
        %607 = vmatpush1.msra.mxu0 %v415
        %608 = vmatprep.subr.mxu0 %v424
        %609 = vmatpush1.msra.mxu0 %v423
        %610 = vmatprep.subr.mxu0 %v432
        %611 = vmatpush1.msra.mxu0 %v431
        %612 = vmatprep.subr.mxu0 %v440
        %613 = vmatpush1.msra.mxu0 %v439
        %614 = vmatprep.subr.mxu0 %v448
        %615 = vmatpush1.msra.mxu0 %v447
        %616 = vmatprep.subr.mxu0 %v456
        %617 = vmatpush1.msra.mxu0 %v455
        %618 = vmatprep.subr.mxu0 %v464
        %619 = vmatpush1.msra.mxu0 %v463
        %620 = vmatprep.subr.mxu0 %v472
        %621 = vmatpush1.msra.mxu0 %v471
        %622 = vmatprep.subr.mxu0 %v480
        %623 = vmatpush1.msra.mxu0 %v479
        %624 = vmatprep.mubr.f32.mxu0 %v488
        %625 = vmatmul.mubr.f32.gmra.mrb[0].mxu0 %v487
        %v626 = vpop.f32.mrb[0].mxu0
        %v627 = vadd.f32 0.0, %v626
        %v628 = vpop.f32.mrb[0].mxu0
        %v629 = vadd.f32 0.0, %v628
        %630 = vdwg.mxu0
        %631 = vmatprep.subr.mxu0 %v234
        %632 = vmatpush1.msra.mxu0 %v233
        %633 = vmatprep.subr.mxu0 %v242
        %634 = vmatpush1.msra.mxu0 %v241
        %635 = vmatprep.subr.mxu0 %v250
        %636 = vmatpush1.msra.mxu0 %v249
        %637 = vmatprep.subr.mxu0 %v258
        %638 = vmatpush1.msra.mxu0 %v257
        %639 = vmatprep.subr.mxu0 %v266
        %640 = vmatpush1.msra.mxu0 %v265
        %641 = vmatprep.subr.mxu0 %v274
        %642 = vmatpush1.msra.mxu0 %v273
        %643 = vmatprep.subr.mxu0 %v282
        %644 = vmatpush1.msra.mxu0 %v281
        %645 = vmatprep.subr.mxu0 %v290
        %646 = vmatpush1.msra.mxu0 %v289
        %647 = vmatprep.subr.mxu0 %v298
        %648 = vmatpush1.msra.mxu0 %v297
        %649 = vmatprep.subr.mxu0 %v306
        %650 = vmatpush1.msra.mxu0 %v305
        %651 = vmatprep.subr.mxu0 %v314
        %652 = vmatpush1.msra.mxu0 %v313
        %653 = vmatprep.subr.mxu0 %v322
        %654 = vmatpush1.msra.mxu0 %v321
        %655 = vmatprep.subr.mxu0 %v330
        %656 = vmatpush1.msra.mxu0 %v329
        %657 = vmatprep.subr.mxu0 %v338
        %658 = vmatpush1.msra.mxu0 %v337
        %659 = vmatprep.subr.mxu0 %v346
        %660 = vmatpush1.msra.mxu0 %v345
        %661 = vmatprep.subr.mxu0 %v354
        %662 = vmatpush1.msra.mxu0 %v353
        %663 = vmatprep.subr.mxu0 %v362
        %664 = vmatpush1.msra.mxu0 %v361
        %665 = vmatprep.subr.mxu0 %v370
        %666 = vmatpush1.msra.mxu0 %v369
        %667 = vmatprep.subr.mxu0 %v378
        %668 = vmatpush1.msra.mxu0 %v377
        %669 = vmatprep.subr.mxu0 %v386
        %670 = vmatpush1.msra.mxu0 %v385
        %671 = vmatprep.subr.mxu0 %v394
        %672 = vmatpush1.msra.mxu0 %v393
        %673 = vmatprep.subr.mxu0 %v402
        %674 = vmatpush1.msra.mxu0 %v401
        %675 = vmatprep.subr.mxu0 %v410
        %676 = vmatpush1.msra.mxu0 %v409
        %677 = vmatprep.subr.mxu0 %v418
        %678 = vmatpush1.msra.mxu0 %v417
        %679 = vmatprep.subr.mxu0 %v426
        %680 = vmatpush1.msra.mxu0 %v425
        %681 = vmatprep.subr.mxu0 %v434
        %682 = vmatpush1.msra.mxu0 %v433
        %683 = vmatprep.subr.mxu0 %v442
        %684 = vmatpush1.msra.mxu0 %v441
        %685 = vmatprep.subr.mxu0 %v450
        %686 = vmatpush1.msra.mxu0 %v449
        %687 = vmatprep.subr.mxu0 %v458
        %688 = vmatpush1.msra.mxu0 %v457
        %689 = vmatprep.subr.mxu0 %v466
        %690 = vmatpush1.msra.mxu0 %v465
        %691 = vmatprep.subr.mxu0 %v474
        %692 = vmatpush1.msra.mxu0 %v473
        %693 = vmatprep.subr.mxu0 %v482
        %694 = vmatpush1.msra.mxu0 %v481
        %695 = vmatprep.mubr.f32.mxu0 %v488
        %696 = vmatmul.mubr.f32.gmra.mrb[0].mxu0 %v487
        %v697 = vpop.f32.mrb[0].mxu0
        %v698 = vadd.f32 0.0, %v697
        %v699 = vpop.f32.mrb[0].mxu0
        %v700 = vadd.f32 0.0, %v699
        %701 = vdwg.mxu0
        %702 = vmatprep.subr.mxu0 %v236
        %703 = vmatpush1.msra.mxu0 %v235
        %704 = vmatprep.subr.mxu0 %v244
        %705 = vmatpush1.msra.mxu0 %v243
        %706 = vmatprep.subr.mxu0 %v252
        %707 = vmatpush1.msra.mxu0 %v251
        %708 = vmatprep.subr.mxu0 %v260
        %709 = vmatpush1.msra.mxu0 %v259
        %710 = vmatprep.subr.mxu0 %v268
        %711 = vmatpush1.msra.mxu0 %v267
        %712 = vmatprep.subr.mxu0 %v276
        %713 = vmatpush1.msra.mxu0 %v275
        %714 = vmatprep.subr.mxu0 %v284
        %715 = vmatpush1.msra.mxu0 %v283
        %716 = vmatprep.subr.mxu0 %v292
        %717 = vmatpush1.msra.mxu0 %v291
        %718 = vmatprep.subr.mxu0 %v300
        %719 = vmatpush1.msra.mxu0 %v299
        %720 = vmatprep.subr.mxu0 %v308
        %721 = vmatpush1.msra.mxu0 %v307
        %722 = vmatprep.subr.mxu0 %v316
        %723 = vmatpush1.msra.mxu0 %v315
        %724 = vmatprep.subr.mxu0 %v324
        %725 = vmatpush1.msra.mxu0 %v323
        %726 = vmatprep.subr.mxu0 %v332
        %727 = vmatpush1.msra.mxu0 %v331
        %728 = vmatprep.subr.mxu0 %v340
        %729 = vmatpush1.msra.mxu0 %v339
        %730 = vmatprep.subr.mxu0 %v348
        %731 = vmatpush1.msra.mxu0 %v347
        %732 = vmatprep.subr.mxu0 %v356
        %733 = vmatpush1.msra.mxu0 %v355
        %734 = vmatprep.subr.mxu0 %v364
        %735 = vmatpush1.msra.mxu0 %v363
        %736 = vmatprep.subr.mxu0 %v372
        %737 = vmatpush1.msra.mxu0 %v371
        %738 = vmatprep.subr.mxu0 %v380
        %739 = vmatpush1.msra.mxu0 %v379
        %740 = vmatprep.subr.mxu0 %v388
        %741 = vmatpush1.msra.mxu0 %v387
        %742 = vmatprep.subr.mxu0 %v396
        %743 = vmatpush1.msra.mxu0 %v395
        %744 = vmatprep.subr.mxu0 %v404
        %745 = vmatpush1.msra.mxu0 %v403
        %746 = vmatprep.subr.mxu0 %v412
        %747 = vmatpush1.msra.mxu0 %v411
        %748 = vmatprep.subr.mxu0 %v420
        %749 = vmatpush1.msra.mxu0 %v419
        %750 = vmatprep.subr.mxu0 %v428
        %751 = vmatpush1.msra.mxu0 %v427
        %752 = vmatprep.subr.mxu0 %v436
        %753 = vmatpush1.msra.mxu0 %v435
        %754 = vmatprep.subr.mxu0 %v444
        %755 = vmatpush1.msra.mxu0 %v443
        %756 = vmatprep.subr.mxu0 %v452
        %757 = vmatpush1.msra.mxu0 %v451
        %758 = vmatprep.subr.mxu0 %v460
        %759 = vmatpush1.msra.mxu0 %v459
        %760 = vmatprep.subr.mxu0 %v468
        %761 = vmatpush1.msra.mxu0 %v467
        %762 = vmatprep.subr.mxu0 %v476
        %763 = vmatpush1.msra.mxu0 %v475
        %764 = vmatprep.subr.mxu0 %v484
        %765 = vmatpush1.msra.mxu0 %v483
        %766 = vmatprep.mubr.f32.mxu0 %v488
        %767 = vmatmul.mubr.f32.gmra.mrb[0].mxu0 %v487
        %v768 = vpop.f32.mrb[0].mxu0
        %v769 = vadd.f32 0.0, %v768
        %v770 = vpop.f32.mrb[0].mxu0
        %v771 = vadd.f32 0.0, %v770
        %772 = vdwg.mxu0
        %773 = vst [vmem:[#allocation2] sm:$0xff] %v556
        %774 = vst [vmem:[#allocation2 + $0x8] sm:$0xff] %v558
        %775 = vst [vmem:[#allocation2 + $0x10] sm:$0xff] %v627
        %776 = vst [vmem:[#allocation2 + $0x18] sm:$0xff] %v629
        %777 = vst [vmem:[#allocation2 + $0x20] sm:$0xff] %v698
        %778 = vst [vmem:[#allocation2 + $0x28] sm:$0xff] %v700
        %779 = vst [vmem:[#allocation2 + $0x30] sm:$0xff] %v769
        %780 = vst [vmem:[#allocation2 + $0x38] sm:$0xff] %v771
        %781 = vrot.lane.b32.xlu0 %v556, 127
        %v782 = vpop.permute.xlu0 %781
        %783 = vrot.lane.b32.xlu0 %v558, 127
        %v784 = vpop.permute.xlu0 %783
        %785 = vrot.lane.b32.xlu0 %v627, 127
        %v786 = vpop.permute.xlu0 %785
        %787 = vrot.lane.b32.xlu0 %v629, 127
        %v788 = vpop.permute.xlu0 %787
        %789 = vrot.lane.b32.xlu0 %v698, 127
        %v790 = vpop.permute.xlu0 %789
        %791 = vrot.lane.b32.xlu0 %v700, 127
        %v792 = vpop.permute.xlu0 %791
        %793 = vrot.lane.b32.xlu0 %v769, 127
        %v794 = vpop.permute.xlu0 %793
        %795 = vrot.lane.b32.xlu0 %v771, 127
        %v796 = vpop.permute.xlu0 %795
        %v797 = vlaneseq
        %v798 = vand.u32 %v797, 127
        %vm799 = vcmp.lt.s32.totalorder %v798, 127
        %v800 = vsel %vm799, %v794, %v796
        %v801 = vsel %vm799, %v792, %v794
        %v802 = vsel %vm799, %v790, %v792
        %v803 = vsel %vm799, %v788, %v790
        %v804 = vsel %vm799, %v786, %v788
        %v805 = vsel %vm799, %v784, %v786
        %v806 = vsel %vm799, %v782, %v784
        %v807 = vsel %vm799, %v796, %v782
        %808 = vst [vmem:[#allocation2 + $0x40] sm:$0xff] %v806
        %809 = vst [vmem:[#allocation2 + $0x48] sm:$0xff] %v805
        %810 = vst [vmem:[#allocation2 + $0x50] sm:$0xff] %v804
        %811 = vst [vmem:[#allocation2 + $0x58] sm:$0xff] %v803
        %812 = vst [vmem:[#allocation2 + $0x60] sm:$0xff] %v802
        %813 = vst [vmem:[#allocation2 + $0x68] sm:$0xff] %v801
        %814 = vst [vmem:[#allocation2 + $0x70] sm:$0xff] %v800
        %815 = vst [vmem:[#allocation2 + $0x78] sm:$0xff] %v807
        %816 = vrot.lane.b32.xlu0 %v556, 126
        %v817 = vpop.permute.xlu0 %816
        %818 = vrot.lane.b32.xlu0 %v558, 126
        %v819 = vpop.permute.xlu0 %818
        %820 = vrot.lane.b32.xlu0 %v627, 126
        %v821 = vpop.permute.xlu0 %820
        %822 = vrot.lane.b32.xlu0 %v629, 126
        %v823 = vpop.permute.xlu0 %822
        %824 = vrot.lane.b32.xlu0 %v698, 126
        %v825 = vpop.permute.xlu0 %824
        %826 = vrot.lane.b32.xlu0 %v700, 126
        %v827 = vpop.permute.xlu0 %826
        %828 = vrot.lane.b32.xlu0 %v769, 126
        %v829 = vpop.permute.xlu0 %828
        %830 = vrot.lane.b32.xlu0 %v771, 126
        %v831 = vpop.permute.xlu0 %830
        %vm832 = vcmp.lt.s32.totalorder %v798, 126
        %v833 = vsel %vm832, %v829, %v831
        %v834 = vsel %vm832, %v827, %v829
        %v835 = vsel %vm832, %v825, %v827
        %v836 = vsel %vm832, %v823, %v825
        %v837 = vsel %vm832, %v821, %v823
        %v838 = vsel %vm832, %v819, %v821
        %v839 = vsel %vm832, %v817, %v819
        %v840 = vsel %vm832, %v831, %v817
        %841 = vst [vmem:[#allocation2 + $0x80] sm:$0xff] %v839
        %842 = vst [vmem:[#allocation2 + $0x88] sm:$0xff] %v838
        %843 = vst [vmem:[#allocation2 + $0x90] sm:$0xff] %v837
        %844 = vst [vmem:[#allocation2 + $0x98] sm:$0xff] %v836
        %845 = vst [vmem:[#allocation2 + $0xa0] sm:$0xff] %v835
        %846 = vst [vmem:[#allocation2 + $0xa8] sm:$0xff] %v834
        %847 = vst [vmem:[#allocation2 + $0xb0] sm:$0xff] %v833
        %848 = vst [vmem:[#allocation2 + $0xb8] sm:$0xff] %v840
        %849 = vrot.lane.b32.xlu0 %v556, 96
        %v850 = vpop.permute.xlu0 %849
        %851 = vrot.lane.b32.xlu0 %v558, 96
        %v852 = vpop.permute.xlu0 %851
        %853 = vrot.lane.b32.xlu0 %v627, 96
        %v854 = vpop.permute.xlu0 %853
        %855 = vrot.lane.b32.xlu0 %v629, 96
        %v856 = vpop.permute.xlu0 %855
        %857 = vrot.lane.b32.xlu0 %v698, 96
        %v858 = vpop.permute.xlu0 %857
        %859 = vrot.lane.b32.xlu0 %v700, 96
        %v860 = vpop.permute.xlu0 %859
        %861 = vrot.lane.b32.xlu0 %v769, 96
        %v862 = vpop.permute.xlu0 %861
        %863 = vrot.lane.b32.xlu0 %v771, 96
        %v864 = vpop.permute.xlu0 %863
        %vm865 = vcmp.lt.s32.totalorder %v798, 96
        %v866 = vsel %vm865, %v862, %v864
        %v867 = vsel %vm865, %v860, %v862
        %v868 = vsel %vm865, %v858, %v860
        %v869 = vsel %vm865, %v856, %v858
        %v870 = vsel %vm865, %v854, %v856
        %v871 = vsel %vm865, %v852, %v854
        %v872 = vsel %vm865, %v850, %v852
        %v873 = vsel %vm865, %v864, %v850
        %874 = vst [vmem:[#allocation2 + $0xc0] sm:$0xff] %v872
        %875 = vst [vmem:[#allocation2 + $0xc8] sm:$0xff] %v871
        %876 = vst [vmem:[#allocation2 + $0xd0] sm:$0xff] %v870
        %877 = vst [vmem:[#allocation2 + $0xd8] sm:$0xff] %v869
        %878 = vst [vmem:[#allocation2 + $0xe0] sm:$0xff] %v868
        %879 = vst [vmem:[#allocation2 + $0xe8] sm:$0xff] %v867
        %880 = vst [vmem:[#allocation2 + $0xf0] sm:$0xff] %v866
        %881 = vst [vmem:[#allocation2 + $0xf8] sm:$0xff] %v873
        %882 = vrot.lane.b32.xlu0 %v556, 95
        %v883 = vpop.permute.xlu0 %882
        %884 = vrot.lane.b32.xlu0 %v558, 95
        %v885 = vpop.permute.xlu0 %884
        %886 = vrot.lane.b32.xlu0 %v627, 95
        %v887 = vpop.permute.xlu0 %886
        %888 = vrot.lane.b32.xlu0 %v629, 95
        %v889 = vpop.permute.xlu0 %888
        %890 = vrot.lane.b32.xlu0 %v698, 95
        %v891 = vpop.permute.xlu0 %890
        %892 = vrot.lane.b32.xlu0 %v700, 95
        %v893 = vpop.permute.xlu0 %892
        %894 = vrot.lane.b32.xlu0 %v769, 95
        %v895 = vpop.permute.xlu0 %894
        %896 = vrot.lane.b32.xlu0 %v771, 95
        %v897 = vpop.permute.xlu0 %896
        %vm898 = vcmp.lt.s32.totalorder %v798, 95
        %v899 = vsel %vm898, %v895, %v897
        %v900 = vsel %vm898, %v893, %v895
        %v901 = vsel %vm898, %v891, %v893
        %v902 = vsel %vm898, %v889, %v891
        %v903 = vsel %vm898, %v887, %v889
        %v904 = vsel %vm898, %v885, %v887
        %v905 = vsel %vm898, %v883, %v885
        %v906 = vsel %vm898, %v897, %v883
        %907 = vst [vmem:[#allocation2 + $0x100] sm:$0xff] %v905
        %908 = vst [vmem:[#allocation2 + $0x108] sm:$0xff] %v904
        %909 = vst [vmem:[#allocation2 + $0x110] sm:$0xff] %v903
        %910 = vst [vmem:[#allocation2 + $0x118] sm:$0xff] %v902
        %911 = vst [vmem:[#allocation2 + $0x120] sm:$0xff] %v901
        %912 = vst [vmem:[#allocation2 + $0x128] sm:$0xff] %v900
        %913 = vst [vmem:[#allocation2 + $0x130] sm:$0xff] %v899
        %914 = vst [vmem:[#allocation2 + $0x138] sm:$0xff] %v906
        %915 = vrot.lane.b32.xlu0 %v556, 94
        %v916 = vpop.permute.xlu0 %915
        %917 = vrot.lane.b32.xlu0 %v558, 94
        %v918 = vpop.permute.xlu0 %917
        %919 = vrot.lane.b32.xlu0 %v627, 94
        %v920 = vpop.permute.xlu0 %919
        %921 = vrot.lane.b32.xlu0 %v629, 94
        %v922 = vpop.permute.xlu0 %921
        %923 = vrot.lane.b32.xlu0 %v698, 94
        %v924 = vpop.permute.xlu0 %923
        %925 = vrot.lane.b32.xlu0 %v700, 94
        %v926 = vpop.permute.xlu0 %925
        %927 = vrot.lane.b32.xlu0 %v769, 94
        %v928 = vpop.permute.xlu0 %927
        %929 = vrot.lane.b32.xlu0 %v771, 94
        %v930 = vpop.permute.xlu0 %929
        %vm931 = vcmp.lt.s32.totalorder %v798, 94
        %v932 = vsel %vm931, %v928, %v930
        %v933 = vsel %vm931, %v926, %v928
        %v934 = vsel %vm931, %v924, %v926
        %v935 = vsel %vm931, %v922, %v924
        %v936 = vsel %vm931, %v920, %v922
        %v937 = vsel %vm931, %v918, %v920
        %v938 = vsel %vm931, %v916, %v918
        %v939 = vsel %vm931, %v930, %v916
        %940 = vst [vmem:[#allocation2 + $0x140] sm:$0xff] %v938
        %941 = vst [vmem:[#allocation2 + $0x148] sm:$0xff] %v937
        %942 = vst [vmem:[#allocation2 + $0x150] sm:$0xff] %v936
        %943 = vst [vmem:[#allocation2 + $0x158] sm:$0xff] %v935
        %944 = vst [vmem:[#allocation2 + $0x160] sm:$0xff] %v934
        %945 = vst [vmem:[#allocation2 + $0x168] sm:$0xff] %v933
        %946 = vst [vmem:[#allocation2 + $0x170] sm:$0xff] %v932
        %947 = vst [vmem:[#allocation2 + $0x178] sm:$0xff] %v939
        %948 = vrot.lane.b32.xlu0 %v556, 64
        %v949 = vpop.permute.xlu0 %948
        %950 = vrot.lane.b32.xlu0 %v558, 64
        %v951 = vpop.permute.xlu0 %950
        %952 = vrot.lane.b32.xlu0 %v627, 64
        %v953 = vpop.permute.xlu0 %952
        %954 = vrot.lane.b32.xlu0 %v629, 64
        %v955 = vpop.permute.xlu0 %954
        %956 = vrot.lane.b32.xlu0 %v698, 64
        %v957 = vpop.permute.xlu0 %956
        %958 = vrot.lane.b32.xlu0 %v700, 64
        %v959 = vpop.permute.xlu0 %958
        %960 = vrot.lane.b32.xlu0 %v769, 64
        %v961 = vpop.permute.xlu0 %960
        %962 = vrot.lane.b32.xlu0 %v771, 64
        %v963 = vpop.permute.xlu0 %962
        %vm964 = vcmp.lt.s32.totalorder %v798, 64
        %v965 = vsel %vm964, %v961, %v963
        %v966 = vsel %vm964, %v959, %v961
        %v967 = vsel %vm964, %v957, %v959
        %v968 = vsel %vm964, %v955, %v957
        %v969 = vsel %vm964, %v953, %v955
        %v970 = vsel %vm964, %v951, %v953
        %v971 = vsel %vm964, %v949, %v951
        %v972 = vsel %vm964, %v963, %v949
        %973 = vst [vmem:[#allocation2 + $0x180] sm:$0xff] %v971
        %974 = vst [vmem:[#allocation2 + $0x188] sm:$0xff] %v970
        %975 = vst [vmem:[#allocation2 + $0x190] sm:$0xff] %v969
        %976 = vst [vmem:[#allocation2 + $0x198] sm:$0xff] %v968
        %977 = vst [vmem:[#allocation2 + $0x1a0] sm:$0xff] %v967
        %978 = vst [vmem:[#allocation2 + $0x1a8] sm:$0xff] %v966
        %979 = vst [vmem:[#allocation2 + $0x1b0] sm:$0xff] %v965
        %980 = vst [vmem:[#allocation2 + $0x1b8] sm:$0xff] %v972
        %981 = vrot.lane.b32.xlu0 %v556, 63
        %v982 = vpop.permute.xlu0 %981
        %983 = vrot.lane.b32.xlu0 %v558, 63
        %v984 = vpop.permute.xlu0 %983
        %985 = vrot.lane.b32.xlu0 %v627, 63
        %v986 = vpop.permute.xlu0 %985
        %987 = vrot.lane.b32.xlu0 %v629, 63
        %v988 = vpop.permute.xlu0 %987
        %989 = vrot.lane.b32.xlu0 %v698, 63
        %v990 = vpop.permute.xlu0 %989
        %991 = vrot.lane.b32.xlu0 %v700, 63
        %v992 = vpop.permute.xlu0 %991
        %993 = vrot.lane.b32.xlu0 %v769, 63
        %v994 = vpop.permute.xlu0 %993
        %995 = vrot.lane.b32.xlu0 %v771, 63
        %v996 = vpop.permute.xlu0 %995
        %vm997 = vcmp.lt.s32.totalorder %v798, 63
        %v998 = vsel %vm997, %v994, %v996
        %v999 = vsel %vm997, %v992, %v994
        %v1000 = vsel %vm997, %v990, %v992
        %v1001 = vsel %vm997, %v988, %v990
        %v1002 = vsel %vm997, %v986, %v988
        %v1003 = vsel %vm997, %v984, %v986
        %v1004 = vsel %vm997, %v982, %v984
        %v1005 = vsel %vm997, %v996, %v982
        %1006 = vst [vmem:[#allocation2 + $0x1c0] sm:$0xff] %v1004
        %1007 = vst [vmem:[#allocation2 + $0x1c8] sm:$0xff] %v1003
        %1008 = vst [vmem:[#allocation2 + $0x1d0] sm:$0xff] %v1002
        %1009 = vst [vmem:[#allocation2 + $0x1d8] sm:$0xff] %v1001
        %1010 = vst [vmem:[#allocation2 + $0x1e0] sm:$0xff] %v1000
        %1011 = vst [vmem:[#allocation2 + $0x1e8] sm:$0xff] %v999
        %1012 = vst [vmem:[#allocation2 + $0x1f0] sm:$0xff] %v998
        %1013 = vst [vmem:[#allocation2 + $0x1f8] sm:$0xff] %v1005
        %1014 = vrot.lane.b32.xlu0 %v556, 62
        %v1015 = vpop.permute.xlu0 %1014
        %1016 = vrot.lane.b32.xlu0 %v558, 62
        %v1017 = vpop.permute.xlu0 %1016
        %1018 = vrot.lane.b32.xlu0 %v627, 62
        %v1019 = vpop.permute.xlu0 %1018
        %1020 = vrot.lane.b32.xlu0 %v629, 62
        %v1021 = vpop.permute.xlu0 %1020
        %1022 = vrot.lane.b32.xlu0 %v698, 62
        %v1023 = vpop.permute.xlu0 %1022
        %1024 = vrot.lane.b32.xlu0 %v700, 62
        %v1025 = vpop.permute.xlu0 %1024
        %1026 = vrot.lane.b32.xlu0 %v769, 62
        %v1027 = vpop.permute.xlu0 %1026
        %1028 = vrot.lane.b32.xlu0 %v771, 62
        %v1029 = vpop.permute.xlu0 %1028
        %vm1030 = vcmp.lt.s32.totalorder %v798, 62
        %v1031 = vsel %vm1030, %v1027, %v1029
        %v1032 = vsel %vm1030, %v1025, %v1027
        %v1033 = vsel %vm1030, %v1023, %v1025
        %v1034 = vsel %vm1030, %v1021, %v1023
        %v1035 = vsel %vm1030, %v1019, %v1021
        %v1036 = vsel %vm1030, %v1017, %v1019
        %v1037 = vsel %vm1030, %v1015, %v1017
        %v1038 = vsel %vm1030, %v1029, %v1015
        %1039 = vst [vmem:[#allocation2 + $0x200] sm:$0xff] %v1037
        %1040 = vst [vmem:[#allocation2 + $0x208] sm:$0xff] %v1036
        %1041 = vst [vmem:[#allocation2 + $0x210] sm:$0xff] %v1035
        %1042 = vst [vmem:[#allocation2 + $0x218] sm:$0xff] %v1034
        %1043 = vst [vmem:[#allocation2 + $0x220] sm:$0xff] %v1033
        %1044 = vst [vmem:[#allocation2 + $0x228] sm:$0xff] %v1032
        %1045 = vst [vmem:[#allocation2 + $0x230] sm:$0xff] %v1031
        %1046 = vst [vmem:[#allocation2 + $0x238] sm:$0xff] %v1038
        %v1047 = vld [vmem:[#allocation2] sm:$0xff]
        %v1048 = vld [vmem:[#allocation2 + $0x8] sm:$0xff]
        %v1049 = vld [vmem:[#allocation2 + $0x10] sm:$0xff]
        %v1050 = vld [vmem:[#allocation2 + $0x18] sm:$0xff]
        %v1051 = vld [vmem:[#allocation2 + $0x20] sm:$0xff]
        %v1052 = vld [vmem:[#allocation2 + $0x28] sm:$0xff]
        %v1053 = vld [vmem:[#allocation2 + $0x30] sm:$0xff]
        %v1054 = vld [vmem:[#allocation2 + $0x38] sm:$0xff]
        %v1055 = vld [vmem:[#allocation2 + $0x40] sm:$0xff]
        %v1056 = vld [vmem:[#allocation2 + $0x48] sm:$0xff]
        %v1057 = vld [vmem:[#allocation2 + $0x50] sm:$0xff]
        %v1058 = vld [vmem:[#allocation2 + $0x58] sm:$0xff]
        %v1059 = vld [vmem:[#allocation2 + $0x60] sm:$0xff]
        %v1060 = vld [vmem:[#allocation2 + $0x68] sm:$0xff]
        %v1061 = vld [vmem:[#allocation2 + $0x70] sm:$0xff]
        %v1062 = vld [vmem:[#allocation2 + $0x78] sm:$0xff]
        %v1063 = vld [vmem:[#allocation2 + $0x80] sm:$0xff]
        %v1064 = vld [vmem:[#allocation2 + $0x88] sm:$0xff]
        %v1065 = vld [vmem:[#allocation2 + $0x90] sm:$0xff]
        %v1066 = vld [vmem:[#allocation2 + $0x98] sm:$0xff]
        %v1067 = vld [vmem:[#allocation2 + $0xa0] sm:$0xff]
        %v1068 = vld [vmem:[#allocation2 + $0xa8] sm:$0xff]
        %v1069 = vld [vmem:[#allocation2 + $0xb0] sm:$0xff]
        %v1070 = vld [vmem:[#allocation2 + $0xb8] sm:$0xff]
        %v1071 = vld [vmem:[#allocation2 + $0xc0] sm:$0xff]
        %v1072 = vld [vmem:[#allocation2 + $0xc8] sm:$0xff]
        %v1073 = vld [vmem:[#allocation2 + $0xd0] sm:$0xff]
        %v1074 = vld [vmem:[#allocation2 + $0xd8] sm:$0xff]
        %v1075 = vld [vmem:[#allocation2 + $0xe0] sm:$0xff]
        %v1076 = vld [vmem:[#allocation2 + $0xe8] sm:$0xff]
        %v1077 = vld [vmem:[#allocation2 + $0xf0] sm:$0xff]
        %v1078 = vld [vmem:[#allocation2 + $0xf8] sm:$0xff]
        %v1079 = vld [vmem:[#allocation2 + $0x100] sm:$0xff]
        %v1080 = vld [vmem:[#allocation2 + $0x108] sm:$0xff]
        %v1081 = vld [vmem:[#allocation2 + $0x110] sm:$0xff]
        %v1082 = vld [vmem:[#allocation2 + $0x118] sm:$0xff]
        %v1083 = vld [vmem:[#allocation2 + $0x120] sm:$0xff]
        %v1084 = vld [vmem:[#allocation2 + $0x128] sm:$0xff]
        %v1085 = vld [vmem:[#allocation2 + $0x130] sm:$0xff]
        %v1086 = vld [vmem:[#allocation2 + $0x138] sm:$0xff]
        %v1087 = vld [vmem:[#allocation2 + $0x140] sm:$0xff]
        %v1088 = vld [vmem:[#allocation2 + $0x148] sm:$0xff]
        %v1089 = vld [vmem:[#allocation2 + $0x150] sm:$0xff]
        %v1090 = vld [vmem:[#allocation2 + $0x158] sm:$0xff]
        %v1091 = vld [vmem:[#allocation2 + $0x160] sm:$0xff]
        %v1092 = vld [vmem:[#allocation2 + $0x168] sm:$0xff]
        %v1093 = vld [vmem:[#allocation2 + $0x170] sm:$0xff]
        %v1094 = vld [vmem:[#allocation2 + $0x178] sm:$0xff]
        %v1095 = vld [vmem:[#allocation2 + $0x180] sm:$0xff]
        %v1096 = vld [vmem:[#allocation2 + $0x188] sm:$0xff]
        %v1097 = vld [vmem:[#allocation2 + $0x190] sm:$0xff]
        %v1098 = vld [vmem:[#allocation2 + $0x198] sm:$0xff]
        %v1099 = vld [vmem:[#allocation2 + $0x1a0] sm:$0xff]
        %v1100 = vld [vmem:[#allocation2 + $0x1a8] sm:$0xff]
        %v1101 = vld [vmem:[#allocation2 + $0x1b0] sm:$0xff]
        %v1102 = vld [vmem:[#allocation2 + $0x1b8] sm:$0xff]
        %v1103 = vld [vmem:[#allocation2 + $0x1c0] sm:$0xff]
        %v1104 = vld [vmem:[#allocation2 + $0x1c8] sm:$0xff]
        %v1105 = vld [vmem:[#allocation2 + $0x1d0] sm:$0xff]
        %v1106 = vld [vmem:[#allocation2 + $0x1d8] sm:$0xff]
        %v1107 = vld [vmem:[#allocation2 + $0x1e0] sm:$0xff]
        %v1108 = vld [vmem:[#allocation2 + $0x1e8] sm:$0xff]
        %v1109 = vld [vmem:[#allocation2 + $0x1f0] sm:$0xff]
        %v1110 = vld [vmem:[#allocation2 + $0x1f8] sm:$0xff]
        %v1111 = vld [vmem:[#allocation2 + $0x200] sm:$0xff]
        %v1112 = vld [vmem:[#allocation2 + $0x208] sm:$0xff]
        %v1113 = vld [vmem:[#allocation2 + $0x210] sm:$0xff]
        %v1114 = vld [vmem:[#allocation2 + $0x218] sm:$0xff]
        %v1115 = vld [vmem:[#allocation2 + $0x220] sm:$0xff]
        %v1116 = vld [vmem:[#allocation2 + $0x228] sm:$0xff]
        %v1117 = vld [vmem:[#allocation2 + $0x230] sm:$0xff]
        %v1118 = vld [vmem:[#allocation2 + $0x238] sm:$0xff]
        %1120 = vset.pattern.permute.xlu0 0
        %1121 = vperm.xlu0 %1120, %v486
        %v1122 = vpop.permute.xlu0 %1121
        %vm1124 = vcmask 588800
        %v1126 = vsel %vm1124, %v485, 0
        %1128 = vmatprep.subr.mxu0 %v1048
        %1129 = vmatpush1.msra.mxu0 %v1047
        %1130 = vmatprep.subr.mxu0 %v1056
        %1131 = vmatpush1.msra.mxu0 %v1055
        %1132 = vmatprep.subr.mxu0 %v1064
        %1133 = vmatpush1.msra.mxu0 %v1063
        %1134 = vmatprep.subr.mxu0 %v1072
        %1135 = vmatpush1.msra.mxu0 %v1071
        %1136 = vmatprep.subr.mxu0 %v1080
        %1137 = vmatpush1.msra.mxu0 %v1079
        %1138 = vmatprep.subr.mxu0 %v1088
        %1139 = vmatpush1.msra.mxu0 %v1087
        %1140 = vmatprep.subr.mxu0 %v1096
        %1141 = vmatpush1.msra.mxu0 %v1095
        %1142 = vmatprep.subr.mxu0 %v1104
        %1143 = vmatpush1.msra.mxu0 %v1103
        %1144 = vmatprep.subr.mxu0 %v1112
        %1145 = vmatpush1.msra.mxu0 %v1111
        %1146 = vmatprep.subr.mxu0 0.0
        %1147 = vmatpush1.msra.mxu0 0.0
        %1148 = vmatprep.subr.mxu0 0.0
        %1149 = vmatpush1.msra.mxu0 0.0
        %1150 = vmatprep.subr.mxu0 0.0
        %1151 = vmatpush1.msra.mxu0 0.0
        %1152 = vmatprep.subr.mxu0 0.0
        %1153 = vmatpush1.msra.mxu0 0.0
        %1154 = vmatprep.subr.mxu0 0.0
        %1155 = vmatpush1.msra.mxu0 0.0
        %1156 = vmatprep.subr.mxu0 0.0
        %1157 = vmatpush1.msra.mxu0 0.0
        %1158 = vmatprep.subr.mxu0 0.0
        %1159 = vmatpush1.msra.mxu0 0.0
        %1160 = vmatprep.subr.mxu0 0.0
        %1161 = vmatpush1.msra.mxu0 0.0
        %1162 = vmatprep.subr.mxu0 0.0
        %1163 = vmatpush1.msra.mxu0 0.0
        %1164 = vmatprep.subr.mxu0 0.0
        %1165 = vmatpush1.msra.mxu0 0.0
        %1166 = vmatprep.subr.mxu0 0.0
        %1167 = vmatpush1.msra.mxu0 0.0
        %1168 = vmatprep.subr.mxu0 0.0
        %1169 = vmatpush1.msra.mxu0 0.0
        %1170 = vmatprep.subr.mxu0 0.0
        %1171 = vmatpush1.msra.mxu0 0.0
        %1172 = vmatprep.subr.mxu0 0.0
        %1173 = vmatpush1.msra.mxu0 0.0
        %1174 = vmatprep.subr.mxu0 0.0
        %1175 = vmatpush1.msra.mxu0 0.0
        %1176 = vmatprep.subr.mxu0 0.0
        %1177 = vmatpush1.msra.mxu0 0.0
        %1178 = vmatprep.subr.mxu0 0.0
        %1179 = vmatpush1.msra.mxu0 0.0
        %1180 = vmatprep.subr.mxu0 0.0
        %1181 = vmatpush1.msra.mxu0 0.0
        %1182 = vmatprep.subr.mxu0 0.0
        %1183 = vmatpush1.msra.mxu0 0.0
        %1184 = vmatprep.subr.mxu0 0.0
        %1185 = vmatpush1.msra.mxu0 0.0
        %1186 = vmatprep.subr.mxu0 0.0
        %1187 = vmatpush1.msra.mxu0 0.0
        %1188 = vmatprep.subr.mxu0 0.0
        %1189 = vmatpush1.msra.mxu0 0.0
        %1190 = vmatprep.subr.mxu0 0.0
        %1191 = vmatpush1.msra.mxu0 0.0
        %1192 = vmatprep.mubr.f32.mxu0 0.0
        %1193 = vmatmul.mubr.f32.gmra.mrb[0].mxu0 %v1126
        %v1194 = vpop.f32.mrb[0].mxu0
        %v1195 = vadd.f32 %v1122, %v1194
        %v1196 = vpop.f32.mrb[0].mxu0
        %v1197 = vadd.f32 %v1122, %v1196
        %1198 = vdwg.mxu0
        %1199 = vmatprep.subr.mxu0 %v1050
        %1200 = vmatpush1.msra.mxu0 %v1049
        %1201 = vmatprep.subr.mxu0 %v1058
        %1202 = vmatpush1.msra.mxu0 %v1057
        %1203 = vmatprep.subr.mxu0 %v1066
        %1204 = vmatpush1.msra.mxu0 %v1065
        %1205 = vmatprep.subr.mxu0 %v1074
        %1206 = vmatpush1.msra.mxu0 %v1073
        %1207 = vmatprep.subr.mxu0 %v1082
        %1208 = vmatpush1.msra.mxu0 %v1081
        %1209 = vmatprep.subr.mxu0 %v1090
        %1210 = vmatpush1.msra.mxu0 %v1089
        %1211 = vmatprep.subr.mxu0 %v1098
        %1212 = vmatpush1.msra.mxu0 %v1097
        %1213 = vmatprep.subr.mxu0 %v1106
        %1214 = vmatpush1.msra.mxu0 %v1105
        %1215 = vmatprep.subr.mxu0 %v1114
        %1216 = vmatpush1.msra.mxu0 %v1113
        %1217 = vmatprep.subr.mxu0 0.0
        %1218 = vmatpush1.msra.mxu0 0.0
        %1219 = vmatprep.subr.mxu0 0.0
        %1220 = vmatpush1.msra.mxu0 0.0
        %1221 = vmatprep.subr.mxu0 0.0
        %1222 = vmatpush1.msra.mxu0 0.0
        %1223 = vmatprep.subr.mxu0 0.0
        %1224 = vmatpush1.msra.mxu0 0.0
        %1225 = vmatprep.subr.mxu0 0.0
        %1226 = vmatpush1.msra.mxu0 0.0
        %1227 = vmatprep.subr.mxu0 0.0
        %1228 = vmatpush1.msra.mxu0 0.0
        %1229 = vmatprep.subr.mxu0 0.0
        %1230 = vmatpush1.msra.mxu0 0.0
        %1231 = vmatprep.subr.mxu0 0.0
        %1232 = vmatpush1.msra.mxu0 0.0
        %1233 = vmatprep.subr.mxu0 0.0
        %1234 = vmatpush1.msra.mxu0 0.0
        %1235 = vmatprep.subr.mxu0 0.0
        %1236 = vmatpush1.msra.mxu0 0.0
        %1237 = vmatprep.subr.mxu0 0.0
        %1238 = vmatpush1.msra.mxu0 0.0
        %1239 = vmatprep.subr.mxu0 0.0
        %1240 = vmatpush1.msra.mxu0 0.0
        %1241 = vmatprep.subr.mxu0 0.0
        %1242 = vmatpush1.msra.mxu0 0.0
        %1243 = vmatprep.subr.mxu0 0.0
        %1244 = vmatpush1.msra.mxu0 0.0
        %1245 = vmatprep.subr.mxu0 0.0
        %1246 = vmatpush1.msra.mxu0 0.0
        %1247 = vmatprep.subr.mxu0 0.0
        %1248 = vmatpush1.msra.mxu0 0.0
        %1249 = vmatprep.subr.mxu0 0.0
        %1250 = vmatpush1.msra.mxu0 0.0
        %1251 = vmatprep.subr.mxu0 0.0
        %1252 = vmatpush1.msra.mxu0 0.0
        %1253 = vmatprep.subr.mxu0 0.0
        %1254 = vmatpush1.msra.mxu0 0.0
        %1255 = vmatprep.subr.mxu0 0.0
        %1256 = vmatpush1.msra.mxu0 0.0
        %1257 = vmatprep.subr.mxu0 0.0
        %1258 = vmatpush1.msra.mxu0 0.0
        %1259 = vmatprep.subr.mxu0 0.0
        %1260 = vmatpush1.msra.mxu0 0.0
        %1261 = vmatprep.subr.mxu0 0.0
        %1262 = vmatpush1.msra.mxu0 0.0
        %1263 = vmatprep.mubr.f32.mxu0 0.0
        %1264 = vmatmul.mubr.f32.gmra.mrb[0].mxu0 %v1126
        %v1265 = vpop.f32.mrb[0].mxu0
        %v1266 = vadd.f32 %v1122, %v1265
        %v1267 = vpop.f32.mrb[0].mxu0
        %v1268 = vadd.f32 %v1122, %v1267
        %1269 = vdwg.mxu0
        %1270 = vmatprep.subr.mxu0 %v1052
        %1271 = vmatpush1.msra.mxu0 %v1051
        %1272 = vmatprep.subr.mxu0 %v1060
        %1273 = vmatpush1.msra.mxu0 %v1059
        %1274 = vmatprep.subr.mxu0 %v1068
        %1275 = vmatpush1.msra.mxu0 %v1067
        %1276 = vmatprep.subr.mxu0 %v1076
        %1277 = vmatpush1.msra.mxu0 %v1075
        %1278 = vmatprep.subr.mxu0 %v1084
        %1279 = vmatpush1.msra.mxu0 %v1083
        %1280 = vmatprep.subr.mxu0 %v1092
        %1281 = vmatpush1.msra.mxu0 %v1091
        %1282 = vmatprep.subr.mxu0 %v1100
        %1283 = vmatpush1.msra.mxu0 %v1099
        %1284 = vmatprep.subr.mxu0 %v1108
        %1285 = vmatpush1.msra.mxu0 %v1107
        %1286 = vmatprep.subr.mxu0 %v1116
        %1287 = vmatpush1.msra.mxu0 %v1115
        %1288 = vmatprep.subr.mxu0 0.0
        %1289 = vmatpush1.msra.mxu0 0.0
        %1290 = vmatprep.subr.mxu0 0.0
        %1291 = vmatpush1.msra.mxu0 0.0
        %1292 = vmatprep.subr.mxu0 0.0
        %1293 = vmatpush1.msra.mxu0 0.0
        %1294 = vmatprep.subr.mxu0 0.0
        %1295 = vmatpush1.msra.mxu0 0.0
        %1296 = vmatprep.subr.mxu0 0.0
        %1297 = vmatpush1.msra.mxu0 0.0
        %1298 = vmatprep.subr.mxu0 0.0
        %1299 = vmatpush1.msra.mxu0 0.0
        %1300 = vmatprep.subr.mxu0 0.0
        %1301 = vmatpush1.msra.mxu0 0.0
        %1302 = vmatprep.subr.mxu0 0.0
        %1303 = vmatpush1.msra.mxu0 0.0
        %1304 = vmatprep.subr.mxu0 0.0
        %1305 = vmatpush1.msra.mxu0 0.0
        %1306 = vmatprep.subr.mxu0 0.0
        %1307 = vmatpush1.msra.mxu0 0.0
        %1308 = vmatprep.subr.mxu0 0.0
        %1309 = vmatpush1.msra.mxu0 0.0
        %1310 = vmatprep.subr.mxu0 0.0
        %1311 = vmatpush1.msra.mxu0 0.0
        %1312 = vmatprep.subr.mxu0 0.0
        %1313 = vmatpush1.msra.mxu0 0.0
        %1314 = vmatprep.subr.mxu0 0.0
        %1315 = vmatpush1.msra.mxu0 0.0
        %1316 = vmatprep.subr.mxu0 0.0
        %1317 = vmatpush1.msra.mxu0 0.0
        %1318 = vmatprep.subr.mxu0 0.0
        %1319 = vmatpush1.msra.mxu0 0.0
        %1320 = vmatprep.subr.mxu0 0.0
        %1321 = vmatpush1.msra.mxu0 0.0
        %1322 = vmatprep.subr.mxu0 0.0
        %1323 = vmatpush1.msra.mxu0 0.0
        %1324 = vmatprep.subr.mxu0 0.0
        %1325 = vmatpush1.msra.mxu0 0.0
        %1326 = vmatprep.subr.mxu0 0.0
        %1327 = vmatpush1.msra.mxu0 0.0
        %1328 = vmatprep.subr.mxu0 0.0
        %1329 = vmatpush1.msra.mxu0 0.0
        %1330 = vmatprep.subr.mxu0 0.0
        %1331 = vmatpush1.msra.mxu0 0.0
        %1332 = vmatprep.subr.mxu0 0.0
        %1333 = vmatpush1.msra.mxu0 0.0
        %1334 = vmatprep.mubr.f32.mxu0 0.0
        %1335 = vmatmul.mubr.f32.gmra.mrb[0].mxu0 %v1126
        %v1336 = vpop.f32.mrb[0].mxu0
        %v1337 = vadd.f32 %v1122, %v1336
        %v1338 = vpop.f32.mrb[0].mxu0
        %v1339 = vadd.f32 %v1122, %v1338
        %1340 = vdwg.mxu0
        %1341 = vmatprep.subr.mxu0 %v1054
        %1342 = vmatpush1.msra.mxu0 %v1053
        %1343 = vmatprep.subr.mxu0 %v1062
        %1344 = vmatpush1.msra.mxu0 %v1061
        %1345 = vmatprep.subr.mxu0 %v1070
        %1346 = vmatpush1.msra.mxu0 %v1069
        %1347 = vmatprep.subr.mxu0 %v1078
        %1348 = vmatpush1.msra.mxu0 %v1077
        %1349 = vmatprep.subr.mxu0 %v1086
        %1350 = vmatpush1.msra.mxu0 %v1085
        %1351 = vmatprep.subr.mxu0 %v1094
        %1352 = vmatpush1.msra.mxu0 %v1093
        %1353 = vmatprep.subr.mxu0 %v1102
        %1354 = vmatpush1.msra.mxu0 %v1101
        %1355 = vmatprep.subr.mxu0 %v1110
        %1356 = vmatpush1.msra.mxu0 %v1109
        %1357 = vmatprep.subr.mxu0 %v1118
        %1358 = vmatpush1.msra.mxu0 %v1117
        %1359 = vmatprep.subr.mxu0 0.0
        %1360 = vmatpush1.msra.mxu0 0.0
        %1361 = vmatprep.subr.mxu0 0.0
        %1362 = vmatpush1.msra.mxu0 0.0
        %1363 = vmatprep.subr.mxu0 0.0
        %1364 = vmatpush1.msra.mxu0 0.0
        %1365 = vmatprep.subr.mxu0 0.0
        %1366 = vmatpush1.msra.mxu0 0.0
        %1367 = vmatprep.subr.mxu0 0.0
        %1368 = vmatpush1.msra.mxu0 0.0
        %1369 = vmatprep.subr.mxu0 0.0
        %1370 = vmatpush1.msra.mxu0 0.0
        %1371 = vmatprep.subr.mxu0 0.0
        %1372 = vmatpush1.msra.mxu0 0.0
        %1373 = vmatprep.subr.mxu0 0.0
        %1374 = vmatpush1.msra.mxu0 0.0
        %1375 = vmatprep.subr.mxu0 0.0
        %1376 = vmatpush1.msra.mxu0 0.0
        %1377 = vmatprep.subr.mxu0 0.0
        %1378 = vmatpush1.msra.mxu0 0.0
        %1379 = vmatprep.subr.mxu0 0.0
        %1380 = vmatpush1.msra.mxu0 0.0
        %1381 = vmatprep.subr.mxu0 0.0
        %1382 = vmatpush1.msra.mxu0 0.0
        %1383 = vmatprep.subr.mxu0 0.0
        %1384 = vmatpush1.msra.mxu0 0.0
        %1385 = vmatprep.subr.mxu0 0.0
        %1386 = vmatpush1.msra.mxu0 0.0
        %1387 = vmatprep.subr.mxu0 0.0
        %1388 = vmatpush1.msra.mxu0 0.0
        %1389 = vmatprep.subr.mxu0 0.0
        %1390 = vmatpush1.msra.mxu0 0.0
        %1391 = vmatprep.subr.mxu0 0.0
        %1392 = vmatpush1.msra.mxu0 0.0
        %1393 = vmatprep.subr.mxu0 0.0
        %1394 = vmatpush1.msra.mxu0 0.0
        %1395 = vmatprep.subr.mxu0 0.0
        %1396 = vmatpush1.msra.mxu0 0.0
        %1397 = vmatprep.subr.mxu0 0.0
        %1398 = vmatpush1.msra.mxu0 0.0
        %1399 = vmatprep.subr.mxu0 0.0
        %1400 = vmatpush1.msra.mxu0 0.0
        %1401 = vmatprep.subr.mxu0 0.0
        %1402 = vmatpush1.msra.mxu0 0.0
        %1403 = vmatprep.subr.mxu0 0.0
        %1404 = vmatpush1.msra.mxu0 0.0
        %1405 = vmatprep.mubr.f32.mxu0 0.0
        %1406 = vmatmul.mubr.f32.gmra.mrb[0].mxu0 %v1126
        %v1407 = vpop.f32.mrb[0].mxu0
        %v1408 = vadd.f32 %v1122, %v1407
        %v1409 = vpop.f32.mrb[0].mxu0
        %v1410 = vadd.f32 %v1122, %v1409
        %1411 = vdwg.mxu0
        %1412 = vst [vmem:[%s228] sm:$0xff] %v1195
        %1413 = vst [vmem:[%s228 + $0x8] sm:$0xff] %v1197
        %1414 = vst [vmem:[%s228 + $0x10] sm:$0xff] %v1266
        %1415 = vst [vmem:[%s228 + $0x18] sm:$0xff] %v1268
        %1416 = vst [vmem:[%s228 + $0x20] sm:$0xff] %v1337
        %1417 = vst [vmem:[%s228 + $0x28] sm:$0xff] %v1339
        %1418 = vst [vmem:[%s228 + $0x30] sm:$0xff] %v1408
        %1419 = vst [vmem:[%s228 + $0x38] sm:$0xff] %v1410
        %s1420 = sand.u32 %s119, 1
        %s1421 = scalar_lea.sflag [#allocation5], %s1420
        %s1422 = sand.u32 %s119, 1
        %s1423 = smul.addr %s1422, 64
        %s1424 = scalar_lea.vmem [#allocation8], %s1423
        // Predicated region
        $region45: #{tpu_custom_call.1} parent=35 // pred_check
          %p1425 = pneg %p129
        $region46: #{tpu_custom_call.1} parent=35 // pred_check_branch
          %1427 = sbr.rel (%p1425) target = $region48
        $region47: #{tpu_custom_call.1} parent=35 // pred_region
          %s1429 = ssub.s32 1024, 1024
          %1430 = vsyncadd %s1421, %s1429
          %s1431 = smul.addr %s22, 8
          %s1432 = smul.addr %s1431, 128
          %s1433 = scalar_lea.hbm %s4, %s1432
          %s1435 = sshll.u32 %s1424, 4
          %s1436 = int_to_ptr.vmem [resolvable:$true] %s1435
          %1438 = dma.vmem_to_hbm [thread:$0]  %s1436, 1024, %s1433, %s1421
        $region48: #{tpu_custom_call.1} parent=35 // pred_fallthru
          _
      $region36: #{tpu_custom_call.1} parent=5 // pred_fallthru
        _
      %p1439 = scmp.le.s32.totalorder 2, %s17
      // Predicated region
      $region49: #{tpu_custom_call.1} parent=5 // pred_check
        %p1440 = pneg %p1439
      $region50: #{tpu_custom_call.1} parent=5 // pred_check_branch
        %1442 = sbr.rel (%p1440) target = $region52
      $region51: #{tpu_custom_call.1} parent=5 // pred_region
        %s1443 = ssub.s32 %s17, 2
        // Predicated region
        $region53: #{tpu_custom_call.1} parent=51 // pred_check
          %p1444 = pneg %p135
        $region54: #{tpu_custom_call.1} parent=51 // pred_check_branch
          %1446 = sbr.rel (%p1444) target = $region56
        $region55: #{tpu_custom_call.1} parent=51 // pred_region
          %s1447 = sand.u32 %s120, 1
          %s1448 = scalar_lea.sflag [#allocation5], %s1447
          %s1449 = sand.u32 %s120, 1
          %s1450 = smul.addr %s1449, 64
          %s1451 = scalar_lea.vmem [#allocation8], %s1450
          %1452 = dma.done %s1448, 1024
        $region56: #{tpu_custom_call.1} parent=51 // pred_fallthru
          _
      $region52: #{tpu_custom_call.1} parent=5 // pred_fallthru
        _
    $region6: #{tpu_custom_call.1} parent=1 // loop_footer
      %s21 = sadd.s32 1, %s17
    $region7: #{tpu_custom_call.1} parent=1 // loop_footer_branch
      %16 = sbr.rel target = $region3
    $region8: #{tpu_custom_call.1} parent=1 // loop_exit
      _
    %1453 = vsyncpa [#allocation4], 1
    %s1454 = scalar_lea.sflag [#allocation4], 1
    %1455 = vsyncpa %s1454, 1
    %1456 = vsyncpa [#allocation7], 1
    %1457 = vsyncpa [#allocation5], 1
    %s1458 = scalar_lea.sflag [#allocation5], 1
    %1459 = vsyncpa %s1458, 1

</llo_original>
